<compile_context>
chip_gen: v5e
topology: v5e:2x2
jax: 0.10.0
libtpu: 0.0.40
codegen_flags: <defaults>
</compile_context>

<pallas_src>
import functools

import jax
import jax.numpy as jnp
from jax.experimental import pallas as pl
from jax.experimental.pallas import tpu as pltpu


def _round_up(x, m):
    return ((x + m - 1) // m) * m


# ----------------------------- Pallas kernels ------------------------------


def _conv1x1_kernel(x_ref, w_ref, b_ref, o_ref):
    # x: (BM, Cin) bf16, w: (Cin, Cout) bf16, b: (1, Cout) f32
    acc = jnp.dot(x_ref[...], w_ref[...], preferred_element_type=jnp.float32)
    y = jnp.maximum(acc + b_ref[...], 0.0)
    o_ref[...] = y.astype(o_ref.dtype)


def _conv1x1_add_kernel(x_ref, w_ref, b_ref, res_ref, o_ref):
    # Fused "upsample(coarse) + relu(conv(x))" epilogue (add AFTER relu, as in
    # the reference: F.interpolate(p) + ConvBnRelu(c)).
    acc = jnp.dot(x_ref[...], w_ref[...], preferred_element_type=jnp.float32)
    y = jnp.maximum(acc + b_ref[...], 0.0) + res_ref[...].astype(jnp.float32)
    o_ref[...] = y.astype(o_ref.dtype)


def _make_conv3x3_kernel(n_src):
    # refs = (src_0, ..., src_{n_src-1}, w, b, o)
    #   src_s : (H+2, Wr, 3*Cs) bf16   (per-batch resident, W-taps pre-expanded)
    #   w     : (n_src, 3, 3*Cs, Cout) bf16
    #   b     : (1, Cout) f32
    #   o     : (Wr, Cout) bf16        (one output spatial row)
    def kernel(*refs):
        src_refs = refs[:n_src]
        w_ref, b_ref, o_ref = refs[n_src], refs[n_src + 1], refs[n_src + 2]
        row = pl.program_id(1)
        acc = jnp.zeros(o_ref.shape, jnp.float32)
        for s in range(n_src):
            for kh in range(3):
                a = src_refs[s][row + kh]          # (Wr, 3*Cs) bf16
                wk = w_ref[s, kh]                  # (3*Cs, Cout) bf16
                acc = acc + jnp.dot(a, wk, preferred_element_type=jnp.float32)
        y = jnp.maximum(acc + b_ref[...], 0.0)
        o_ref[...] = y.astype(o_ref.dtype)

    return kernel


# --------------------------- conv wrappers ---------------------------------


_BM_MAX = 256  # row-tile for the 1x1 convs (multiple of 16)


def conv_bn_relu_1x1(x_nhwc, w, bias, residual=None):
    """relu(x @ w + bias) (+ residual), row-tiled over M = N*H*W."""
    n, h, wd, cin = x_nhwc.shape
    cout = w.shape[-1]
    m = n * h * wd
    bm = min(_BM_MAX, _round_up(m, 16))
    mp = _round_up(m, bm)

    xf = x_nhwc.reshape(m, cin).astype(jnp.bfloat16)
    if mp != m:
        xf = jnp.pad(xf, ((0, mp - m), (0, 0)))

    in_specs = [
        pl.BlockSpec((bm, cin), lambda i: (i, 0)),
        pl.BlockSpec((cin, cout), lambda i: (0, 0)),
        pl.BlockSpec((1, cout), lambda i: (0, 0)),
    ]
    args = [xf, w, bias]
    if residual is not None:
        rf = residual.reshape(m, cout).astype(jnp.bfloat16)
        if mp != m:
            rf = jnp.pad(rf, ((0, mp - m), (0, 0)))
        in_specs.append(pl.BlockSpec((bm, cout), lambda i: (i, 0)))
        args.append(rf)
        kernel = _conv1x1_add_kernel
    else:
        kernel = _conv1x1_kernel

    out = pl.pallas_call(
        kernel,
        grid=(mp // bm,),
        in_specs=in_specs,
        out_specs=pl.BlockSpec((bm, cout), lambda i: (i, 0)),
        out_shape=jax.ShapeDtypeStruct((mp, cout), jnp.bfloat16),
        compiler_params=pltpu.CompilerParams(
            dimension_semantics=("parallel",)),
    )(*args)
    return out[:m].reshape(n, h, wd, cout)


def conv_bn_relu_3x3(sources, w_taps, bias):
    """3x3 conv (stride 1, pad 1) + bias + relu over the channel-concat of
    `sources` (list of (N, H, W, C) tensors), without materializing the
    concatenated tensor or a 9x im2col matrix in HBM."""
    n, h, wd, c = sources[0].shape
    n_src = len(sources)
    cout = w_taps.shape[-1]
    assert w_taps.shape == (n_src, 3, 3 * c, cout)
    wr = _round_up(wd, 16)  # lane-friendly row width; extra cols are discarded

    expanded = []
    for src in sources:
        xp = jnp.pad(src.astype(jnp.bfloat16), ((0, 0), (0, 0), (1, 1), (0, 0)))
        # W-tap channel expansion, kw-major: (N, H, W, 3C)
        xw = jnp.concatenate([xp[:, :, kw:kw + wd, :] for kw in range(3)],
                             axis=-1)
        # pad H by 1 each side (conv zero-padding), pad W up to Wr
        xw = jnp.pad(xw, ((0, 0), (1, 1), (0, wr - wd), (0, 0)))
        expanded.append(xw)  # (N, H+2, Wr, 3C)

    src_spec = pl.BlockSpec((None, h + 2, wr, 3 * c), lambda b, r: (b, 0, 0, 0))
    in_specs = (
        [src_spec for _ in range(n_src)]
        + [pl.BlockSpec(w_taps.shape, lambda b, r: (0, 0, 0, 0)),
           pl.BlockSpec((1, cout), lambda b, r: (0, 0))]
    )

    out = pl.pallas_call(
        _make_conv3x3_kernel(n_src),
        grid=(n, h),
        in_specs=in_specs,
        out_specs=pl.BlockSpec((None, None, wr, cout),
                               lambda b, r: (b, r, 0, 0)),
        out_shape=jax.ShapeDtypeStruct((n, h, wr, cout), jnp.bfloat16),
        compiler_params=pltpu.CompilerParams(
            dimension_semantics=("parallel", "arbitrary")),
    )(*expanded, w_taps, bias)
    return out[:, :, :wd, :]


def upsample_nearest(x_nhwc, out_h, out_w):
    # PyTorch F.interpolate(mode='nearest'): src = floor(dst * in / out).
    n, h, w, c = x_nhwc.shape
    hi = (jnp.arange(out_h) * h) // out_h
    wi = (jnp.arange(out_w) * w) // out_w
    return x_nhwc[:, hi[:, None], wi[None, :], :]


# ------------------------------ parameter init ------------------------------


def _init_folded_conv_bn(key, cin, cout, ksize):
    """Conv+BN(eval)+ReLU params with BN folded into weight/bias."""
    kw_, kb, kg, kbe = jax.random.split(key, 4)
    w = jax.random.normal(kw_, (ksize, ksize, cin, cout), jnp.float32) * 0.1
    conv_b = jax.random.normal(kb, (cout,), jnp.float32) * 0.1
    gamma = 1.0 + 0.1 * jax.random.normal(kg, (cout,), jnp.float32)
    beta = 0.1 * jax.random.normal(kbe, (cout,), jnp.float32)
    running_mean = jnp.zeros((cout,), jnp.float32)
    running_var = jnp.ones((cout,), jnp.float32)
    eps = 1e-5
    scale = gamma / jnp.sqrt(running_var + eps)       # (cout,)
    w_folded = w * scale                               # fold BN scale into w
    bias = beta + (conv_b - running_mean) * scale
    return w_folded, bias.reshape(1, cout).astype(jnp.float32)


def _prep_1x1(key, cin, cout):
    w, b = _init_folded_conv_bn(key, cin, cout, 1)
    return w.reshape(cin, cout).astype(jnp.bfloat16), b


def _prep_3x3(key, cin, cout, n_src):
    # Weight stored per (source, kh) as a (3*C_src, cout) matrix matching the
    # kw-major channel expansion; Cin = n_src * c_src (concat order preserved).
    c_src = cin // n_src
    w, b = _init_folded_conv_bn(key, cin, cout, 3)     # HWIO (3, 3, cin, cout)
    per_src = [
        w[:, :, s * c_src:(s + 1) * c_src, :].reshape(3, 3 * c_src, cout)
        for s in range(n_src)
    ]
    w_taps = jnp.stack(per_src, axis=0).astype(jnp.bfloat16)
    return w_taps, b


def init_fpn_params(key, in_channels, inner_channels):
    inner = inner_channels // 4
    keys = jax.random.split(key, 8)
    return {
        "reduce_c2": _prep_1x1(keys[0], in_channels[0], inner),
        "reduce_c3": _prep_1x1(keys[1], in_channels[1], inner),
        "reduce_c4": _prep_1x1(keys[2], in_channels[2], inner),
        "reduce_c5": _prep_1x1(keys[3], in_channels[3], inner),
        "smooth_p4": _prep_3x3(keys[4], inner, inner, 1),
        "smooth_p3": _prep_3x3(keys[5], inner, inner, 1),
        "smooth_p2": _prep_3x3(keys[6], inner, inner, 1),
        "final": _prep_3x3(keys[7], inner_channels, inner_channels, 4),
    }


# ------------------------------- FPN forward --------------------------------


def fpn_forward(c2, c3, c4, c5, params):
    """Inputs are NHWC. Returns NHWC output with conv_out channels."""
    p5 = conv_bn_relu_1x1(c5, *params["reduce_c5"])

    r4 = conv_bn_relu_1x1(
        c4, *params["reduce_c4"],
        residual=upsample_nearest(p5, c4.shape[1], c4.shape[2]))
    p4 = conv_bn_relu_3x3([r4], *params["smooth_p4"])

    r3 = conv_bn_relu_1x1(
        c3, *params["reduce_c3"],
        residual=upsample_nearest(p4, c3.shape[1], c3.shape[2]))
    p3 = conv_bn_relu_3x3([r3], *params["smooth_p3"])

    r2 = conv_bn_relu_1x1(
        c2, *params["reduce_c2"],
        residual=upsample_nearest(p3, c2.shape[1], c2.shape[2]))
    p2 = conv_bn_relu_3x3([r2], *params["smooth_p2"])

    # Fused _up_sample_cat + final conv: channel order p2, p3, p4, p5
    # (same as torch.cat(dim=1)) handled by per-source weight slices.
    h, wd = p2.shape[1], p2.shape[2]
    sources = [
        p2,
        upsample_nearest(p3, h, wd),
        upsample_nearest(p4, h, wd),
        upsample_nearest(p5, h, wd),
    ]
    x = conv_bn_relu_3x3(sources, *params["final"])
    return x.astype(jnp.float32)


# ----------------------------------- main ------------------------------------


if __name__ == "__main__":
    key = jax.random.PRNGKey(0)
    k_in, k_params = jax.random.split(key)
    k2, k3, k4, k5 = jax.random.split(k_in, 4)

    batch = 2
    in_channels = [4, 8, 16, 32]
    inner_channels = 16

    # PyTorch-convention NCHW inputs (c2 highest resolution), then -> NHWC.
    c2_nchw = jax.random.normal(k2, (batch, in_channels[0], 16, 16), jnp.float32)
    c3_nchw = jax.random.normal(k3, (batch, in_channels[1], 8, 8), jnp.float32)
    c4_nchw = jax.random.normal(k4, (batch, in_channels[2], 4, 4), jnp.float32)
    c5_nchw = jax.random.normal(k5, (batch, in_channels[3], 2, 2), jnp.float32)

    to_nhwc = lambda t: jnp.transpose(t, (0, 2, 3, 1))
    c2, c3, c4, c5 = map(to_nhwc, (c2_nchw, c3_nchw, c4_nchw, c5_nchw))

    params = init_fpn_params(k_params, in_channels, inner_channels)

    fwd = jax.jit(functools.partial(fpn_forward, params=params))
    out = fwd(c2, c3, c4, c5)
    out = jax.block_until_ready(out)

    assert out.shape == (batch, 16, 16, inner_channels), out.shape
    assert jnp.all(jnp.isfinite(out))
    print("KERNEL_OK")
</pallas_src>

<mosaic_0001>
module attributes {stable_mosaic.version = 11 : i64} {
  func.func @_conv1x1_kernel(%arg0: i32, %arg1: memref<16x32xbf16, #tpu.memory_space<vmem>>, %arg2: memref<32x4xbf16, #tpu.memory_space<vmem>>, %arg3: memref<1x4xf32, #tpu.memory_space<vmem>>, %arg4: memref<16x4xbf16, #tpu.memory_space<vmem>>) attributes {dimension_semantics = [#tpu.dimension_semantics<parallel>], iteration_bounds = array<i64: 1>, scalar_prefetch = 0 : i64, scratch_operands = 0 : i64, tpu.core_type = #tpu.core_type<tc>, window_params = [{transform_indices = @transform_0, window_bounds = array<i64: 16, 32>}, {pipeline_mode = #tpu.pipeline_mode<synchronous>, transform_indices = @transform_1, window_bounds = array<i64: 32, 4>}, {pipeline_mode = #tpu.pipeline_mode<synchronous>, transform_indices = @transform_2, window_bounds = array<i64: 1, 4>}, {transform_indices = @transform_3, window_bounds = array<i64: 16, 4>}]} {
    %c0 = arith.constant 0 : index
    %c0_0 = arith.constant 0 : index
    %0 = vector.load %arg1[%c0, %c0_0] : memref<16x32xbf16, #tpu.memory_space<vmem>>, vector<16x32xbf16>
    %c0_1 = arith.constant 0 : index
    %c0_2 = arith.constant 0 : index
    %1 = vector.load %arg2[%c0_1, %c0_2] : memref<32x4xbf16, #tpu.memory_space<vmem>>, vector<32x4xbf16>
    %cst = arith.constant dense<0.000000e+00> : vector<16x4xf32>
    %2 = tpu.matmul %0, %1, %cst {dimension_numbers = #tpu.dot_dimension_numbers<[1], [0], [0], [1], [0, 0, 1, 1], [], []>} : vector<16x32xbf16>, vector<32x4xbf16>, vector<16x4xf32> -> vector<16x4xf32>
    %c0_3 = arith.constant 0 : index
    %c0_4 = arith.constant 0 : index
    %3 = vector.load %arg3[%c0_3, %c0_4] : memref<1x4xf32, #tpu.memory_space<vmem>>, vector<1x4xf32>
    %4 = vector.broadcast %3 : vector<1x4xf32> to vector<16x4xf32>
    %5 = arith.addf %2, %4 : vector<16x4xf32>
    %cst_5 = arith.constant 0.000000e+00 : f32
    %6 = vector.broadcast %cst_5 : f32 to vector<16x4xf32>
    %7 = arith.maximumf %5, %6 : vector<16x4xf32>
    %8 = arith.truncf %7 : vector<16x4xf32> to vector<16x4xbf16>
    %c0_6 = arith.constant 0 : index
    %c0_7 = arith.constant 0 : index
    %9 = vector.load %arg4[%c0_6, %c0_7] : memref<16x4xbf16, #tpu.memory_space<vmem>>, vector<16x4xbf16>
    tpu.vector_store %arg4[%c0_6, %c0_7], %8 {strides = array<i32>} : memref<16x4xbf16, #tpu.memory_space<vmem>>, vector<16x4xbf16>,
    return
  }
  func.func @transform_0(%arg0: i32) -> (i32, i32) {
    %c0_i32 = arith.constant 0 : i32
    %c0_i32_0 = arith.constant 0 : i32
    return %arg0, %c0_i32 : i32, i32
  }
  func.func @transform_1(%arg0: i32) -> (i32, i32) {
    %c0_i32 = arith.constant 0 : i32
    %c0_i32_0 = arith.constant 0 : i32
    %c0_i32_1 = arith.constant 0 : i32
    return %c0_i32, %c0_i32_0 : i32, i32
  }
  func.func @transform_2(%arg0: i32) -> (i32, i32) {
    %c0_i32 = arith.constant 0 : i32
    %c0_i32_0 = arith.constant 0 : i32
    %c0_i32_1 = arith.constant 0 : i32
    return %c0_i32, %c0_i32_0 : i32, i32
  }
  func.func @transform_3(%arg0: i32) -> (i32, i32) {
    %c0_i32 = arith.constant 0 : i32
    %c0_i32_0 = arith.constant 0 : i32
    return %arg0, %c0_i32 : i32, i32
  }
}

module attributes {stable_mosaic.version = 11 : i64} {
  func.func @_conv1x1_add_kernel(%arg0: i32, %arg1: memref<32x16xbf16, #tpu.memory_space<vmem>>, %arg2: memref<16x4xbf16, #tpu.memory_space<vmem>>, %arg3: memref<1x4xf32, #tpu.memory_space<vmem>>, %arg4: memref<32x4xbf16, #tpu.memory_space<vmem>>, %arg5: memref<32x4xbf16, #tpu.memory_space<vmem>>) attributes {dimension_semantics = [#tpu.dimension_semantics<parallel>], iteration_bounds = array<i64: 1>, scalar_prefetch = 0 : i64, scratch_operands = 0 : i64, tpu.core_type = #tpu.core_type<tc>, window_params = [{transform_indices = @transform_0, window_bounds = array<i64: 32, 16>}, {pipeline_mode = #tpu.pipeline_mode<synchronous>, transform_indices = @transform_1, window_bounds = array<i64: 16, 4>}, {pipeline_mode = #tpu.pipeline_mode<synchronous>, transform_indices = @transform_2, window_bounds = array<i64: 1, 4>}, {transform_indices = @transform_3, window_bounds = array<i64: 32, 4>}, {transform_indices = @transform_4, window_bounds = array<i64: 32, 4>}]} {
    %c0 = arith.constant 0 : index
    %c0_0 = arith.constant 0 : index
    %0 = vector.load %arg1[%c0, %c0_0] : memref<32x16xbf16, #tpu.memory_space<vmem>>, vector<32x16xbf16>
    %c0_1 = arith.constant 0 : index
    %c0_2 = arith.constant 0 : index
    %1 = vector.load %arg2[%c0_1, %c0_2] : memref<16x4xbf16, #tpu.memory_space<vmem>>, vector<16x4xbf16>
    %cst = arith.constant dense<0.000000e+00> : vector<32x4xf32>
    %2 = tpu.matmul %0, %1, %cst {dimension_numbers = #tpu.dot_dimension_numbers<[1], [0], [0], [1], [0, 0, 1, 1], [], []>} : vector<32x16xbf16>, vector<16x4xbf16>, vector<32x4xf32> -> vector<32x4xf32>
    %c0_3 = arith.constant 0 : index
    %c0_4 = arith.constant 0 : index
    %3 = vector.load %arg3[%c0_3, %c0_4] : memref<1x4xf32, #tpu.memory_space<vmem>>, vector<1x4xf32>
    %4 = vector.broadcast %3 : vector<1x4xf32> to vector<32x4xf32>
    %5 = arith.addf %2, %4 : vector<32x4xf32>
    %cst_5 = arith.constant 0.000000e+00 : f32
    %6 = vector.broadcast %cst_5 : f32 to vector<32x4xf32>
    %7 = arith.maximumf %5, %6 : vector<32x4xf32>
    %c0_6 = arith.constant 0 : index
    %c0_7 = arith.constant 0 : index
    %8 = vector.load %arg4[%c0_6, %c0_7] : memref<32x4xbf16, #tpu.memory_space<vmem>>, vector<32x4xbf16>
    %9 = arith.extf %8 : vector<32x4xbf16> to vector<32x4xf32>
    %10 = arith.addf %7, %9 : vector<32x4xf32>
    %11 = arith.truncf %10 : vector<32x4xf32> to vector<32x4xbf16>
    %c0_8 = arith.constant 0 : index
    %c0_9 = arith.constant 0 : index
    %12 = vector.load %arg5[%c0_8, %c0_9] : memref<32x4xbf16, #tpu.memory_space<vmem>>, vector<32x4xbf16>
    tpu.vector_store %arg5[%c0_8, %c0_9], %11 {strides = array<i32>} : memref<32x4xbf16, #tpu.memory_space<vmem>>, vector<32x4xbf16>,
    return
  }
  func.func @transform_0(%arg0: i32) -> (i32, i32) {
    %c0_i32 = arith.constant 0 : i32
    %c0_i32_0 = arith.constant 0 : i32
    return %arg0, %c0_i32 : i32, i32
  }
  func.func @transform_1(%arg0: i32) -> (i32, i32) {
    %c0_i32 = arith.constant 0 : i32
    %c0_i32_0 = arith.constant 0 : i32
    %c0_i32_1 = arith.constant 0 : i32
    return %c0_i32, %c0_i32_0 : i32, i32
  }
  func.func @transform_2(%arg0: i32) -> (i32, i32) {
    %c0_i32 = arith.constant 0 : i32
    %c0_i32_0 = arith.constant 0 : i32
    %c0_i32_1 = arith.constant 0 : i32
    return %c0_i32, %c0_i32_0 : i32, i32
  }
  func.func @transform_3(%arg0: i32) -> (i32, i32) {
    %c0_i32 = arith.constant 0 : i32
    %c0_i32_0 = arith.constant 0 : i32
    return %arg0, %c0_i32 : i32, i32
  }
  func.func @transform_4(%arg0: i32) -> (i32, i32) {
    %c0_i32 = arith.constant 0 : i32
    %c0_i32_0 = arith.constant 0 : i32
    return %arg0, %c0_i32 : i32, i32
  }
}

module attributes {stable_mosaic.version = 11 : i64} {
  func.func @kernel(%arg0: i32, %arg1: i32, %arg2: memref<1x6x16x12xbf16, #tpu.memory_space<vmem>>, %arg3: memref<1x3x12x4xbf16, #tpu.memory_space<vmem>>, %arg4: memref<1x4xf32, #tpu.memory_space<vmem>>, %arg5: memref<1x1x16x4xbf16, #tpu.memory_space<vmem>>) attributes {dimension_semantics = [#tpu.dimension_semantics<parallel>, #tpu.dimension_semantics<arbitrary>], iteration_bounds = array<i64: 2, 4>, scalar_prefetch = 0 : i64, scratch_operands = 0 : i64, tpu.core_type = #tpu.core_type<tc>, window_params = [{transform_indices = @transform_0, window_bounds = array<i64: 1, 6, 16, 12>}, {pipeline_mode = #tpu.pipeline_mode<synchronous>, transform_indices = @transform_1, window_bounds = array<i64: 1, 3, 12, 4>}, {pipeline_mode = #tpu.pipeline_mode<synchronous>, transform_indices = @transform_2, window_bounds = array<i64: 1, 4>}, {transform_indices = @transform_3, window_bounds = array<i64: 1, 1, 16, 4>}]} {
    %cst = arith.constant 0.000000e+00 : f32
    %0 = vector.broadcast %cst : f32 to vector<16x4xf32>
    %c0_i32 = arith.constant 0 : i32
    %1 = arith.addi %arg1, %c0_i32 : i32
    %c0 = arith.constant 0 : index
    %2 = arith.index_cast %1 : i32 to index
    %c0_0 = arith.constant 0 : index
    %c0_1 = arith.constant 0 : index
    %3 = vector.load %arg2[%c0, %2, %c0_0, %c0_1] : memref<1x6x16x12xbf16, #tpu.memory_space<vmem>>, vector<1x1x16x12xbf16>
    %4 = vector.shape_cast %3 : vector<1x1x16x12xbf16> to vector<16x12xbf16>
    %c0_2 = arith.constant 0 : index
    %c0_3 = arith.constant 0 : index
    %c0_4 = arith.constant 0 : index
    %c0_5 = arith.constant 0 : index
    %5 = vector.load %arg3[%c0_2, %c0_3, %c0_4, %c0_5] : memref<1x3x12x4xbf16, #tpu.memory_space<vmem>>, vector<1x1x12x4xbf16>
    %6 = vector.shape_cast %5 : vector<1x1x12x4xbf16> to vector<12x4xbf16>
    %cst_6 = arith.constant dense<0.000000e+00> : vector<16x4xf32>
    %7 = tpu.matmul %4, %6, %cst_6 {dimension_numbers = #tpu.dot_dimension_numbers<[1], [0], [0], [1], [0, 0, 1, 1], [], []>} : vector<16x12xbf16>, vector<12x4xbf16>, vector<16x4xf32> -> vector<16x4xf32>
    %8 = arith.addf %0, %7 : vector<16x4xf32>
    %c1_i32 = arith.constant 1 : i32
    %9 = arith.addi %arg1, %c1_i32 : i32
    %c0_7 = arith.constant 0 : index
    %10 = arith.index_cast %9 : i32 to index
    %c0_8 = arith.constant 0 : index
    %c0_9 = arith.constant 0 : index
    %11 = vector.load %arg2[%c0_7, %10, %c0_8, %c0_9] : memref<1x6x16x12xbf16, #tpu.memory_space<vmem>>, vector<1x1x16x12xbf16>
    %12 = vector.shape_cast %11 : vector<1x1x16x12xbf16> to vector<16x12xbf16>
    %c0_10 = arith.constant 0 : index
    %c1 = arith.constant 1 : index
    %c0_11 = arith.constant 0 : index
    %c0_12 = arith.constant 0 : index
    %13 = vector.load %arg3[%c0_10, %c1, %c0_11, %c0_12] : memref<1x3x12x4xbf16, #tpu.memory_space<vmem>>, vector<1x1x12x4xbf16>
    %14 = vector.shape_cast %13 : vector<1x1x12x4xbf16> to vector<12x4xbf16>
    %cst_13 = arith.constant dense<0.000000e+00> : vector<16x4xf32>
    %15 = tpu.matmul %12, %14, %cst_13 {dimension_numbers = #tpu.dot_dimension_numbers<[1], [0], [0], [1], [0, 0, 1, 1], [], []>} : vector<16x12xbf16>, vector<12x4xbf16>, vector<16x4xf32> -> vector<16x4xf32>
    %16 = arith.addf %8, %15 : vector<16x4xf32>
    %c2_i32 = arith.constant 2 : i32
    %17 = arith.addi %arg1, %c2_i32 : i32
    %c0_14 = arith.constant 0 : index
    %18 = arith.index_cast %17 : i32 to index
    %c0_15 = arith.constant 0 : index
    %c0_16 = arith.constant 0 : index
    %19 = vector.load %arg2[%c0_14, %18, %c0_15, %c0_16] : memref<1x6x16x12xbf16, #tpu.memory_space<vmem>>, vector<1x1x16x12xbf16>
    %20 = vector.shape_cast %19 : vector<1x1x16x12xbf16> to vector<16x12xbf16>
    %c0_17 = arith.constant 0 : index
    %c2 = arith.constant 2 : index
    %c0_18 = arith.constant 0 : index
    %c0_19 = arith.constant 0 : index
    %21 = vector.load %arg3[%c0_17, %c2, %c0_18, %c0_19] : memref<1x3x12x4xbf16, #tpu.memory_space<vmem>>, vector<1x1x12x4xbf16>
    %22 = vector.shape_cast %21 : vector<1x1x12x4xbf16> to vector<12x4xbf16>
    %cst_20 = arith.constant dense<0.000000e+00> : vector<16x4xf32>
    %23 = tpu.matmul %20, %22, %cst_20 {dimension_numbers = #tpu.dot_dimension_numbers<[1], [0], [0], [1], [0, 0, 1, 1], [], []>} : vector<16x12xbf16>, vector<12x4xbf16>, vector<16x4xf32> -> vector<16x4xf32>
    %24 = arith.addf %16, %23 : vector<16x4xf32>
    %c0_21 = arith.constant 0 : index
    %c0_22 = arith.constant 0 : index
    %25 = vector.load %arg4[%c0_21, %c0_22] : memref<1x4xf32, #tpu.memory_space<vmem>>, vector<1x4xf32>
    %26 = vector.broadcast %25 : vector<1x4xf32> to vector<16x4xf32>
    %27 = arith.addf %24, %26 : vector<16x4xf32>
    %cst_23 = arith.constant 0.000000e+00 : f32
    %28 = vector.broadcast %cst_23 : f32 to vector<16x4xf32>
    %29 = arith.maximumf %27, %28 : vector<16x4xf32>
    %30 = arith.truncf %29 : vector<16x4xf32> to vector<16x4xbf16>
    %c0_24 = arith.constant 0 : index
    %c0_25 = arith.constant 0 : index
    %c0_26 = arith.constant 0 : index
    %c0_27 = arith.constant 0 : index
    %31 = vector.load %arg5[%c0_24, %c0_25, %c0_26, %c0_27] : memref<1x1x16x4xbf16, #tpu.memory_space<vmem>>, vector<1x1x16x4xbf16>
    %32 = vector.shape_cast %31 : vector<1x1x16x4xbf16> to vector<16x4xbf16>
    %33 = vector.shape_cast %30 : vector<16x4xbf16> to vector<1x1x16x4xbf16>
    tpu.vector_store %arg5[%c0_24, %c0_25, %c0_26, %c0_27], %33 {strides = array<i32>} : memref<1x1x16x4xbf16, #tpu.memory_space<vmem>>, vector<1x1x16x4xbf16>,
    return
  }
  func.func @transform_0(%arg0: i32, %arg1: i32) -> (i32, i32, i32, i32) {
    %c0_i32 = arith.constant 0 : i32
    %c0_i32_0 = arith.constant 0 : i32
    %c0_i32_1 = arith.constant 0 : i32
    %c0_i32_2 = arith.constant 0 : i32
    return %arg0, %c0_i32, %c0_i32_0, %c0_i32_1 : i32, i32, i32, i32
  }
  func.func @transform_1(%arg0: i32, %arg1: i32) -> (i32, i32, i32, i32) {
    %c0_i32 = arith.constant 0 : i32
    %c0_i32_0 = arith.constant 0 : i32
    %c0_i32_1 = arith.constant 0 : i32
    %c0_i32_2 = arith.constant 0 : i32
    %c0_i32_3 = arith.constant 0 : i32
    return %c0_i32, %c0_i32_0, %c0_i32_1, %c0_i32_2 : i32, i32, i32, i32
  }
  func.func @transform_2(%arg0: i32, %arg1: i32) -> (i32, i32) {
    %c0_i32 = arith.constant 0 : i32
    %c0_i32_0 = arith.constant 0 : i32
    %c0_i32_1 = arith.constant 0 : i32
    return %c0_i32, %c0_i32_0 : i32, i32
  }
  func.func @transform_3(%arg0: i32, %arg1: i32) -> (i32, i32, i32, i32) {
    %c0_i32 = arith.constant 0 : i32
    %c0_i32_0 = arith.constant 0 : i32
    %c0_i32_1 = arith.constant 0 : i32
    return %arg0, %arg1, %c0_i32, %c0_i32_0 : i32, i32, i32, i32
  }
}

module attributes {stable_mosaic.version = 11 : i64} {
  func.func @_conv1x1_add_kernel(%arg0: i32, %arg1: memref<128x8xbf16, #tpu.memory_space<vmem>>, %arg2: memref<8x4xbf16, #tpu.memory_space<vmem>>, %arg3: memref<1x4xf32, #tpu.memory_space<vmem>>, %arg4: memref<128x4xbf16, #tpu.memory_space<vmem>>, %arg5: memref<128x4xbf16, #tpu.memory_space<vmem>>) attributes {dimension_semantics = [#tpu.dimension_semantics<parallel>], iteration_bounds = array<i64: 1>, scalar_prefetch = 0 : i64, scratch_operands = 0 : i64, tpu.core_type = #tpu.core_type<tc>, window_params = [{transform_indices = @transform_0, window_bounds = array<i64: 128, 8>}, {pipeline_mode = #tpu.pipeline_mode<synchronous>, transform_indices = @transform_1, window_bounds = array<i64: 8, 4>}, {pipeline_mode = #tpu.pipeline_mode<synchronous>, transform_indices = @transform_2, window_bounds = array<i64: 1, 4>}, {transform_indices = @transform_3, window_bounds = array<i64: 128, 4>}, {transform_indices = @transform_4, window_bounds = array<i64: 128, 4>}]} {
    %c0 = arith.constant 0 : index
    %c0_0 = arith.constant 0 : index
    %0 = vector.load %arg1[%c0, %c0_0] : memref<128x8xbf16, #tpu.memory_space<vmem>>, vector<128x8xbf16>
    %c0_1 = arith.constant 0 : index
    %c0_2 = arith.constant 0 : index
    %1 = vector.load %arg2[%c0_1, %c0_2] : memref<8x4xbf16, #tpu.memory_space<vmem>>, vector<8x4xbf16>
    %cst = arith.constant dense<0.000000e+00> : vector<128x4xf32>
    %2 = tpu.matmul %0, %1, %cst {dimension_numbers = #tpu.dot_dimension_numbers<[1], [0], [0], [1], [0, 0, 1, 1], [], []>} : vector<128x8xbf16>, vector<8x4xbf16>, vector<128x4xf32> -> vector<128x4xf32>
    %c0_3 = arith.constant 0 : index
    %c0_4 = arith.constant 0 : index
    %3 = vector.load %arg3[%c0_3, %c0_4] : memref<1x4xf32, #tpu.memory_space<vmem>>, vector<1x4xf32>
    %4 = vector.broadcast %3 : vector<1x4xf32> to vector<128x4xf32>
    %5 = arith.addf %2, %4 : vector<128x4xf32>
    %cst_5 = arith.constant 0.000000e+00 : f32
    %6 = vector.broadcast %cst_5 : f32 to vector<128x4xf32>
    %7 = arith.maximumf %5, %6 : vector<128x4xf32>
    %c0_6 = arith.constant 0 : index
    %c0_7 = arith.constant 0 : index
    %8 = vector.load %arg4[%c0_6, %c0_7] : memref<128x4xbf16, #tpu.memory_space<vmem>>, vector<128x4xbf16>
    %9 = arith.extf %8 : vector<128x4xbf16> to vector<128x4xf32>
    %10 = arith.addf %7, %9 : vector<128x4xf32>
    %11 = arith.truncf %10 : vector<128x4xf32> to vector<128x4xbf16>
    %c0_8 = arith.constant 0 : index
    %c0_9 = arith.constant 0 : index
    %12 = vector.load %arg5[%c0_8, %c0_9] : memref<128x4xbf16, #tpu.memory_space<vmem>>, vector<128x4xbf16>
    tpu.vector_store %arg5[%c0_8, %c0_9], %11 {strides = array<i32>} : memref<128x4xbf16, #tpu.memory_space<vmem>>, vector<128x4xbf16>,
    return
  }
  func.func @transform_0(%arg0: i32) -> (i32, i32) {
    %c0_i32 = arith.constant 0 : i32
    %c0_i32_0 = arith.constant 0 : i32
    return %arg0, %c0_i32 : i32, i32
  }
  func.func @transform_1(%arg0: i32) -> (i32, i32) {
    %c0_i32 = arith.constant 0 : i32
    %c0_i32_0 = arith.constant 0 : i32
    %c0_i32_1 = arith.constant 0 : i32
    return %c0_i32, %c0_i32_0 : i32, i32
  }
  func.func @transform_2(%arg0: i32) -> (i32, i32) {
    %c0_i32 = arith.constant 0 : i32
    %c0_i32_0 = arith.constant 0 : i32
    %c0_i32_1 = arith.constant 0 : i32
    return %c0_i32, %c0_i32_0 : i32, i32
  }
  func.func @transform_3(%arg0: i32) -> (i32, i32) {
    %c0_i32 = arith.constant 0 : i32
    %c0_i32_0 = arith.constant 0 : i32
    return %arg0, %c0_i32 : i32, i32
  }
  func.func @transform_4(%arg0: i32) -> (i32, i32) {
    %c0_i32 = arith.constant 0 : i32
    %c0_i32_0 = arith.constant 0 : i32
    return %arg0, %c0_i32 : i32, i32
  }
}

module attributes {stable_mosaic.version = 11 : i64} {
  func.func @kernel(%arg0: i32, %arg1: i32, %arg2: memref<1x10x16x12xbf16, #tpu.memory_space<vmem>>, %arg3: memref<1x3x12x4xbf16, #tpu.memory_space<vmem>>, %arg4: memref<1x4xf32, #tpu.memory_space<vmem>>, %arg5: memref<1x1x16x4xbf16, #tpu.memory_space<vmem>>) attributes {dimension_semantics = [#tpu.dimension_semantics<parallel>, #tpu.dimension_semantics<arbitrary>], iteration_bounds = array<i64: 2, 8>, scalar_prefetch = 0 : i64, scratch_operands = 0 : i64, tpu.core_type = #tpu.core_type<tc>, window_params = [{transform_indices = @transform_0, window_bounds = array<i64: 1, 10, 16, 12>}, {pipeline_mode = #tpu.pipeline_mode<synchronous>, transform_indices = @transform_1, window_bounds = array<i64: 1, 3, 12, 4>}, {pipeline_mode = #tpu.pipeline_mode<synchronous>, transform_indices = @transform_2, window_bounds = array<i64: 1, 4>}, {transform_indices = @transform_3, window_bounds = array<i64: 1, 1, 16, 4>}]} {
    %cst = arith.constant 0.000000e+00 : f32
    %0 = vector.broadcast %cst : f32 to vector<16x4xf32>
    %c0_i32 = arith.constant 0 : i32
    %1 = arith.addi %arg1, %c0_i32 : i32
    %c0 = arith.constant 0 : index
    %2 = arith.index_cast %1 : i32 to index
    %c0_0 = arith.constant 0 : index
    %c0_1 = arith.constant 0 : index
    %3 = vector.load %arg2[%c0, %2, %c0_0, %c0_1] : memref<1x10x16x12xbf16, #tpu.memory_space<vmem>>, vector<1x1x16x12xbf16>
    %4 = vector.shape_cast %3 : vector<1x1x16x12xbf16> to vector<16x12xbf16>
    %c0_2 = arith.constant 0 : index
    %c0_3 = arith.constant 0 : index
    %c0_4 = arith.constant 0 : index
    %c0_5 = arith.constant 0 : index
    %5 = vector.load %arg3[%c0_2, %c0_3, %c0_4, %c0_5] : memref<1x3x12x4xbf16, #tpu.memory_space<vmem>>, vector<1x1x12x4xbf16>
    %6 = vector.shape_cast %5 : vector<1x1x12x4xbf16> to vector<12x4xbf16>
    %cst_6 = arith.constant dense<0.000000e+00> : vector<16x4xf32>
    %7 = tpu.matmul %4, %6, %cst_6 {dimension_numbers = #tpu.dot_dimension_numbers<[1], [0], [0], [1], [0, 0, 1, 1], [], []>} : vector<16x12xbf16>, vector<12x4xbf16>, vector<16x4xf32> -> vector<16x4xf32>
    %8 = arith.addf %0, %7 : vector<16x4xf32>
    %c1_i32 = arith.constant 1 : i32
    %9 = arith.addi %arg1, %c1_i32 : i32
    %c0_7 = arith.constant 0 : index
    %10 = arith.index_cast %9 : i32 to index
    %c0_8 = arith.constant 0 : index
    %c0_9 = arith.constant 0 : index
    %11 = vector.load %arg2[%c0_7, %10, %c0_8, %c0_9] : memref<1x10x16x12xbf16, #tpu.memory_space<vmem>>, vector<1x1x16x12xbf16>
    %12 = vector.shape_cast %11 : vector<1x1x16x12xbf16> to vector<16x12xbf16>
    %c0_10 = arith.constant 0 : index
    %c1 = arith.constant 1 : index
    %c0_11 = arith.constant 0 : index
    %c0_12 = arith.constant 0 : index
    %13 = vector.load %arg3[%c0_10, %c1, %c0_11, %c0_12] : memref<1x3x12x4xbf16, #tpu.memory_space<vmem>>, vector<1x1x12x4xbf16>
    %14 = vector.shape_cast %13 : vector<1x1x12x4xbf16> to vector<12x4xbf16>
    %cst_13 = arith.constant dense<0.000000e+00> : vector<16x4xf32>
    %15 = tpu.matmul %12, %14, %cst_13 {dimension_numbers = #tpu.dot_dimension_numbers<[1], [0], [0], [1], [0, 0, 1, 1], [], []>} : vector<16x12xbf16>, vector<12x4xbf16>, vector<16x4xf32> -> vector<16x4xf32>
    %16 = arith.addf %8, %15 : vector<16x4xf32>
    %c2_i32 = arith.constant 2 : i32
    %17 = arith.addi %arg1, %c2_i32 : i32
    %c0_14 = arith.constant 0 : index
    %18 = arith.index_cast %17 : i32 to index
    %c0_15 = arith.constant 0 : index
    %c0_16 = arith.constant 0 : index
    %19 = vector.load %arg2[%c0_14, %18, %c0_15, %c0_16] : memref<1x10x16x12xbf16, #tpu.memory_space<vmem>>, vector<1x1x16x12xbf16>
    %20 = vector.shape_cast %19 : vector<1x1x16x12xbf16> to vector<16x12xbf16>
    %c0_17 = arith.constant 0 : index
    %c2 = arith.constant 2 : index
    %c0_18 = arith.constant 0 : index
    %c0_19 = arith.constant 0 : index
    %21 = vector.load %arg3[%c0_17, %c2, %c0_18, %c0_19] : memref<1x3x12x4xbf16, #tpu.memory_space<vmem>>, vector<1x1x12x4xbf16>
    %22 = vector.shape_cast %21 : vector<1x1x12x4xbf16> to vector<12x4xbf16>
    %cst_20 = arith.constant dense<0.000000e+00> : vector<16x4xf32>
    %23 = tpu.matmul %20, %22, %cst_20 {dimension_numbers = #tpu.dot_dimension_numbers<[1], [0], [0], [1], [0, 0, 1, 1], [], []>} : vector<16x12xbf16>, vector<12x4xbf16>, vector<16x4xf32> -> vector<16x4xf32>
    %24 = arith.addf %16, %23 : vector<16x4xf32>
    %c0_21 = arith.constant 0 : index
    %c0_22 = arith.constant 0 : index
    %25 = vector.load %arg4[%c0_21, %c0_22] : memref<1x4xf32, #tpu.memory_space<vmem>>, vector<1x4xf32>
    %26 = vector.broadcast %25 : vector<1x4xf32> to vector<16x4xf32>
    %27 = arith.addf %24, %26 : vector<16x4xf32>
    %cst_23 = arith.constant 0.000000e+00 : f32
    %28 = vector.broadcast %cst_23 : f32 to vector<16x4xf32>
    %29 = arith.maximumf %27, %28 : vector<16x4xf32>
    %30 = arith.truncf %29 : vector<16x4xf32> to vector<16x4xbf16>
    %c0_24 = arith.constant 0 : index
    %c0_25 = arith.constant 0 : index
    %c0_26 = arith.constant 0 : index
    %c0_27 = arith.constant 0 : index
    %31 = vector.load %arg5[%c0_24, %c0_25, %c0_26, %c0_27] : memref<1x1x16x4xbf16, #tpu.memory_space<vmem>>, vector<1x1x16x4xbf16>
    %32 = vector.shape_cast %31 : vector<1x1x16x4xbf16> to vector<16x4xbf16>
    %33 = vector.shape_cast %30 : vector<16x4xbf16> to vector<1x1x16x4xbf16>
    tpu.vector_store %arg5[%c0_24, %c0_25, %c0_26, %c0_27], %33 {strides = array<i32>} : memref<1x1x16x4xbf16, #tpu.memory_space<vmem>>, vector<1x1x16x4xbf16>,
    return
  }
  func.func @transform_0(%arg0: i32, %arg1: i32) -> (i32, i32, i32, i32) {
    %c0_i32 = arith.constant 0 : i32
    %c0_i32_0 = arith.constant 0 : i32
    %c0_i32_1 = arith.constant 0 : i32
    %c0_i32_2 = arith.constant 0 : i32
    return %arg0, %c0_i32, %c0_i32_0, %c0_i32_1 : i32, i32, i32, i32
  }
  func.func @transform_1(%arg0: i32, %arg1: i32) -> (i32, i32, i32, i32) {
    %c0_i32 = arith.constant 0 : i32
    %c0_i32_0 = arith.constant 0 : i32
    %c0_i32_1 = arith.constant 0 : i32
    %c0_i32_2 = arith.constant 0 : i32
    %c0_i32_3 = arith.constant 0 : i32
    return %c0_i32, %c0_i32_0, %c0_i32_1, %c0_i32_2 : i32, i32, i32, i32
  }
  func.func @transform_2(%arg0: i32, %arg1: i32) -> (i32, i32) {
    %c0_i32 = arith.constant 0 : i32
    %c0_i32_0 = arith.constant 0 : i32
    %c0_i32_1 = arith.constant 0 : i32
    return %c0_i32, %c0_i32_0 : i32, i32
  }
  func.func @transform_3(%arg0: i32, %arg1: i32) -> (i32, i32, i32, i32) {
    %c0_i32 = arith.constant 0 : i32
    %c0_i32_0 = arith.constant 0 : i32
    %c0_i32_1 = arith.constant 0 : i32
    return %arg0, %arg1, %c0_i32, %c0_i32_0 : i32, i32, i32, i32
  }
}

module attributes {stable_mosaic.version = 11 : i64} {
  func.func @_conv1x1_add_kernel(%arg0: i32, %arg1: memref<256x4xbf16, #tpu.memory_space<vmem>>, %arg2: memref<4x4xbf16, #tpu.memory_space<vmem>>, %arg3: memref<1x4xf32, #tpu.memory_space<vmem>>, %arg4: memref<256x4xbf16, #tpu.memory_space<vmem>>, %arg5: memref<256x4xbf16, #tpu.memory_space<vmem>>) attributes {dimension_semantics = [#tpu.dimension_semantics<parallel>], iteration_bounds = array<i64: 2>, scalar_prefetch = 0 : i64, scratch_operands = 0 : i64, tpu.core_type = #tpu.core_type<tc>, window_params = [{transform_indices = @transform_0, window_bounds = array<i64: 256, 4>}, {pipeline_mode = #tpu.pipeline_mode<synchronous>, transform_indices = @transform_1, window_bounds = array<i64: 4, 4>}, {pipeline_mode = #tpu.pipeline_mode<synchronous>, transform_indices = @transform_2, window_bounds = array<i64: 1, 4>}, {transform_indices = @transform_3, window_bounds = array<i64: 256, 4>}, {transform_indices = @transform_4, window_bounds = array<i64: 256, 4>}]} {
    %c0 = arith.constant 0 : index
    %c0_0 = arith.constant 0 : index
    %0 = vector.load %arg1[%c0, %c0_0] : memref<256x4xbf16, #tpu.memory_space<vmem>>, vector<256x4xbf16>
    %c0_1 = arith.constant 0 : index
    %c0_2 = arith.constant 0 : index
    %1 = vector.load %arg2[%c0_1, %c0_2] : memref<4x4xbf16, #tpu.memory_space<vmem>>, vector<4x4xbf16>
    %cst = arith.constant dense<0.000000e+00> : vector<256x4xf32>
    %2 = tpu.matmul %0, %1, %cst {dimension_numbers = #tpu.dot_dimension_numbers<[1], [0], [0], [1], [0, 0, 1, 1], [], []>} : vector<256x4xbf16>, vector<4x4xbf16>, vector<256x4xf32> -> vector<256x4xf32>
    %c0_3 = arith.constant 0 : index
    %c0_4 = arith.constant 0 : index
    %3 = vector.load %arg3[%c0_3, %c0_4] : memref<1x4xf32, #tpu.memory_space<vmem>>, vector<1x4xf32>
    %4 = vector.broadcast %3 : vector<1x4xf32> to vector<256x4xf32>
    %5 = arith.addf %2, %4 : vector<256x4xf32>
    %cst_5 = arith.constant 0.000000e+00 : f32
    %6 = vector.broadcast %cst_5 : f32 to vector<256x4xf32>
    %7 = arith.maximumf %5, %6 : vector<256x4xf32>
    %c0_6 = arith.constant 0 : index
    %c0_7 = arith.constant 0 : index
    %8 = vector.load %arg4[%c0_6, %c0_7] : memref<256x4xbf16, #tpu.memory_space<vmem>>, vector<256x4xbf16>
    %9 = arith.extf %8 : vector<256x4xbf16> to vector<256x4xf32>
    %10 = arith.addf %7, %9 : vector<256x4xf32>
    %11 = arith.truncf %10 : vector<256x4xf32> to vector<256x4xbf16>
    %c0_8 = arith.constant 0 : index
    %c0_9 = arith.constant 0 : index
    %12 = vector.load %arg5[%c0_8, %c0_9] : memref<256x4xbf16, #tpu.memory_space<vmem>>, vector<256x4xbf16>
    tpu.vector_store %arg5[%c0_8, %c0_9], %11 {strides = array<i32>} : memref<256x4xbf16, #tpu.memory_space<vmem>>, vector<256x4xbf16>,
    return
  }
  func.func @transform_0(%arg0: i32) -> (i32, i32) {
    %c0_i32 = arith.constant 0 : i32
    %c0_i32_0 = arith.constant 0 : i32
    return %arg0, %c0_i32 : i32, i32
  }
  func.func @transform_1(%arg0: i32) -> (i32, i32) {
    %c0_i32 = arith.constant 0 : i32
    %c0_i32_0 = arith.constant 0 : i32
    %c0_i32_1 = arith.constant 0 : i32
    return %c0_i32, %c0_i32_0 : i32, i32
  }
  func.func @transform_2(%arg0: i32) -> (i32, i32) {
    %c0_i32 = arith.constant 0 : i32
    %c0_i32_0 = arith.constant 0 : i32
    %c0_i32_1 = arith.constant 0 : i32
    return %c0_i32, %c0_i32_0 : i32, i32
  }
  func.func @transform_3(%arg0: i32) -> (i32, i32) {
    %c0_i32 = arith.constant 0 : i32
    %c0_i32_0 = arith.constant 0 : i32
    return %arg0, %c0_i32 : i32, i32
  }
  func.func @transform_4(%arg0: i32) -> (i32, i32) {
    %c0_i32 = arith.constant 0 : i32
    %c0_i32_0 = arith.constant 0 : i32
    return %arg0, %c0_i32 : i32, i32
  }
}

module attributes {stable_mosaic.version = 11 : i64} {
  func.func @kernel(%arg0: i32, %arg1: i32, %arg2: memref<1x18x16x12xbf16, #tpu.memory_space<vmem>>, %arg3: memref<1x3x12x4xbf16, #tpu.memory_space<vmem>>, %arg4: memref<1x4xf32, #tpu.memory_space<vmem>>, %arg5: memref<1x1x16x4xbf16, #tpu.memory_space<vmem>>) attributes {dimension_semantics = [#tpu.dimension_semantics<parallel>, #tpu.dimension_semantics<arbitrary>], iteration_bounds = array<i64: 2, 16>, scalar_prefetch = 0 : i64, scratch_operands = 0 : i64, tpu.core_type = #tpu.core_type<tc>, window_params = [{transform_indices = @transform_0, window_bounds = array<i64: 1, 18, 16, 12>}, {pipeline_mode = #tpu.pipeline_mode<synchronous>, transform_indices = @transform_1, window_bounds = array<i64: 1, 3, 12, 4>}, {pipeline_mode = #tpu.pipeline_mode<synchronous>, transform_indices = @transform_2, window_bounds = array<i64: 1, 4>}, {transform_indices = @transform_3, window_bounds = array<i64: 1, 1, 16, 4>}]} {
    %cst = arith.constant 0.000000e+00 : f32
    %0 = vector.broadcast %cst : f32 to vector<16x4xf32>
    %c0_i32 = arith.constant 0 : i32
    %1 = arith.addi %arg1, %c0_i32 : i32
    %c0 = arith.constant 0 : index
    %2 = arith.index_cast %1 : i32 to index
    %c0_0 = arith.constant 0 : index
    %c0_1 = arith.constant 0 : index
    %3 = vector.load %arg2[%c0, %2, %c0_0, %c0_1] : memref<1x18x16x12xbf16, #tpu.memory_space<vmem>>, vector<1x1x16x12xbf16>
    %4 = vector.shape_cast %3 : vector<1x1x16x12xbf16> to vector<16x12xbf16>
    %c0_2 = arith.constant 0 : index
    %c0_3 = arith.constant 0 : index
    %c0_4 = arith.constant 0 : index
    %c0_5 = arith.constant 0 : index
    %5 = vector.load %arg3[%c0_2, %c0_3, %c0_4, %c0_5] : memref<1x3x12x4xbf16, #tpu.memory_space<vmem>>, vector<1x1x12x4xbf16>
    %6 = vector.shape_cast %5 : vector<1x1x12x4xbf16> to vector<12x4xbf16>
    %cst_6 = arith.constant dense<0.000000e+00> : vector<16x4xf32>
    %7 = tpu.matmul %4, %6, %cst_6 {dimension_numbers = #tpu.dot_dimension_numbers<[1], [0], [0], [1], [0, 0, 1, 1], [], []>} : vector<16x12xbf16>, vector<12x4xbf16>, vector<16x4xf32> -> vector<16x4xf32>
    %8 = arith.addf %0, %7 : vector<16x4xf32>
    %c1_i32 = arith.constant 1 : i32
    %9 = arith.addi %arg1, %c1_i32 : i32
    %c0_7 = arith.constant 0 : index
    %10 = arith.index_cast %9 : i32 to index
    %c0_8 = arith.constant 0 : index
    %c0_9 = arith.constant 0 : index
    %11 = vector.load %arg2[%c0_7, %10, %c0_8, %c0_9] : memref<1x18x16x12xbf16, #tpu.memory_space<vmem>>, vector<1x1x16x12xbf16>
    %12 = vector.shape_cast %11 : vector<1x1x16x12xbf16> to vector<16x12xbf16>
    %c0_10 = arith.constant 0 : index
    %c1 = arith.constant 1 : index
    %c0_11 = arith.constant 0 : index
    %c0_12 = arith.constant 0 : index
    %13 = vector.load %arg3[%c0_10, %c1, %c0_11, %c0_12] : memref<1x3x12x4xbf16, #tpu.memory_space<vmem>>, vector<1x1x12x4xbf16>
    %14 = vector.shape_cast %13 : vector<1x1x12x4xbf16> to vector<12x4xbf16>
    %cst_13 = arith.constant dense<0.000000e+00> : vector<16x4xf32>
    %15 = tpu.matmul %12, %14, %cst_13 {dimension_numbers = #tpu.dot_dimension_numbers<[1], [0], [0], [1], [0, 0, 1, 1], [], []>} : vector<16x12xbf16>, vector<12x4xbf16>, vector<16x4xf32> -> vector<16x4xf32>
    %16 = arith.addf %8, %15 : vector<16x4xf32>
    %c2_i32 = arith.constant 2 : i32
    %17 = arith.addi %arg1, %c2_i32 : i32
    %c0_14 = arith.constant 0 : index
    %18 = arith.index_cast %17 : i32 to index
    %c0_15 = arith.constant 0 : index
    %c0_16 = arith.constant 0 : index
    %19 = vector.load %arg2[%c0_14, %18, %c0_15, %c0_16] : memref<1x18x16x12xbf16, #tpu.memory_space<vmem>>, vector<1x1x16x12xbf16>
    %20 = vector.shape_cast %19 : vector<1x1x16x12xbf16> to vector<16x12xbf16>
    %c0_17 = arith.constant 0 : index
    %c2 = arith.constant 2 : index
    %c0_18 = arith.constant 0 : index
    %c0_19 = arith.constant 0 : index
    %21 = vector.load %arg3[%c0_17, %c2, %c0_18, %c0_19] : memref<1x3x12x4xbf16, #tpu.memory_space<vmem>>, vector<1x1x12x4xbf16>
    %22 = vector.shape_cast %21 : vector<1x1x12x4xbf16> to vector<12x4xbf16>
    %cst_20 = arith.constant dense<0.000000e+00> : vector<16x4xf32>
    %23 = tpu.matmul %20, %22, %cst_20 {dimension_numbers = #tpu.dot_dimension_numbers<[1], [0], [0], [1], [0, 0, 1, 1], [], []>} : vector<16x12xbf16>, vector<12x4xbf16>, vector<16x4xf32> -> vector<16x4xf32>
    %24 = arith.addf %16, %23 : vector<16x4xf32>
    %c0_21 = arith.constant 0 : index
    %c0_22 = arith.constant 0 : index
    %25 = vector.load %arg4[%c0_21, %c0_22] : memref<1x4xf32, #tpu.memory_space<vmem>>, vector<1x4xf32>
    %26 = vector.broadcast %25 : vector<1x4xf32> to vector<16x4xf32>
    %27 = arith.addf %24, %26 : vector<16x4xf32>
    %cst_23 = arith.constant 0.000000e+00 : f32
    %28 = vector.broadcast %cst_23 : f32 to vector<16x4xf32>
    %29 = arith.maximumf %27, %28 : vector<16x4xf32>
    %30 = arith.truncf %29 : vector<16x4xf32> to vector<16x4xbf16>
    %c0_24 = arith.constant 0 : index
    %c0_25 = arith.constant 0 : index
    %c0_26 = arith.constant 0 : index
    %c0_27 = arith.constant 0 : index
    %31 = vector.load %arg5[%c0_24, %c0_25, %c0_26, %c0_27] : memref<1x1x16x4xbf16, #tpu.memory_space<vmem>>, vector<1x1x16x4xbf16>
    %32 = vector.shape_cast %31 : vector<1x1x16x4xbf16> to vector<16x4xbf16>
    %33 = vector.shape_cast %30 : vector<16x4xbf16> to vector<1x1x16x4xbf16>
    tpu.vector_store %arg5[%c0_24, %c0_25, %c0_26, %c0_27], %33 {strides = array<i32>} : memref<1x1x16x4xbf16, #tpu.memory_space<vmem>>, vector<1x1x16x4xbf16>,
    return
  }
  func.func @transform_0(%arg0: i32, %arg1: i32) -> (i32, i32, i32, i32) {
    %c0_i32 = arith.constant 0 : i32
    %c0_i32_0 = arith.constant 0 : i32
    %c0_i32_1 = arith.constant 0 : i32
    %c0_i32_2 = arith.constant 0 : i32
    return %arg0, %c0_i32, %c0_i32_0, %c0_i32_1 : i32, i32, i32, i32
  }
  func.func @transform_1(%arg0: i32, %arg1: i32) -> (i32, i32, i32, i32) {
    %c0_i32 = arith.constant 0 : i32
    %c0_i32_0 = arith.constant 0 : i32
    %c0_i32_1 = arith.constant 0 : i32
    %c0_i32_2 = arith.constant 0 : i32
    %c0_i32_3 = arith.constant 0 : i32
    return %c0_i32, %c0_i32_0, %c0_i32_1, %c0_i32_2 : i32, i32, i32, i32
  }
  func.func @transform_2(%arg0: i32, %arg1: i32) -> (i32, i32) {
    %c0_i32 = arith.constant 0 : i32
    %c0_i32_0 = arith.constant 0 : i32
    %c0_i32_1 = arith.constant 0 : i32
    return %c0_i32, %c0_i32_0 : i32, i32
  }
  func.func @transform_3(%arg0: i32, %arg1: i32) -> (i32, i32, i32, i32) {
    %c0_i32 = arith.constant 0 : i32
    %c0_i32_0 = arith.constant 0 : i32
    %c0_i32_1 = arith.constant 0 : i32
    return %arg0, %arg1, %c0_i32, %c0_i32_0 : i32, i32, i32, i32
  }
}

module attributes {stable_mosaic.version = 11 : i64} {
  func.func @kernel(%arg0: i32, %arg1: i32, %arg2: memref<1x18x16x12xbf16, #tpu.memory_space<vmem>>, %arg3: memref<1x18x16x12xbf16, #tpu.memory_space<vmem>>, %arg4: memref<1x18x16x12xbf16, #tpu.memory_space<vmem>>, %arg5: memref<1x18x16x12xbf16, #tpu.memory_space<vmem>>, %arg6: memref<4x3x12x16xbf16, #tpu.memory_space<vmem>>, %arg7: memref<1x16xf32, #tpu.memory_space<vmem>>, %arg8: memref<1x1x16x16xbf16, #tpu.memory_space<vmem>>) attributes {dimension_semantics = [#tpu.dimension_semantics<parallel>, #tpu.dimension_semantics<arbitrary>], iteration_bounds = array<i64: 2, 16>, scalar_prefetch = 0 : i64, scratch_operands = 0 : i64, tpu.core_type = #tpu.core_type<tc>, window_params = [{transform_indices = @transform_0, window_bounds = array<i64: 1, 18, 16, 12>}, {transform_indices = @transform_1, window_bounds = array<i64: 1, 18, 16, 12>}, {transform_indices = @transform_2, window_bounds = array<i64: 1, 18, 16, 12>}, {transform_indices = @transform_3, window_bounds = array<i64: 1, 18, 16, 12>}, {pipeline_mode = #tpu.pipeline_mode<synchronous>, transform_indices = @transform_4, window_bounds = array<i64: 4, 3, 12, 16>}, {pipeline_mode = #tpu.pipeline_mode<synchronous>, transform_indices = @transform_5, window_bounds = array<i64: 1, 16>}, {transform_indices = @transform_6, window_bounds = array<i64: 1, 1, 16, 16>}]} {
    %cst = arith.constant 0.000000e+00 : f32
    %0 = vector.broadcast %cst : f32 to vector<16x16xf32>
    %c0_i32 = arith.constant 0 : i32
    %1 = arith.addi %arg1, %c0_i32 : i32
    %c0 = arith.constant 0 : index
    %2 = arith.index_cast %1 : i32 to index
    %c0_0 = arith.constant 0 : index
    %c0_1 = arith.constant 0 : index
    %3 = vector.load %arg2[%c0, %2, %c0_0, %c0_1] : memref<1x18x16x12xbf16, #tpu.memory_space<vmem>>, vector<1x1x16x12xbf16>
    %4 = vector.shape_cast %3 : vector<1x1x16x12xbf16> to vector<16x12xbf16>
    %c0_2 = arith.constant 0 : index
    %c0_3 = arith.constant 0 : index
    %c0_4 = arith.constant 0 : index
    %c0_5 = arith.constant 0 : index
    %5 = vector.load %arg6[%c0_2, %c0_3, %c0_4, %c0_5] : memref<4x3x12x16xbf16, #tpu.memory_space<vmem>>, vector<1x1x12x16xbf16>
    %6 = vector.shape_cast %5 : vector<1x1x12x16xbf16> to vector<12x16xbf16>
    %cst_6 = arith.constant dense<0.000000e+00> : vector<16x16xf32>
    %7 = tpu.matmul %4, %6, %cst_6 {dimension_numbers = #tpu.dot_dimension_numbers<[1], [0], [0], [1], [0, 0, 1, 1], [], []>} : vector<16x12xbf16>, vector<12x16xbf16>, vector<16x16xf32> -> vector<16x16xf32>
    %8 = arith.addf %0, %7 : vector<16x16xf32>
    %c1_i32 = arith.constant 1 : i32
    %9 = arith.addi %arg1, %c1_i32 : i32
    %c0_7 = arith.constant 0 : index
    %10 = arith.index_cast %9 : i32 to index
    %c0_8 = arith.constant 0 : index
    %c0_9 = arith.constant 0 : index
    %11 = vector.load %arg2[%c0_7, %10, %c0_8, %c0_9] : memref<1x18x16x12xbf16, #tpu.memory_space<vmem>>, vector<1x1x16x12xbf16>
    %12 = vector.shape_cast %11 : vector<1x1x16x12xbf16> to vector<16x12xbf16>
    %c0_10 = arith.constant 0 : index
    %c1 = arith.constant 1 : index
    %c0_11 = arith.constant 0 : index
    %c0_12 = arith.constant 0 : index
    %13 = vector.load %arg6[%c0_10, %c1, %c0_11, %c0_12] : memref<4x3x12x16xbf16, #tpu.memory_space<vmem>>, vector<1x1x12x16xbf16>
    %14 = vector.shape_cast %13 : vector<1x1x12x16xbf16> to vector<12x16xbf16>
    %cst_13 = arith.constant dense<0.000000e+00> : vector<16x16xf32>
    %15 = tpu.matmul %12, %14, %cst_13 {dimension_numbers = #tpu.dot_dimension_numbers<[1], [0], [0], [1], [0, 0, 1, 1], [], []>} : vector<16x12xbf16>, vector<12x16xbf16>, vector<16x16xf32> -> vector<16x16xf32>
    %16 = arith.addf %8, %15 : vector<16x16xf32>
    %c2_i32 = arith.constant 2 : i32
    %17 = arith.addi %arg1, %c2_i32 : i32
    %c0_14 = arith.constant 0 : index
    %18 = arith.index_cast %17 : i32 to index
    %c0_15 = arith.constant 0 : index
    %c0_16 = arith.constant 0 : index
    %19 = vector.load %arg2[%c0_14, %18, %c0_15, %c0_16] : memref<1x18x16x12xbf16, #tpu.memory_space<vmem>>, vector<1x1x16x12xbf16>
    %20 = vector.shape_cast %19 : vector<1x1x16x12xbf16> to vector<16x12xbf16>
    %c0_17 = arith.constant 0 : index
    %c2 = arith.constant 2 : index
    %c0_18 = arith.constant 0 : index
    %c0_19 = arith.constant 0 : index
    %21 = vector.load %arg6[%c0_17, %c2, %c0_18, %c0_19] : memref<4x3x12x16xbf16, #tpu.memory_space<vmem>>, vector<1x1x12x16xbf16>
    %22 = vector.shape_cast %21 : vector<1x1x12x16xbf16> to vector<12x16xbf16>
    %cst_20 = arith.constant dense<0.000000e+00> : vector<16x16xf32>
    %23 = tpu.matmul %20, %22, %cst_20 {dimension_numbers = #tpu.dot_dimension_numbers<[1], [0], [0], [1], [0, 0, 1, 1], [], []>} : vector<16x12xbf16>, vector<12x16xbf16>, vector<16x16xf32> -> vector<16x16xf32>
    %24 = arith.addf %16, %23 : vector<16x16xf32>
    %c0_i32_21 = arith.constant 0 : i32
    %25 = arith.addi %arg1, %c0_i32_21 : i32
    %c0_22 = arith.constant 0 : index
    %26 = arith.index_cast %25 : i32 to index
    %c0_23 = arith.constant 0 : index
    %c0_24 = arith.constant 0 : index
    %27 = vector.load %arg3[%c0_22, %26, %c0_23, %c0_24] : memref<1x18x16x12xbf16, #tpu.memory_space<vmem>>, vector<1x1x16x12xbf16>
    %28 = vector.shape_cast %27 : vector<1x1x16x12xbf16> to vector<16x12xbf16>
    %c1_25 = arith.constant 1 : index
    %c0_26 = arith.constant 0 : index
    %c0_27 = arith.constant 0 : index
    %c0_28 = arith.constant 0 : index
    %29 = vector.load %arg6[%c1_25, %c0_26, %c0_27, %c0_28] : memref<4x3x12x16xbf16, #tpu.memory_space<vmem>>, vector<1x1x12x16xbf16>
    %30 = vector.shape_cast %29 : vector<1x1x12x16xbf16> to vector<12x16xbf16>
    %cst_29 = arith.constant dense<0.000000e+00> : vector<16x16xf32>
    %31 = tpu.matmul %28, %30, %cst_29 {dimension_numbers = #tpu.dot_dimension_numbers<[1], [0], [0], [1], [0, 0, 1, 1], [], []>} : vector<16x12xbf16>, vector<12x16xbf16>, vector<16x16xf32> -> vector<16x16xf32>
    %32 = arith.addf %24, %31 : vector<16x16xf32>
    %c1_i32_30 = arith.constant 1 : i32
    %33 = arith.addi %arg1, %c1_i32_30 : i32
    %c0_31 = arith.constant 0 : index
    %34 = arith.index_cast %33 : i32 to index
    %c0_32 = arith.constant 0 : index
    %c0_33 = arith.constant 0 : index
    %35 = vector.load %arg3[%c0_31, %34, %c0_32, %c0_33] : memref<1x18x16x12xbf16, #tpu.memory_space<vmem>>, vector<1x1x16x12xbf16>
    %36 = vector.shape_cast %35 : vector<1x1x16x12xbf16> to vector<16x12xbf16>
    %c1_34 = arith.constant 1 : index
    %c1_35 = arith.constant 1 : index
    %c0_36 = arith.constant 0 : index
    %c0_37 = arith.constant 0 : index
    %37 = vector.load %arg6[%c1_34, %c1_35, %c0_36, %c0_37] : memref<4x3x12x16xbf16, #tpu.memory_space<vmem>>, vector<1x1x12x16xbf16>
    %38 = vector.shape_cast %37 : vector<1x1x12x16xbf16> to vector<12x16xbf16>
    %cst_38 = arith.constant dense<0.000000e+00> : vector<16x16xf32>
    %39 = tpu.matmul %36, %38, %cst_38 {dimension_numbers = #tpu.dot_dimension_numbers<[1], [0], [0], [1], [0, 0, 1, 1], [], []>} : vector<16x12xbf16>, vector<12x16xbf16>, vector<16x16xf32> -> vector<16x16xf32>
    %40 = arith.addf %32, %39 : vector<16x16xf32>
    %c2_i32_39 = arith.constant 2 : i32
    %41 = arith.addi %arg1, %c2_i32_39 : i32
    %c0_40 = arith.constant 0 : index
    %42 = arith.index_cast %41 : i32 to index
    %c0_41 = arith.constant 0 : index
    %c0_42 = arith.constant 0 : index
    %43 = vector.load %arg3[%c0_40, %42, %c0_41, %c0_42] : memref<1x18x16x12xbf16, #tpu.memory_space<vmem>>, vector<1x1x16x12xbf16>
    %44 = vector.shape_cast %43 : vector<1x1x16x12xbf16> to vector<16x12xbf16>
    %c1_43 = arith.constant 1 : index
    %c2_44 = arith.constant 2 : index
    %c0_45 = arith.constant 0 : index
    %c0_46 = arith.constant 0 : index
    %45 = vector.load %arg6[%c1_43, %c2_44, %c0_45, %c0_46] : memref<4x3x12x16xbf16, #tpu.memory_space<vmem>>, vector<1x1x12x16xbf16>
    %46 = vector.shape_cast %45 : vector<1x1x12x16xbf16> to vector<12x16xbf16>
    %cst_47 = arith.constant dense<0.000000e+00> : vector<16x16xf32>
    %47 = tpu.matmul %44, %46, %cst_47 {dimension_numbers = #tpu.dot_dimension_numbers<[1], [0], [0], [1], [0, 0, 1, 1], [], []>} : vector<16x12xbf16>, vector<12x16xbf16>, vector<16x16xf32> -> vector<16x16xf32>
    %48 = arith.addf %40, %47 : vector<16x16xf32>
    %c0_i32_48 = arith.constant 0 : i32
    %49 = arith.addi %arg1, %c0_i32_48 : i32
    %c0_49 = arith.constant 0 : index
    %50 = arith.index_cast %49 : i32 to index
    %c0_50 = arith.constant 0 : index
    %c0_51 = arith.constant 0 : index
    %51 = vector.load %arg4[%c0_49, %50, %c0_50, %c0_51] : memref<1x18x16x12xbf16, #tpu.memory_space<vmem>>, vector<1x1x16x12xbf16>
    %52 = vector.shape_cast %51 : vector<1x1x16x12xbf16> to vector<16x12xbf16>
    %c2_52 = arith.constant 2 : index
    %c0_53 = arith.constant 0 : index
    %c0_54 = arith.constant 0 : index
    %c0_55 = arith.constant 0 : index
    %53 = vector.load %arg6[%c2_52, %c0_53, %c0_54, %c0_55] : memref<4x3x12x16xbf16, #tpu.memory_space<vmem>>, vector<1x1x12x16xbf16>
    %54 = vector.shape_cast %53 : vector<1x1x12x16xbf16> to vector<12x16xbf16>
    %cst_56 = arith.constant dense<0.000000e+00> : vector<16x16xf32>
    %55 = tpu.matmul %52, %54, %cst_56 {dimension_numbers = #tpu.dot_dimension_numbers<[1], [0], [0], [1], [0, 0, 1, 1], [], []>} : vector<16x12xbf16>, vector<12x16xbf16>, vector<16x16xf32> -> vector<16x16xf32>
    %56 = arith.addf %48, %55 : vector<16x16xf32>
    %c1_i32_57 = arith.constant 1 : i32
    %57 = arith.addi %arg1, %c1_i32_57 : i32
    %c0_58 = arith.constant 0 : index
    %58 = arith.index_cast %57 : i32 to index
    %c0_59 = arith.constant 0 : index
    %c0_60 = arith.constant 0 : index
    %59 = vector.load %arg4[%c0_58, %58, %c0_59, %c0_60] : memref<1x18x16x12xbf16, #tpu.memory_space<vmem>>, vector<1x1x16x12xbf16>
    %60 = vector.shape_cast %59 : vector<1x1x16x12xbf16> to vector<16x12xbf16>
    %c2_61 = arith.constant 2 : index
    %c1_62 = arith.constant 1 : index
    %c0_63 = arith.constant 0 : index
    %c0_64 = arith.constant 0 : index
    %61 = vector.load %arg6[%c2_61, %c1_62, %c0_63, %c0_64] : memref<4x3x12x16xbf16, #tpu.memory_space<vmem>>, vector<1x1x12x16xbf16>
    %62 = vector.shape_cast %61 : vector<1x1x12x16xbf16> to vector<12x16xbf16>
    %cst_65 = arith.constant dense<0.000000e+00> : vector<16x16xf32>
    %63 = tpu.matmul %60, %62, %cst_65 {dimension_numbers = #tpu.dot_dimension_numbers<[1], [0], [0], [1], [0, 0, 1, 1], [], []>} : vector<16x12xbf16>, vector<12x16xbf16>, vector<16x16xf32> -> vector<16x16xf32>
    %64 = arith.addf %56, %63 : vector<16x16xf32>
    %c2_i32_66 = arith.constant 2 : i32
    %65 = arith.addi %arg1, %c2_i32_66 : i32
    %c0_67 = arith.constant 0 : index
    %66 = arith.index_cast %65 : i32 to index
    %c0_68 = arith.constant 0 : index
    %c0_69 = arith.constant 0 : index
    %67 = vector.load %arg4[%c0_67, %66, %c0_68, %c0_69] : memref<1x18x16x12xbf16, #tpu.memory_space<vmem>>, vector<1x1x16x12xbf16>
    %68 = vector.shape_cast %67 : vector<1x1x16x12xbf16> to vector<16x12xbf16>
    %c2_70 = arith.constant 2 : index
    %c2_71 = arith.constant 2 : index
    %c0_72 = arith.constant 0 : index
    %c0_73 = arith.constant 0 : index
    %69 = vector.load %arg6[%c2_70, %c2_71, %c0_72, %c0_73] : memref<4x3x12x16xbf16, #tpu.memory_space<vmem>>, vector<1x1x12x16xbf16>
    %70 = vector.shape_cast %69 : vector<1x1x12x16xbf16> to vector<12x16xbf16>
    %cst_74 = arith.constant dense<0.000000e+00> : vector<16x16xf32>
    %71 = tpu.matmul %68, %70, %cst_74 {dimension_numbers = #tpu.dot_dimension_numbers<[1], [0], [0], [1], [0, 0, 1, 1], [], []>} : vector<16x12xbf16>, vector<12x16xbf16>, vector<16x16xf32> -> vector<16x16xf32>
    %72 = arith.addf %64, %71 : vector<16x16xf32>
    %c0_i32_75 = arith.constant 0 : i32
    %73 = arith.addi %arg1, %c0_i32_75 : i32
    %c0_76 = arith.constant 0 : index
    %74 = arith.index_cast %73 : i32 to index
    %c0_77 = arith.constant 0 : index
    %c0_78 = arith.constant 0 : index
    %75 = vector.load %arg5[%c0_76, %74, %c0_77, %c0_78] : memref<1x18x16x12xbf16, #tpu.memory_space<vmem>>, vector<1x1x16x12xbf16>
    %76 = vector.shape_cast %75 : vector<1x1x16x12xbf16> to vector<16x12xbf16>
    %c3 = arith.constant 3 : index
    %c0_79 = arith.constant 0 : index
    %c0_80 = arith.constant 0 : index
    %c0_81 = arith.constant 0 : index
    %77 = vector.load %arg6[%c3, %c0_79, %c0_80, %c0_81] : memref<4x3x12x16xbf16, #tpu.memory_space<vmem>>, vector<1x1x12x16xbf16>
    %78 = vector.shape_cast %77 : vector<1x1x12x16xbf16> to vector<12x16xbf16>
    %cst_82 = arith.constant dense<0.000000e+00> : vector<16x16xf32>
    %79 = tpu.matmul %76, %78, %cst_82 {dimension_numbers = #tpu.dot_dimension_numbers<[1], [0], [0], [1], [0, 0, 1, 1], [], []>} : vector<16x12xbf16>, vector<12x16xbf16>, vector<16x16xf32> -> vector<16x16xf32>
    %80 = arith.addf %72, %79 : vector<16x16xf32>
    %c1_i32_83 = arith.constant 1 : i32
    %81 = arith.addi %arg1, %c1_i32_83 : i32
    %c0_84 = arith.constant 0 : index
    %82 = arith.index_cast %81 : i32 to index
    %c0_85 = arith.constant 0 : index
    %c0_86 = arith.constant 0 : index
    %83 = vector.load %arg5[%c0_84, %82, %c0_85, %c0_86] : memref<1x18x16x12xbf16, #tpu.memory_space<vmem>>, vector<1x1x16x12xbf16>
    %84 = vector.shape_cast %83 : vector<1x1x16x12xbf16> to vector<16x12xbf16>
    %c3_87 = arith.constant 3 : index
    %c1_88 = arith.constant 1 : index
    %c0_89 = arith.constant 0 : index
    %c0_90 = arith.constant 0 : index
    %85 = vector.load %arg6[%c3_87, %c1_88, %c0_89, %c0_90] : memref<4x3x12x16xbf16, #tpu.memory_space<vmem>>, vector<1x1x12x16xbf16>
    %86 = vector.shape_cast %85 : vector<1x1x12x16xbf16> to vector<12x16xbf16>
    %cst_91 = arith.constant dense<0.000000e+00> : vector<16x16xf32>
    %87 = tpu.matmul %84, %86, %cst_91 {dimension_numbers = #tpu.dot_dimension_numbers<[1], [0], [0], [1], [0, 0, 1, 1], [], []>} : vector<16x12xbf16>, vector<12x16xbf16>, vector<16x16xf32> -> vector<16x16xf32>
    %88 = arith.addf %80, %87 : vector<16x16xf32>
    %c2_i32_92 = arith.constant 2 : i32
    %89 = arith.addi %arg1, %c2_i32_92 : i32
    %c0_93 = arith.constant 0 : index
    %90 = arith.index_cast %89 : i32 to index
    %c0_94 = arith.constant 0 : index
    %c0_95 = arith.constant 0 : index
    %91 = vector.load %arg5[%c0_93, %90, %c0_94, %c0_95] : memref<1x18x16x12xbf16, #tpu.memory_space<vmem>>, vector<1x1x16x12xbf16>
    %92 = vector.shape_cast %91 : vector<1x1x16x12xbf16> to vector<16x12xbf16>
    %c3_96 = arith.constant 3 : index
    %c2_97 = arith.constant 2 : index
    %c0_98 = arith.constant 0 : index
    %c0_99 = arith.constant 0 : index
    %93 = vector.load %arg6[%c3_96, %c2_97, %c0_98, %c0_99] : memref<4x3x12x16xbf16, #tpu.memory_space<vmem>>, vector<1x1x12x16xbf16>
    %94 = vector.shape_cast %93 : vector<1x1x12x16xbf16> to vector<12x16xbf16>
    %cst_100 = arith.constant dense<0.000000e+00> : vector<16x16xf32>
    %95 = tpu.matmul %92, %94, %cst_100 {dimension_numbers = #tpu.dot_dimension_numbers<[1], [0], [0], [1], [0, 0, 1, 1], [], []>} : vector<16x12xbf16>, vector<12x16xbf16>, vector<16x16xf32> -> vector<16x16xf32>
    %96 = arith.addf %88, %95 : vector<16x16xf32>
    %c0_101 = arith.constant 0 : index
    %c0_102 = arith.constant 0 : index
    %97 = vector.load %arg7[%c0_101, %c0_102] : memref<1x16xf32, #tpu.memory_space<vmem>>, vector<1x16xf32>
    %98 = vector.broadcast %97 : vector<1x16xf32> to vector<16x16xf32>
    %99 = arith.addf %96, %98 : vector<16x16xf32>
    %cst_103 = arith.constant 0.000000e+00 : f32
    %100 = vector.broadcast %cst_103 : f32 to vector<16x16xf32>
    %101 = arith.maximumf %99, %100 : vector<16x16xf32>
    %102 = arith.truncf %101 : vector<16x16xf32> to vector<16x16xbf16>
    %c0_104 = arith.constant 0 : index
    %c0_105 = arith.constant 0 : index
    %c0_106 = arith.constant 0 : index
    %c0_107 = arith.constant 0 : index
    %103 = vector.load %arg8[%c0_104, %c0_105, %c0_106, %c0_107] : memref<1x1x16x16xbf16, #tpu.memory_space<vmem>>, vector<1x1x16x16xbf16>
    %104 = vector.shape_cast %103 : vector<1x1x16x16xbf16> to vector<16x16xbf16>
    %105 = vector.shape_cast %102 : vector<16x16xbf16> to vector<1x1x16x16xbf16>
    tpu.vector_store %arg8[%c0_104, %c0_105, %c0_106, %c0_107], %105 {strides = array<i32>} : memref<1x1x16x16xbf16, #tpu.memory_space<vmem>>, vector<1x1x16x16xbf16>,
    return
  }
  func.func @transform_0(%arg0: i32, %arg1: i32) -> (i32, i32, i32, i32) {
    %c0_i32 = arith.constant 0 : i32
    %c0_i32_0 = arith.constant 0 : i32
    %c0_i32_1 = arith.constant 0 : i32
    %c0_i32_2 = arith.constant 0 : i32
    return %arg0, %c0_i32, %c0_i32_0, %c0_i32_1 : i32, i32, i32, i32
  }
  func.func @transform_1(%arg0: i32, %arg1: i32) -> (i32, i32, i32, i32) {
    %c0_i32 = arith.constant 0 : i32
    %c0_i32_0 = arith.constant 0 : i32
    %c0_i32_1 = arith.constant 0 : i32
    %c0_i32_2 = arith.constant 0 : i32
    return %arg0, %c0_i32, %c0_i32_0, %c0_i32_1 : i32, i32, i32, i32
  }
  func.func @transform_2(%arg0: i32, %arg1: i32) -> (i32, i32, i32, i32) {
    %c0_i32 = arith.constant 0 : i32
    %c0_i32_0 = arith.constant 0 : i32
    %c0_i32_1 = arith.constant 0 : i32
    %c0_i32_2 = arith.constant 0 : i32
    return %arg0, %c0_i32, %c0_i32_0, %c0_i32_1 : i32, i32, i32, i32
  }
  func.func @transform_3(%arg0: i32, %arg1: i32) -> (i32, i32, i32, i32) {
    %c0_i32 = arith.constant 0 : i32
    %c0_i32_0 = arith.constant 0 : i32
    %c0_i32_1 = arith.constant 0 : i32
    %c0_i32_2 = arith.constant 0 : i32
    return %arg0, %c0_i32, %c0_i32_0, %c0_i32_1 : i32, i32, i32, i32
  }
  func.func @transform_4(%arg0: i32, %arg1: i32) -> (i32, i32, i32, i32) {
    %c0_i32 = arith.constant 0 : i32
    %c0_i32_0 = arith.constant 0 : i32
    %c0_i32_1 = arith.constant 0 : i32
    %c0_i32_2 = arith.constant 0 : i32
    %c0_i32_3 = arith.constant 0 : i32
    return %c0_i32, %c0_i32_0, %c0_i32_1, %c0_i32_2 : i32, i32, i32, i32
  }
  func.func @transform_5(%arg0: i32, %arg1: i32) -> (i32, i32) {
    %c0_i32 = arith.constant 0 : i32
    %c0_i32_0 = arith.constant 0 : i32
    %c0_i32_1 = arith.constant 0 : i32
    return %c0_i32, %c0_i32_0 : i32, i32
  }
  func.func @transform_6(%arg0: i32, %arg1: i32) -> (i32, i32, i32, i32) {
    %c0_i32 = arith.constant 0 : i32
    %c0_i32_0 = arith.constant 0 : i32
    %c0_i32_1 = arith.constant 0 : i32
    return %arg0, %arg1, %c0_i32, %c0_i32_0 : i32, i32, i32, i32
  }
}

</mosaic_0001>

<llo_original>
// kernel: fpn_forward.10
$region0: #{fpn_forward.10}
  #allocation0 [shape = 'u32[]', space=smem, size = 0x4, offset = 0x4, fixed_abs, tag = 'smem constant byte address 0x4 - core index']
  #allocation1 [shape = 'u32[72,128]{1,0:T(1,128)}', space=vmem, size = 0x9000, scoped, tag = 'internal scratch']
  %s0 = inlined_call_operand.vmem [shape: bf16[2,6,16,12], index: 0, kind: input, shape index: {}]
  %s1 = inlined_call_operand.vmem [shape: bf16[1,3,12,4], index: 1, kind: input, shape index: {}]
  %s2 = inlined_call_operand.vmem [shape: f32[1,4], index: 2, kind: input, shape index: {}]
  %s3 = inlined_call_operand.vmem [shape: bf16[2,4,16,4], index: 3, kind: output, shape index: {}]
  %s4 = sld [smem:[#allocation0]]
  $region45: #{fpn_forward.10} parent=0
    _
  %s6 = ssub.s32 1, %s4
  %s7 = scalar_select 0, %s6, %s4
  loop: start=0, step=1, limit=10
  $region2: #{fpn_forward.10} parent=0 // loop_pre_header
    _
  $region3: #{fpn_forward.10} parent=0 // loop_header
    %s9 = sphi 0, %s13
    %p10 = scmp.ge.s32.totalorder %s9, 10
    %s16 = sphi 0, %s28
    %s17 = sphi 0, %s24
    %s18 = sphi 0, %s16
    %s19 = sphi 0, %s17
    %s20 = sphi 0, %s18
    %s21 = sphi 0, %s19
    %s31 = sphi 0, %s33
    %s34 = sphi 0, %s31
    %s35 = sphi 0, %s34
    %s51 = sphi 0, %s35
    %s55 = sphi 0, %s55
    %s57 = sphi 0, %s55
    %s58 = sphi 0, %s57
    %s72 = sphi 0, %s58
    %s76 = sphi 0, %s76
    %s78 = sphi 0, %s76
    %s79 = sphi 0, %s78
    %s93 = sphi 0, %s79
    %s101 = sphi 0, %s103
    %s104 = sphi 0, %s101
    %s105 = sphi 0, %s104
    %s121 = sphi 0, %s105
  $region4: #{fpn_forward.10} parent=0 // loop_header_branch
    %12 = sbr.rel (%p10) target = $region8
  $region5: #{fpn_forward.10} parent=0 // loop_body
    %s14 = ssub.s32 %s9, 1
    %s15 = ssub.s32 %s9, 2
    %s22 = sadd.s32 1, %s17
    %p23 = scmp.ge.s32.totalorder %s22, 4
    %s24 = scalar_select %p23, 0, %s22
    %s25 = sadd.s32 1, %s16
    %s26 = scalar_select %p23, %s25, %s16
    %p27 = scmp.ge.s32.totalorder %s26, 2
    %s28 = scalar_select %p27, 0, %s26
    %s29 = ssub.s32 %s16, %s28
    %p30 = scmp.eq.s32.totalorder %s29, 0
    %s32 = sadd.s32 %s31, 1
    %s33 = scalar_select %p30, %s31, %s32
    %p36 = pneg %p30
    %p37 = scmp.eq.s32.totalorder %s9, 7
    %p38 = por %p36, %p37
    %p39 = scmp.ne.s32.totalorder %s31, %s34
    %p40 = scmp.eq.s32.totalorder %s9, 0
    %p41 = por %p39, %p40
    %p42 = scmp.ne.s32.totalorder %s31, %s34
    %p43 = scmp.eq.s32.totalorder %s14, 7
    %p44 = por %p42, %p43
    %p45 = scmp.ne.s32.totalorder %s34, %s35
    %p46 = scmp.eq.s32.totalorder %s14, 0
    %p47 = por %p45, %p46
    %p48 = scmp.ne.s32.totalorder %s34, %s35
    %p49 = scmp.eq.s32.totalorder %s15, 7
    %p50 = por %p48, %p49
    %p52 = scmp.ne.s32.totalorder %s35, %s51
    %p53 = scmp.eq.s32.totalorder %s15, 0
    %p54 = por %p52, %p53
    %s56 = sadd.s32 %s55, 1
    %p59 = scmp.eq.s32.totalorder %s9, 7
    %p60 = scmp.ne.s32.totalorder %s55, %s57
    %p61 = scmp.eq.s32.totalorder %s9, 0
    %p62 = por %p60, %p61
    %p63 = scmp.ne.s32.totalorder %s55, %s57
    %p64 = scmp.eq.s32.totalorder %s14, 7
    %p65 = por %p63, %p64
    %p66 = scmp.ne.s32.totalorder %s57, %s58
    %p67 = scmp.eq.s32.totalorder %s14, 0
    %p68 = por %p66, %p67
    %p69 = scmp.ne.s32.totalorder %s57, %s58
    %p70 = scmp.eq.s32.totalorder %s15, 7
    %p71 = por %p69, %p70
    %p73 = scmp.ne.s32.totalorder %s58, %s72
    %p74 = scmp.eq.s32.totalorder %s15, 0
    %p75 = por %p73, %p74
    %s77 = sadd.s32 %s76, 1
    %p80 = scmp.eq.s32.totalorder %s9, 7
    %p81 = scmp.ne.s32.totalorder %s76, %s78
    %p82 = scmp.eq.s32.totalorder %s9, 0
    %p83 = por %p81, %p82
    %p84 = scmp.ne.s32.totalorder %s76, %s78
    %p85 = scmp.eq.s32.totalorder %s14, 7
    %p86 = por %p84, %p85
    %p87 = scmp.ne.s32.totalorder %s78, %s79
    %p88 = scmp.eq.s32.totalorder %s14, 0
    %p89 = por %p87, %p88
    %p90 = scmp.ne.s32.totalorder %s78, %s79
    %p91 = scmp.eq.s32.totalorder %s15, 7
    %p92 = por %p90, %p91
    %p94 = scmp.ne.s32.totalorder %s79, %s93
    %p95 = scmp.eq.s32.totalorder %s15, 0
    %p96 = por %p94, %p95
    %s97 = ssub.s32 %s16, %s28
    %s98 = ssub.s32 %s17, %s24
    %s99 = sor.u32 %s97, %s98
    %p100 = scmp.eq.s32.totalorder %s99, 0
    %s102 = sadd.s32 %s101, 1
    %s103 = scalar_select %p100, %s101, %s102
    %p106 = pneg %p100
    %p107 = scmp.eq.s32.totalorder %s9, 7
    %p108 = por %p106, %p107
    %p109 = scmp.ne.s32.totalorder %s101, %s104
    %p110 = scmp.eq.s32.totalorder %s9, 0
    %p111 = por %p109, %p110
    %p112 = scmp.ne.s32.totalorder %s101, %s104
    %p113 = scmp.eq.s32.totalorder %s14, 7
    %p114 = por %p112, %p113
    %p115 = scmp.ne.s32.totalorder %s104, %s105
    %p116 = scmp.eq.s32.totalorder %s14, 0
    %p117 = por %p115, %p116
    %p118 = scmp.ne.s32.totalorder %s104, %s105
    %p119 = scmp.eq.s32.totalorder %s15, 7
    %p120 = por %p118, %p119
    %p122 = scmp.ne.s32.totalorder %s105, %s121
    %p123 = scmp.eq.s32.totalorder %s15, 0
    %p124 = por %p122, %p123
    %p125 = scmp.le.s32.totalorder 1, %s9
    %p126 = scmp.lt.s32.totalorder %s9, 9
    %p127 = pnand %p125, %p126
    %p128 = pneg %p127
    // Predicated region
    $region9: #{fpn_forward.10} parent=5 // pred_check
      _
    $region10: #{fpn_forward.10} parent=5 // pred_check_branch
      %130 = sbr.rel (%p127) target = $region12
    $region11: #{fpn_forward.10} parent=5 // pred_region
      %s131 = ssub.s32 %s9, 1
      // Predicated region
      $region13: #{fpn_forward.10} parent=11 // pred_check
        %p132 = pneg %p68
      $region14: #{fpn_forward.10} parent=11 // pred_check_branch
        %134 = sbr.rel (%p132) target = $region16
      $region15: #{fpn_forward.10} parent=11 // pred_region
        _
      $region16: #{fpn_forward.10} parent=11 // pred_fallthru
        _
      // Predicated region
      $region17: #{fpn_forward.10} parent=11 // pred_check
        %p135 = pneg %p89
      $region18: #{fpn_forward.10} parent=11 // pred_check_branch
        %137 = sbr.rel (%p135) target = $region20
      $region19: #{fpn_forward.10} parent=11 // pred_region
        _
      $region20: #{fpn_forward.10} parent=11 // pred_fallthru
        _
    $region12: #{fpn_forward.10} parent=5 // pred_fallthru
      _
    %p138 = scmp.lt.s32.totalorder %s9, 8
    // Predicated region
    $region21: #{fpn_forward.10} parent=5 // pred_check
      %p139 = pneg %p138
    $region22: #{fpn_forward.10} parent=5 // pred_check_branch
      %141 = sbr.rel (%p139) target = $region24
    $region23: #{fpn_forward.10} parent=5 // pred_region
      // Predicated region
      $region25: #{fpn_forward.10} parent=23 // pred_check
        %p142 = pneg %p41
      $region26: #{fpn_forward.10} parent=23 // pred_check_branch
        %144 = sbr.rel (%p142) target = $region28
      $region27: #{fpn_forward.10} parent=23 // pred_region
        %p145 = scmp.lt.s32.totalorder %s16, 1
        %s146 = scalar_select %p145, %s16, 1
        %s147 = smul.addr %s146, 12
        %s148 = smul.addr %s147, 4
        %s149 = scalar_lea.vmem %s0, %s148
      $region28: #{fpn_forward.10} parent=23 // pred_fallthru
        _
    $region24: #{fpn_forward.10} parent=5 // pred_fallthru
      _
    %p150 = scmp.le.s32.totalorder 1, %s9
    %p151 = scmp.lt.s32.totalorder %s9, 9
    %p152 = pnand %p150, %p151
    %p153 = pneg %p152
    // Predicated region
    $region29: #{fpn_forward.10} parent=5 // pred_check
      _
    $region30: #{fpn_forward.10} parent=5 // pred_check_branch
      %155 = sbr.rel (%p152) target = $region32
    $region31: #{fpn_forward.10} parent=5 // pred_region
      %s156 = ssub.s32 %s9, 1
      %p157 = scmp.lt.s32.totalorder %s18, 1
      %s158 = scalar_select %p157, %s18, 1
      %s159 = smul.addr %s158, 12
      %s160 = smul.addr %s159, 4
      %s161 = scalar_lea.vmem %s0, %s160
      %p162 = pneg %p47
      %p163 = pneg %p44
      %p164 = pneg %p68
      %p165 = pneg %p65
      %p166 = pneg %p89
      %p167 = pneg %p86
      %p168 = pneg %p117
      %p169 = pneg %p114
      %p170 = scmp.lt.s32.totalorder %s18, 1
      %s171 = scalar_select %p170, %s18, 1
      %p172 = scmp.lt.s32.totalorder %s19, 3
      %s173 = scalar_select %p172, %s19, 3
      %s174 = smul.addr %s173, 2
      %s175 = smul.addr %s171, 8
      %s176 = sadd.s32 %s174, %s175
      %s177 = smul.addr %s176, 4
      %s178 = scalar_lea.vmem %s3, %s177
      %p179 = scmp.lt.s32.totalorder %s18, 1
      %s180 = scalar_select %p179, %s18, 1
      %s181 = smul.addr %s180, 12
      %s182 = smul.addr %s181, 4
      %s183 = scalar_lea.vmem %s0, %s182
      %p184 = scmp.lt.s32.totalorder %s18, 1
      %s185 = scalar_select %p184, %s18, 1
      %p186 = scmp.lt.s32.totalorder %s19, 3
      %s187 = scalar_select %p186, %s19, 3
      %s188 = smul.addr %s187, 2
      %s189 = smul.addr %s185, 8
      %s190 = sadd.s32 %s188, %s189
      %s191 = smul.addr %s190, 4
      %s192 = scalar_lea.vmem %s3, %s191
      %s194 = smul.u32 %s19, 2
      %s195 = smul.addr %s194, 4
      %s196 = scalar_lea.vmem %s183, %s195
      %v197 = vld [vmem:[%s196] sm:$0xf]
      %v198 = vld [vmem:[%s196 + $0x4] sm:$0xf]
      %v199 = vld [vmem:[%s1] sm:$0xf]
      %v200 = vld [vmem:[%s1 + $0x4] sm:$0x3]
      %s201 = sadd.s32 %s19, 1
      %s202 = smul.u32 %s201, 2
      %s203 = smul.addr %s202, 4
      %s204 = scalar_lea.vmem %s183, %s203
      %v205 = vld [vmem:[%s204] sm:$0xf]
      %v206 = vld [vmem:[%s204 + $0x4] sm:$0xf]
      %s207 = scalar_lea.vmem %s1, 8
      %v208 = vld [vmem:[%s207] sm:$0xf]
      %v209 = vld [vmem:[%s207 + $0x4] sm:$0x3]
      %v212 = vunpack.c.l.b16 %v205
      %v213 = vunpack.c.l.b16 %v206
      %v214 = vpack.c.b16 %v213, %v212
      %v217 = vunpack.c.l.b16 %v208
      %v218 = vunpack.c.l.b16 %v209
      %v219 = vpack.c.b16 %v218, %v217
      %vm220 = vcmask 97280
      %v222 = vsel %vm220, %v214, 0
      %vm224 = vcmask 1045504
      %v226 = vsel %vm224, %v219, 0
      %228 = vmatpush.bf16.msra.mxu0 0
      %229 = vmatpush.bf16.msra.mxu0 0
      %230 = vmatpush.bf16.msra.mxu0 0
      %231 = vmatpush.bf16.msra.mxu0 0
      %232 = vmatpush.bf16.msra.mxu0 0
      %233 = vmatpush.bf16.msra.mxu0 0
      %234 = vmatpush.bf16.msra.mxu0 0
      %235 = vmatpush.bf16.msra.mxu0 %v226
      %236 = vmatmul.bf16.gmra.mxu0 %v222
      %v237 = vpop.f32.mrf.mxu0
      %v238 = vadd.f32 0.0, %v237
      %v239 = vpop.f32.mrf.mxu0
      %v240 = vadd.f32 0.0, %v239
      %241 = vdwg.mxu0
      %v244 = vunpack.c.l.b16 %v197
      %v245 = vunpack.c.l.b16 %v198
      %v246 = vpack.c.b16 %v245, %v244
      %v249 = vunpack.c.l.b16 %v199
      %v250 = vunpack.c.l.b16 %v200
      %v251 = vpack.c.b16 %v250, %v249
      %v253 = vsel %vm220, %v246, 0
      %v256 = vsel %vm224, %v251, 0
      %258 = vmatpush.bf16.msra.mxu0 0
      %259 = vmatpush.bf16.msra.mxu0 0
      %260 = vmatpush.bf16.msra.mxu0 0
      %261 = vmatpush.bf16.msra.mxu0 0
      %262 = vmatpush.bf16.msra.mxu0 0
      %263 = vmatpush.bf16.msra.mxu0 0
      %264 = vmatpush.bf16.msra.mxu0 0
      %265 = vmatpush.bf16.msra.mxu0 %v256
      %266 = vmatmul.bf16.gmra.mxu0 %v253
      %v267 = vpop.f32.mrf.mxu0
      %v268 = vadd.f32 %v238, %v267
      %v269 = vpop.f32.mrf.mxu0
      %v270 = vadd.f32 %v240, %v269
      %271 = vdwg.mxu0
      %s272 = sadd.s32 %s19, 2
      %s273 = smul.u32 %s272, 2
      %s274 = smul.addr %s273, 4
      %s275 = scalar_lea.vmem %s183, %s274
      %v276 = vld [vmem:[%s275] sm:$0xf]
      %v277 = vld [vmem:[%s275 + $0x4] sm:$0xf]
      %s278 = scalar_lea.vmem %s1, 16
      %v279 = vld [vmem:[%s278] sm:$0xf]
      %v280 = vld [vmem:[%s278 + $0x4] sm:$0x3]
      %v283 = vunpack.c.l.b16 %v276
      %v284 = vunpack.c.l.b16 %v277
      %v285 = vpack.c.b16 %v284, %v283
      %v288 = vunpack.c.l.b16 %v279
      %v289 = vunpack.c.l.b16 %v280
      %v290 = vpack.c.b16 %v289, %v288
      %v292 = vsel %vm220, %v285, 0
      %v295 = vsel %vm224, %v290, 0
      %297 = vmatpush.bf16.msra.mxu0 0
      %298 = vmatpush.bf16.msra.mxu0 0
      %299 = vmatpush.bf16.msra.mxu0 0
      %300 = vmatpush.bf16.msra.mxu0 0
      %301 = vmatpush.bf16.msra.mxu0 0
      %302 = vmatpush.bf16.msra.mxu0 0
      %303 = vmatpush.bf16.msra.mxu0 0
      %304 = vmatpush.bf16.msra.mxu0 %v295
      %305 = vmatmul.bf16.gmra.mxu0 %v292
      %v306 = vpop.f32.mrf.mxu0
      %v307 = vadd.f32 0.0, %v306
      %v308 = vpop.f32.mrf.mxu0
      %v309 = vadd.f32 0.0, %v308
      %310 = vdwg.mxu0
      %v311 = vadd.f32 %v268, %v307
      %v312 = vadd.f32 %v270, %v309
      %v313 = vld [vmem:[%s2] sm:$0x1]
      %v315 = vperm.slane %v313, 0
      %v317 = vadd.f32 %v311, %v315
      %v318 = vadd.f32 %v312, %v315
      %v319 = vmax.f32 %v317, 0.0
      %v320 = vmax.f32 %v318, 0.0
      %v321 = vpack.c.bf16 %v319, %v319
      %v322 = vpack.c.bf16 %v320, %v320
      %vm323 = vcmask 27648
      %324 = vst.msk [vmem:[%s192] sm:$0xf] %vm323, %v321
      %325 = vst.msk [vmem:[%s192 + $0x4] sm:$0xf] %vm323, %v322
      %p326 = scmp.lt.s32.totalorder %s18, 1
      %s327 = scalar_select %p326, %s18, 1
      %p328 = scmp.lt.s32.totalorder %s19, 3
      %s329 = scalar_select %p328, %s19, 3
      %s330 = smul.addr %s329, 2
      %s331 = smul.addr %s327, 8
      %s332 = sadd.s32 %s330, %s331
      %s333 = smul.addr %s332, 4
      %s334 = scalar_lea.vmem %s3, %s333
      // Predicated region
      $region33: #{fpn_forward.10} parent=31 // pred_check
        %p335 = pneg %p114
      $region34: #{fpn_forward.10} parent=31 // pred_check_branch
        %337 = sbr.rel (%p335) target = $region36
      $region35: #{fpn_forward.10} parent=31 // pred_region
        _
      $region36: #{fpn_forward.10} parent=31 // pred_fallthru
        _
    $region32: #{fpn_forward.10} parent=5 // pred_fallthru
      _
    %p338 = scmp.le.s32.totalorder 2, %s9
    // Predicated region
    $region37: #{fpn_forward.10} parent=5 // pred_check
      %p339 = pneg %p338
    $region38: #{fpn_forward.10} parent=5 // pred_check_branch
      %341 = sbr.rel (%p339) target = $region40
    $region39: #{fpn_forward.10} parent=5 // pred_region
      %s342 = ssub.s32 %s9, 2
      // Predicated region
      $region41: #{fpn_forward.10} parent=39 // pred_check
        %p343 = pneg %p120
      $region42: #{fpn_forward.10} parent=39 // pred_check_branch
        %345 = sbr.rel (%p343) target = $region44
      $region43: #{fpn_forward.10} parent=39 // pred_region
        %p346 = scmp.lt.s32.totalorder %s20, 1
        %s347 = scalar_select %p346, %s20, 1
        %p348 = scmp.lt.s32.totalorder %s21, 3
        %s349 = scalar_select %p348, %s21, 3
        %s350 = smul.addr %s349, 2
        %s351 = smul.addr %s347, 8
        %s352 = sadd.s32 %s350, %s351
        %s353 = smul.addr %s352, 4
        %s354 = scalar_lea.vmem %s3, %s353
      $region44: #{fpn_forward.10} parent=39 // pred_fallthru
        _
    $region40: #{fpn_forward.10} parent=5 // pred_fallthru
      _
  $region6: #{fpn_forward.10} parent=0 // loop_footer
    %s13 = sadd.s32 1, %s9
  $region7: #{fpn_forward.10} parent=0 // loop_footer_branch
    %8 = sbr.rel target = $region3
  $region8: #{fpn_forward.10} parent=0 // loop_exit
    _

// kernel: fpn_forward.9
$region0: #{fpn_forward.9}
  #allocation0 [shape = 'u32[]', space=smem, size = 0x4, offset = 0x4, fixed_abs, tag = 'smem constant byte address 0x4 - core index']
  #allocation1 [shape = 'u32[72,128]{1,0:T(1,128)}', space=vmem, size = 0x9000, scoped, tag = 'internal scratch']
  %s0 = inlined_call_operand.vmem [shape: bf16[32,16], index: 0, kind: input, shape index: {}]
  %s1 = inlined_call_operand.vmem [shape: bf16[16,4], index: 1, kind: input, shape index: {}]
  %s2 = inlined_call_operand.vmem [shape: f32[1,4], index: 2, kind: input, shape index: {}]
  %s3 = inlined_call_operand.vmem [shape: bf16[32,4], index: 3, kind: input, shape index: {}]
  %s4 = inlined_call_operand.vmem [shape: bf16[32,4], index: 4, kind: output, shape index: {}]
  %s5 = sld [smem:[#allocation0]]
  $region26: #{fpn_forward.9} parent=0
    _
  %s7 = ssub.s32 1, %s5
  %s8 = scalar_select 0, %s7, %s5
  // Predicated region
  $region2: #{fpn_forward.9} parent=0 // pred_check
    _
  $region3: #{fpn_forward.9} parent=0 // pred_check_branch
    %10 = sbr.rel (0) target = $region5
  $region4: #{fpn_forward.9} parent=0 // pred_region
    _
  $region5: #{fpn_forward.9} parent=0 // pred_fallthru
    _
  // Predicated region
  $region6: #{fpn_forward.9} parent=0 // pred_check
    _
  $region7: #{fpn_forward.9} parent=0 // pred_check_branch
    %12 = sbr.rel (0) target = $region9
  $region8: #{fpn_forward.9} parent=0 // pred_region
    _
  $region9: #{fpn_forward.9} parent=0 // pred_fallthru
    _
  // Predicated region
  $region10: #{fpn_forward.9} parent=0 // pred_check
    _
  $region11: #{fpn_forward.9} parent=0 // pred_check_branch
    %14 = sbr.rel (0) target = $region13
  $region12: #{fpn_forward.9} parent=0 // pred_region
    _
  $region13: #{fpn_forward.9} parent=0 // pred_fallthru
    _
  // Predicated region
  $region14: #{fpn_forward.9} parent=0 // pred_check
    _
  $region15: #{fpn_forward.9} parent=0 // pred_check_branch
    %16 = sbr.rel (0) target = $region17
  $region16: #{fpn_forward.9} parent=0 // pred_region
    _
  $region17: #{fpn_forward.9} parent=0 // pred_fallthru
    _
  %v18 = vld [vmem:[%s0] sm:$0xf]
  %v19 = vld [vmem:[%s0 + $0x4] sm:$0xf]
  %v20 = vld [vmem:[%s0 + $0x8] sm:$0xf]
  %v21 = vld [vmem:[%s0 + $0xc] sm:$0xf]
  %v22 = vld [vmem:[%s1] sm:$0xf]
  %v23 = vld [vmem:[%s1 + $0x4] sm:$0xf]
  %v24 = vld [vmem:[%s2] sm:$0x1]
  %v26 = vperm.slane %v24, 0
  %v32 = vunpack.c.l.b16 %v18
  %v33 = vunpack.c.l.b16 %v19
  %v34 = vunpack.c.l.b16 %v20
  %v35 = vunpack.c.l.b16 %v21
  %v36 = vpack.c.b16 %v33, %v32
  %v37 = vpack.c.b16 %v35, %v34
  %v40 = vunpack.c.l.b16 %v22
  %v41 = vunpack.c.l.b16 %v23
  %v42 = vpack.c.b16 %v41, %v40
  %vm44 = vcmask 130048
  %v46 = vsel %vm44, %v36, 0
  %v49 = vsel %vm44, %v37, 0
  %51 = vmatpush.bf16.msra.mxu0 0
  %52 = vmatpush.bf16.msra.mxu0 0
  %53 = vmatpush.bf16.msra.mxu0 0
  %54 = vmatpush.bf16.msra.mxu0 0
  %55 = vmatpush.bf16.msra.mxu0 0
  %56 = vmatpush.bf16.msra.mxu0 0
  %57 = vmatpush.bf16.msra.mxu0 0
  %58 = vmatpush.bf16.msra.mxu0 %v42
  %59 = vmatmul.bf16.gmra.mxu0 %v46
  %v60 = vpop.f32.mrf.mxu0
  %v61 = vadd.f32 %v26, %v60
  %v62 = vpop.f32.mrf.mxu0
  %v63 = vadd.f32 %v26, %v62
  %64 = vmatmul.bf16.gmra.mxu0 %v49
  %v65 = vpop.f32.mrf.mxu0
  %v66 = vadd.f32 %v26, %v65
  %v67 = vpop.f32.mrf.mxu0
  %v68 = vadd.f32 %v26, %v67
  %69 = vdwg.mxu0
  %v70 = vmax.f32 %v61, 0.0
  %v71 = vmax.f32 %v63, 0.0
  %v72 = vmax.f32 %v66, 0.0
  %v73 = vmax.f32 %v68, 0.0
  %v74 = vld [vmem:[%s3] sm:$0xf]
  %v75 = vld [vmem:[%s3 + $0x4] sm:$0xf]
  %v76 = vld [vmem:[%s3 + $0x8] sm:$0xf]
  %v77 = vld [vmem:[%s3 + $0xc] sm:$0xf]
  %v78 = vunpack.c.l.bf16 %v74
  %v79 = vunpack.c.l.bf16 %v75
  %v80 = vunpack.c.l.bf16 %v76
  %v81 = vunpack.c.l.bf16 %v77
  %v82 = vadd.f32 %v70, %v78
  %v83 = vadd.f32 %v71, %v79
  %v84 = vadd.f32 %v72, %v80
  %v85 = vadd.f32 %v73, %v81
  %v86 = vpack.c.bf16 %v82, %v82
  %v87 = vpack.c.bf16 %v83, %v83
  %v88 = vpack.c.bf16 %v84, %v84
  %v89 = vpack.c.bf16 %v85, %v85
  %vm90 = vcmask 27648
  %91 = vst.msk [vmem:[%s4] sm:$0xf] %vm90, %v86
  %92 = vst.msk [vmem:[%s4 + $0x4] sm:$0xf] %vm90, %v87
  %93 = vst.msk [vmem:[%s4 + $0x8] sm:$0xf] %vm90, %v88
  %94 = vst.msk [vmem:[%s4 + $0xc] sm:$0xf] %vm90, %v89
  // Predicated region
  $region18: #{fpn_forward.9} parent=0 // pred_check
    _
  $region19: #{fpn_forward.9} parent=0 // pred_check_branch
    %96 = sbr.rel (0) target = $region21
  $region20: #{fpn_forward.9} parent=0 // pred_region
    _
  $region21: #{fpn_forward.9} parent=0 // pred_fallthru
    _
  // Predicated region
  $region22: #{fpn_forward.9} parent=0 // pred_check
    _
  $region23: #{fpn_forward.9} parent=0 // pred_check_branch
    %98 = sbr.rel (0) target = $region25
  $region24: #{fpn_forward.9} parent=0 // pred_region
    _
  $region25: #{fpn_forward.9} parent=0 // pred_fallthru
    _

// kernel: fpn_forward.8
$region0: #{fpn_forward.8}
  #allocation0 [shape = 'u32[]', space=smem, size = 0x4, offset = 0x4, fixed_abs, tag = 'smem constant byte address 0x4 - core index']
  #allocation1 [shape = 'u32[72,128]{1,0:T(1,128)}', space=vmem, size = 0x9000, scoped, tag = 'internal scratch']
  %s0 = inlined_call_operand.vmem [shape: bf16[16,32], index: 0, kind: input, shape index: {}]
  %s1 = inlined_call_operand.vmem [shape: bf16[32,4], index: 1, kind: input, shape index: {}]
  %s2 = inlined_call_operand.vmem [shape: f32[1,4], index: 2, kind: input, shape index: {}]
  %s3 = inlined_call_operand.vmem [shape: bf16[16,4], index: 3, kind: output, shape index: {}]
  %s4 = sld [smem:[#allocation0]]
  $region22: #{fpn_forward.8} parent=0
    _
  %s6 = ssub.s32 1, %s4
  %s7 = scalar_select 0, %s6, %s4
  // Predicated region
  $region2: #{fpn_forward.8} parent=0 // pred_check
    _
  $region3: #{fpn_forward.8} parent=0 // pred_check_branch
    %9 = sbr.rel (0) target = $region5
  $region4: #{fpn_forward.8} parent=0 // pred_region
    _
  $region5: #{fpn_forward.8} parent=0 // pred_fallthru
    _
  // Predicated region
  $region6: #{fpn_forward.8} parent=0 // pred_check
    _
  $region7: #{fpn_forward.8} parent=0 // pred_check_branch
    %11 = sbr.rel (0) target = $region9
  $region8: #{fpn_forward.8} parent=0 // pred_region
    _
  $region9: #{fpn_forward.8} parent=0 // pred_fallthru
    _
  // Predicated region
  $region10: #{fpn_forward.8} parent=0 // pred_check
    _
  $region11: #{fpn_forward.8} parent=0 // pred_check_branch
    %13 = sbr.rel (0) target = $region13
  $region12: #{fpn_forward.8} parent=0 // pred_region
    _
  $region13: #{fpn_forward.8} parent=0 // pred_fallthru
    _
  %v15 = vld [vmem:[%s0] sm:$0xf]
  %v16 = vld [vmem:[%s0 + $0x4] sm:$0xf]
  %v17 = vld [vmem:[%s1] sm:$0xf]
  %v18 = vld [vmem:[%s1 + $0x4] sm:$0xf]
  %v19 = vld [vmem:[%s1 + $0x8] sm:$0xf]
  %v20 = vld [vmem:[%s1 + $0xc] sm:$0xf]
  %v21 = vld [vmem:[%s2] sm:$0x1]
  %v23 = vperm.slane %v21, 0
  %v27 = vunpack.c.l.b16 %v15
  %v28 = vunpack.c.l.b16 %v16
  %v29 = vpack.c.b16 %v28, %v27
  %v34 = vunpack.c.l.b16 %v17
  %v35 = vunpack.c.l.b16 %v18
  %v36 = vunpack.c.l.b16 %v19
  %v37 = vunpack.c.l.b16 %v20
  %v38 = vpack.c.b16 %v35, %v34
  %v39 = vpack.c.b16 %v37, %v36
  %vm42 = vcmask 261120
  %v44 = vsel %vm42, %v29, 0
  %46 = vmatpush.bf16.msra.mxu0 0
  %47 = vmatpush.bf16.msra.mxu0 0
  %48 = vmatpush.bf16.msra.mxu0 0
  %49 = vmatpush.bf16.msra.mxu0 0
  %50 = vmatpush.bf16.msra.mxu0 0
  %51 = vmatpush.bf16.msra.mxu0 0
  %52 = vmatpush.bf16.msra.mxu0 %v39
  %53 = vmatpush.bf16.msra.mxu0 %v38
  %54 = vmatmul.bf16.gmra.mxu0 %v44
  %v55 = vpop.f32.mrf.mxu0
  %v56 = vadd.f32 %v23, %v55
  %v57 = vpop.f32.mrf.mxu0
  %v58 = vadd.f32 %v23, %v57
  %59 = vdwg.mxu0
  %v60 = vmax.f32 %v56, 0.0
  %v61 = vmax.f32 %v58, 0.0
  %v62 = vpack.c.bf16 %v60, %v60
  %v63 = vpack.c.bf16 %v61, %v61
  %vm64 = vcmask 27648
  %65 = vst.msk [vmem:[%s3] sm:$0xf] %vm64, %v62
  %66 = vst.msk [vmem:[%s3 + $0x4] sm:$0xf] %vm64, %v63
  // Predicated region
  $region14: #{fpn_forward.8} parent=0 // pred_check
    _
  $region15: #{fpn_forward.8} parent=0 // pred_check_branch
    %68 = sbr.rel (0) target = $region17
  $region16: #{fpn_forward.8} parent=0 // pred_region
    _
  $region17: #{fpn_forward.8} parent=0 // pred_fallthru
    _
  // Predicated region
  $region18: #{fpn_forward.8} parent=0 // pred_check
    _
  $region19: #{fpn_forward.8} parent=0 // pred_check_branch
    %70 = sbr.rel (0) target = $region21
  $region20: #{fpn_forward.8} parent=0 // pred_region
    _
  $region21: #{fpn_forward.8} parent=0 // pred_fallthru
    _

// kernel: fpn_forward.11
$region0: #{fpn_forward.11}
  #allocation0 [shape = 'u32[]', space=smem, size = 0x4, offset = 0x4, fixed_abs, tag = 'smem constant byte address 0x4 - core index']
  #allocation1 [shape = 'u32[72,128]{1,0:T(1,128)}', space=vmem, size = 0x9000, scoped, tag = 'internal scratch']
  %s0 = inlined_call_operand.vmem [shape: bf16[128,8], index: 0, kind: input, shape index: {}]
  %s1 = inlined_call_operand.vmem [shape: bf16[8,4], index: 1, kind: input, shape index: {}]
  %s2 = inlined_call_operand.vmem [shape: f32[1,4], index: 2, kind: input, shape index: {}]
  %s3 = inlined_call_operand.vmem [shape: bf16[128,4], index: 3, kind: input, shape index: {}]
  %s4 = inlined_call_operand.vmem [shape: bf16[128,4], index: 4, kind: output, shape index: {}]
  %s5 = sld [smem:[#allocation0]]
  $region26: #{fpn_forward.11} parent=0
    _
  %s7 = ssub.s32 1, %s5
  %s8 = scalar_select 0, %s7, %s5
  // Predicated region
  $region2: #{fpn_forward.11} parent=0 // pred_check
    _
  $region3: #{fpn_forward.11} parent=0 // pred_check_branch
    %10 = sbr.rel (0) target = $region5
  $region4: #{fpn_forward.11} parent=0 // pred_region
    _
  $region5: #{fpn_forward.11} parent=0 // pred_fallthru
    _
  // Predicated region
  $region6: #{fpn_forward.11} parent=0 // pred_check
    _
  $region7: #{fpn_forward.11} parent=0 // pred_check_branch
    %12 = sbr.rel (0) target = $region9
  $region8: #{fpn_forward.11} parent=0 // pred_region
    _
  $region9: #{fpn_forward.11} parent=0 // pred_fallthru
    _
  // Predicated region
  $region10: #{fpn_forward.11} parent=0 // pred_check
    _
  $region11: #{fpn_forward.11} parent=0 // pred_check_branch
    %14 = sbr.rel (0) target = $region13
  $region12: #{fpn_forward.11} parent=0 // pred_region
    _
  $region13: #{fpn_forward.11} parent=0 // pred_fallthru
    _
  // Predicated region
  $region14: #{fpn_forward.11} parent=0 // pred_check
    _
  $region15: #{fpn_forward.11} parent=0 // pred_check_branch
    %16 = sbr.rel (0) target = $region17
  $region16: #{fpn_forward.11} parent=0 // pred_region
    _
  $region17: #{fpn_forward.11} parent=0 // pred_fallthru
    _
  %v18 = vld [vmem:[%s0] sm:$0xf]
  %v19 = vld [vmem:[%s0 + $0x4] sm:$0xf]
  %v20 = vld [vmem:[%s0 + $0x8] sm:$0xf]
  %v21 = vld [vmem:[%s0 + $0xc] sm:$0xf]
  %v22 = vld [vmem:[%s0 + $0x10] sm:$0xf]
  %v23 = vld [vmem:[%s0 + $0x14] sm:$0xf]
  %v24 = vld [vmem:[%s0 + $0x18] sm:$0xf]
  %v25 = vld [vmem:[%s0 + $0x1c] sm:$0xf]
  %v26 = vld [vmem:[%s0 + $0x20] sm:$0xf]
  %v27 = vld [vmem:[%s0 + $0x24] sm:$0xf]
  %v28 = vld [vmem:[%s0 + $0x28] sm:$0xf]
  %v29 = vld [vmem:[%s0 + $0x2c] sm:$0xf]
  %v30 = vld [vmem:[%s0 + $0x30] sm:$0xf]
  %v31 = vld [vmem:[%s0 + $0x34] sm:$0xf]
  %v32 = vld [vmem:[%s0 + $0x38] sm:$0xf]
  %v33 = vld [vmem:[%s0 + $0x3c] sm:$0xf]
  %v34 = vld [vmem:[%s1] sm:$0xf]
  %v35 = vld [vmem:[%s2] sm:$0x1]
  %v37 = vperm.slane %v35, 0
  %v55 = vunpack.c.l.b16 %v18
  %v56 = vunpack.c.l.b16 %v19
  %v57 = vunpack.c.l.b16 %v20
  %v58 = vunpack.c.l.b16 %v21
  %v59 = vunpack.c.l.b16 %v22
  %v60 = vunpack.c.l.b16 %v23
  %v61 = vunpack.c.l.b16 %v24
  %v62 = vunpack.c.l.b16 %v25
  %v63 = vunpack.c.l.b16 %v26
  %v64 = vunpack.c.l.b16 %v27
  %v65 = vunpack.c.l.b16 %v28
  %v66 = vunpack.c.l.b16 %v29
  %v67 = vunpack.c.l.b16 %v30
  %v68 = vunpack.c.l.b16 %v31
  %v69 = vunpack.c.l.b16 %v32
  %v70 = vunpack.c.l.b16 %v33
  %v71 = vpack.c.b16 %v56, %v55
  %v72 = vpack.c.b16 %v58, %v57
  %v73 = vpack.c.b16 %v60, %v59
  %v74 = vpack.c.b16 %v62, %v61
  %v75 = vpack.c.b16 %v64, %v63
  %v76 = vpack.c.b16 %v66, %v65
  %v77 = vpack.c.b16 %v68, %v67
  %v78 = vpack.c.b16 %v70, %v69
  %vm79 = vcmask 64512
  %v81 = vsel %vm79, %v71, 0
  %v84 = vsel %vm79, %v72, 0
  %v87 = vsel %vm79, %v73, 0
  %v90 = vsel %vm79, %v74, 0
  %v93 = vsel %vm79, %v75, 0
  %v96 = vsel %vm79, %v76, 0
  %v99 = vsel %vm79, %v77, 0
  %v102 = vsel %vm79, %v78, 0
  %vm104 = vcmask 1043456
  %v106 = vsel %vm104, %v34, 0
  %108 = vmatpush.bf16.msra.mxu0 0
  %109 = vmatpush.bf16.msra.mxu0 0
  %110 = vmatpush.bf16.msra.mxu0 0
  %111 = vmatpush.bf16.msra.mxu0 0
  %112 = vmatpush.bf16.msra.mxu0 0
  %113 = vmatpush.bf16.msra.mxu0 0
  %114 = vmatpush.bf16.msra.mxu0 0
  %115 = vmatpush.bf16.msra.mxu0 %v106
  %116 = vmatmul.bf16.gmra.mxu0 %v81
  %v117 = vpop.f32.mrf.mxu0
  %v118 = vadd.f32 %v37, %v117
  %v119 = vpop.f32.mrf.mxu0
  %v120 = vadd.f32 %v37, %v119
  %121 = vmatmul.bf16.gmra.mxu0 %v84
  %v122 = vpop.f32.mrf.mxu0
  %v123 = vadd.f32 %v37, %v122
  %v124 = vpop.f32.mrf.mxu0
  %v125 = vadd.f32 %v37, %v124
  %126 = vmatmul.bf16.gmra.mxu0 %v87
  %v127 = vpop.f32.mrf.mxu0
  %v128 = vadd.f32 %v37, %v127
  %v129 = vpop.f32.mrf.mxu0
  %v130 = vadd.f32 %v37, %v129
  %131 = vmatmul.bf16.gmra.mxu0 %v90
  %v132 = vpop.f32.mrf.mxu0
  %v133 = vadd.f32 %v37, %v132
  %v134 = vpop.f32.mrf.mxu0
  %v135 = vadd.f32 %v37, %v134
  %136 = vmatmul.bf16.gmra.mxu0 %v93
  %v137 = vpop.f32.mrf.mxu0
  %v138 = vadd.f32 %v37, %v137
  %v139 = vpop.f32.mrf.mxu0
  %v140 = vadd.f32 %v37, %v139
  %141 = vmatmul.bf16.gmra.mxu0 %v96
  %v142 = vpop.f32.mrf.mxu0
  %v143 = vadd.f32 %v37, %v142
  %v144 = vpop.f32.mrf.mxu0
  %v145 = vadd.f32 %v37, %v144
  %146 = vmatmul.bf16.gmra.mxu0 %v99
  %v147 = vpop.f32.mrf.mxu0
  %v148 = vadd.f32 %v37, %v147
  %v149 = vpop.f32.mrf.mxu0
  %v150 = vadd.f32 %v37, %v149
  %151 = vmatmul.bf16.gmra.mxu0 %v102
  %v152 = vpop.f32.mrf.mxu0
  %v153 = vadd.f32 %v37, %v152
  %v154 = vpop.f32.mrf.mxu0
  %v155 = vadd.f32 %v37, %v154
  %156 = vdwg.mxu0
  %v157 = vmax.f32 %v118, 0.0
  %v158 = vmax.f32 %v120, 0.0
  %v159 = vmax.f32 %v123, 0.0
  %v160 = vmax.f32 %v125, 0.0
  %v161 = vmax.f32 %v128, 0.0
  %v162 = vmax.f32 %v130, 0.0
  %v163 = vmax.f32 %v133, 0.0
  %v164 = vmax.f32 %v135, 0.0
  %v165 = vmax.f32 %v138, 0.0
  %v166 = vmax.f32 %v140, 0.0
  %v167 = vmax.f32 %v143, 0.0
  %v168 = vmax.f32 %v145, 0.0
  %v169 = vmax.f32 %v148, 0.0
  %v170 = vmax.f32 %v150, 0.0
  %v171 = vmax.f32 %v153, 0.0
  %v172 = vmax.f32 %v155, 0.0
  %v173 = vld [vmem:[%s3] sm:$0xf]
  %v174 = vld [vmem:[%s3 + $0x4] sm:$0xf]
  %v175 = vld [vmem:[%s3 + $0x8] sm:$0xf]
  %v176 = vld [vmem:[%s3 + $0xc] sm:$0xf]
  %v177 = vld [vmem:[%s3 + $0x10] sm:$0xf]
  %v178 = vld [vmem:[%s3 + $0x14] sm:$0xf]
  %v179 = vld [vmem:[%s3 + $0x18] sm:$0xf]
  %v180 = vld [vmem:[%s3 + $0x1c] sm:$0xf]
  %v181 = vld [vmem:[%s3 + $0x20] sm:$0xf]
  %v182 = vld [vmem:[%s3 + $0x24] sm:$0xf]
  %v183 = vld [vmem:[%s3 + $0x28] sm:$0xf]
  %v184 = vld [vmem:[%s3 + $0x2c] sm:$0xf]
  %v185 = vld [vmem:[%s3 + $0x30] sm:$0xf]
  %v186 = vld [vmem:[%s3 + $0x34] sm:$0xf]
  %v187 = vld [vmem:[%s3 + $0x38] sm:$0xf]
  %v188 = vld [vmem:[%s3 + $0x3c] sm:$0xf]
  %v189 = vunpack.c.l.bf16 %v173
  %v190 = vunpack.c.l.bf16 %v174
  %v191 = vunpack.c.l.bf16 %v175
  %v192 = vunpack.c.l.bf16 %v176
  %v193 = vunpack.c.l.bf16 %v177
  %v194 = vunpack.c.l.bf16 %v178
  %v195 = vunpack.c.l.bf16 %v179
  %v196 = vunpack.c.l.bf16 %v180
  %v197 = vunpack.c.l.bf16 %v181
  %v198 = vunpack.c.l.bf16 %v182
  %v199 = vunpack.c.l.bf16 %v183
  %v200 = vunpack.c.l.bf16 %v184
  %v201 = vunpack.c.l.bf16 %v185
  %v202 = vunpack.c.l.bf16 %v186
  %v203 = vunpack.c.l.bf16 %v187
  %v204 = vunpack.c.l.bf16 %v188
  %v205 = vadd.f32 %v157, %v189
  %v206 = vadd.f32 %v158, %v190
  %v207 = vadd.f32 %v159, %v191
  %v208 = vadd.f32 %v160, %v192
  %v209 = vadd.f32 %v161, %v193
  %v210 = vadd.f32 %v162, %v194
  %v211 = vadd.f32 %v163, %v195
  %v212 = vadd.f32 %v164, %v196
  %v213 = vadd.f32 %v165, %v197
  %v214 = vadd.f32 %v166, %v198
  %v215 = vadd.f32 %v167, %v199
  %v216 = vadd.f32 %v168, %v200
  %v217 = vadd.f32 %v169, %v201
  %v218 = vadd.f32 %v170, %v202
  %v219 = vadd.f32 %v171, %v203
  %v220 = vadd.f32 %v172, %v204
  %v221 = vpack.c.bf16 %v205, %v205
  %v222 = vpack.c.bf16 %v206, %v206
  %v223 = vpack.c.bf16 %v207, %v207
  %v224 = vpack.c.bf16 %v208, %v208
  %v225 = vpack.c.bf16 %v209, %v209
  %v226 = vpack.c.bf16 %v210, %v210
  %v227 = vpack.c.bf16 %v211, %v211
  %v228 = vpack.c.bf16 %v212, %v212
  %v229 = vpack.c.bf16 %v213, %v213
  %v230 = vpack.c.bf16 %v214, %v214
  %v231 = vpack.c.bf16 %v215, %v215
  %v232 = vpack.c.bf16 %v216, %v216
  %v233 = vpack.c.bf16 %v217, %v217
  %v234 = vpack.c.bf16 %v218, %v218
  %v235 = vpack.c.bf16 %v219, %v219
  %v236 = vpack.c.bf16 %v220, %v220
  %vm237 = vcmask 27648
  %238 = vst.msk [vmem:[%s4] sm:$0xf] %vm237, %v221
  %239 = vst.msk [vmem:[%s4 + $0x4] sm:$0xf] %vm237, %v222
  %240 = vst.msk [vmem:[%s4 + $0x8] sm:$0xf] %vm237, %v223
  %241 = vst.msk [vmem:[%s4 + $0xc] sm:$0xf] %vm237, %v224
  %242 = vst.msk [vmem:[%s4 + $0x10] sm:$0xf] %vm237, %v225
  %243 = vst.msk [vmem:[%s4 + $0x14] sm:$0xf] %vm237, %v226
  %244 = vst.msk [vmem:[%s4 + $0x18] sm:$0xf] %vm237, %v227
  %245 = vst.msk [vmem:[%s4 + $0x1c] sm:$0xf] %vm237, %v228
  %246 = vst.msk [vmem:[%s4 + $0x20] sm:$0xf] %vm237, %v229
  %247 = vst.msk [vmem:[%s4 + $0x24] sm:$0xf] %vm237, %v230
  %248 = vst.msk [vmem:[%s4 + $0x28] sm:$0xf] %vm237, %v231
  %249 = vst.msk [vmem:[%s4 + $0x2c] sm:$0xf] %vm237, %v232
  %250 = vst.msk [vmem:[%s4 + $0x30] sm:$0xf] %vm237, %v233
  %251 = vst.msk [vmem:[%s4 + $0x34] sm:$0xf] %vm237, %v234
  %252 = vst.msk [vmem:[%s4 + $0x38] sm:$0xf] %vm237, %v235
  %253 = vst.msk [vmem:[%s4 + $0x3c] sm:$0xf] %vm237, %v236
  // Predicated region
  $region18: #{fpn_forward.11} parent=0 // pred_check
    _
  $region19: #{fpn_forward.11} parent=0 // pred_check_branch
    %255 = sbr.rel (0) target = $region21
  $region20: #{fpn_forward.11} parent=0 // pred_region
    _
  $region21: #{fpn_forward.11} parent=0 // pred_fallthru
    _
  // Predicated region
  $region22: #{fpn_forward.11} parent=0 // pred_check
    _
  $region23: #{fpn_forward.11} parent=0 // pred_check_branch
    %257 = sbr.rel (0) target = $region25
  $region24: #{fpn_forward.11} parent=0 // pred_region
    _
  $region25: #{fpn_forward.11} parent=0 // pred_fallthru
    _

// kernel: fpn_forward.12
$region0: #{fpn_forward.12}
  #allocation0 [shape = 'u32[]', space=smem, size = 0x4, offset = 0x4, fixed_abs, tag = 'smem constant byte address 0x4 - core index']
  #allocation1 [shape = 'u32[72,128]{1,0:T(1,128)}', space=vmem, size = 0x9000, scoped, tag = 'internal scratch']
  %s0 = inlined_call_operand.vmem [shape: bf16[2,10,16,12], index: 0, kind: input, shape index: {}]
  %s1 = inlined_call_operand.vmem [shape: bf16[1,3,12,4], index: 1, kind: input, shape index: {}]
  %s2 = inlined_call_operand.vmem [shape: f32[1,4], index: 2, kind: input, shape index: {}]
  %s3 = inlined_call_operand.vmem [shape: bf16[2,8,16,4], index: 3, kind: output, shape index: {}]
  %s4 = sld [smem:[#allocation0]]
  $region45: #{fpn_forward.12} parent=0
    _
  %s6 = ssub.s32 1, %s4
  %s7 = scalar_select 0, %s6, %s4
  loop: start=0, step=1, limit=18
  $region2: #{fpn_forward.12} parent=0 // loop_pre_header
    _
  $region3: #{fpn_forward.12} parent=0 // loop_header
    %s9 = sphi 0, %s13
    %p10 = scmp.ge.s32.totalorder %s9, 18
    %s16 = sphi 0, %s28
    %s17 = sphi 0, %s24
    %s18 = sphi 0, %s16
    %s19 = sphi 0, %s17
    %s20 = sphi 0, %s18
    %s21 = sphi 0, %s19
    %s31 = sphi 0, %s33
    %s34 = sphi 0, %s31
    %s35 = sphi 0, %s34
    %s51 = sphi 0, %s35
    %s55 = sphi 0, %s55
    %s57 = sphi 0, %s55
    %s58 = sphi 0, %s57
    %s72 = sphi 0, %s58
    %s76 = sphi 0, %s76
    %s78 = sphi 0, %s76
    %s79 = sphi 0, %s78
    %s93 = sphi 0, %s79
    %s101 = sphi 0, %s103
    %s104 = sphi 0, %s101
    %s105 = sphi 0, %s104
    %s121 = sphi 0, %s105
  $region4: #{fpn_forward.12} parent=0 // loop_header_branch
    %12 = sbr.rel (%p10) target = $region8
  $region5: #{fpn_forward.12} parent=0 // loop_body
    %s14 = ssub.s32 %s9, 1
    %s15 = ssub.s32 %s9, 2
    %s22 = sadd.s32 1, %s17
    %p23 = scmp.ge.s32.totalorder %s22, 8
    %s24 = scalar_select %p23, 0, %s22
    %s25 = sadd.s32 1, %s16
    %s26 = scalar_select %p23, %s25, %s16
    %p27 = scmp.ge.s32.totalorder %s26, 2
    %s28 = scalar_select %p27, 0, %s26
    %s29 = ssub.s32 %s16, %s28
    %p30 = scmp.eq.s32.totalorder %s29, 0
    %s32 = sadd.s32 %s31, 1
    %s33 = scalar_select %p30, %s31, %s32
    %p36 = pneg %p30
    %p37 = scmp.eq.s32.totalorder %s9, 15
    %p38 = por %p36, %p37
    %p39 = scmp.ne.s32.totalorder %s31, %s34
    %p40 = scmp.eq.s32.totalorder %s9, 0
    %p41 = por %p39, %p40
    %p42 = scmp.ne.s32.totalorder %s31, %s34
    %p43 = scmp.eq.s32.totalorder %s14, 15
    %p44 = por %p42, %p43
    %p45 = scmp.ne.s32.totalorder %s34, %s35
    %p46 = scmp.eq.s32.totalorder %s14, 0
    %p47 = por %p45, %p46
    %p48 = scmp.ne.s32.totalorder %s34, %s35
    %p49 = scmp.eq.s32.totalorder %s15, 15
    %p50 = por %p48, %p49
    %p52 = scmp.ne.s32.totalorder %s35, %s51
    %p53 = scmp.eq.s32.totalorder %s15, 0
    %p54 = por %p52, %p53
    %s56 = sadd.s32 %s55, 1
    %p59 = scmp.eq.s32.totalorder %s9, 15
    %p60 = scmp.ne.s32.totalorder %s55, %s57
    %p61 = scmp.eq.s32.totalorder %s9, 0
    %p62 = por %p60, %p61
    %p63 = scmp.ne.s32.totalorder %s55, %s57
    %p64 = scmp.eq.s32.totalorder %s14, 15
    %p65 = por %p63, %p64
    %p66 = scmp.ne.s32.totalorder %s57, %s58
    %p67 = scmp.eq.s32.totalorder %s14, 0
    %p68 = por %p66, %p67
    %p69 = scmp.ne.s32.totalorder %s57, %s58
    %p70 = scmp.eq.s32.totalorder %s15, 15
    %p71 = por %p69, %p70
    %p73 = scmp.ne.s32.totalorder %s58, %s72
    %p74 = scmp.eq.s32.totalorder %s15, 0
    %p75 = por %p73, %p74
    %s77 = sadd.s32 %s76, 1
    %p80 = scmp.eq.s32.totalorder %s9, 15
    %p81 = scmp.ne.s32.totalorder %s76, %s78
    %p82 = scmp.eq.s32.totalorder %s9, 0
    %p83 = por %p81, %p82
    %p84 = scmp.ne.s32.totalorder %s76, %s78
    %p85 = scmp.eq.s32.totalorder %s14, 15
    %p86 = por %p84, %p85
    %p87 = scmp.ne.s32.totalorder %s78, %s79
    %p88 = scmp.eq.s32.totalorder %s14, 0
    %p89 = por %p87, %p88
    %p90 = scmp.ne.s32.totalorder %s78, %s79
    %p91 = scmp.eq.s32.totalorder %s15, 15
    %p92 = por %p90, %p91
    %p94 = scmp.ne.s32.totalorder %s79, %s93
    %p95 = scmp.eq.s32.totalorder %s15, 0
    %p96 = por %p94, %p95
    %s97 = ssub.s32 %s16, %s28
    %s98 = ssub.s32 %s17, %s24
    %s99 = sor.u32 %s97, %s98
    %p100 = scmp.eq.s32.totalorder %s99, 0
    %s102 = sadd.s32 %s101, 1
    %s103 = scalar_select %p100, %s101, %s102
    %p106 = pneg %p100
    %p107 = scmp.eq.s32.totalorder %s9, 15
    %p108 = por %p106, %p107
    %p109 = scmp.ne.s32.totalorder %s101, %s104
    %p110 = scmp.eq.s32.totalorder %s9, 0
    %p111 = por %p109, %p110
    %p112 = scmp.ne.s32.totalorder %s101, %s104
    %p113 = scmp.eq.s32.totalorder %s14, 15
    %p114 = por %p112, %p113
    %p115 = scmp.ne.s32.totalorder %s104, %s105
    %p116 = scmp.eq.s32.totalorder %s14, 0
    %p117 = por %p115, %p116
    %p118 = scmp.ne.s32.totalorder %s104, %s105
    %p119 = scmp.eq.s32.totalorder %s15, 15
    %p120 = por %p118, %p119
    %p122 = scmp.ne.s32.totalorder %s105, %s121
    %p123 = scmp.eq.s32.totalorder %s15, 0
    %p124 = por %p122, %p123
    %p125 = scmp.le.s32.totalorder 1, %s9
    %p126 = scmp.lt.s32.totalorder %s9, 17
    %p127 = pnand %p125, %p126
    %p128 = pneg %p127
    // Predicated region
    $region9: #{fpn_forward.12} parent=5 // pred_check
      _
    $region10: #{fpn_forward.12} parent=5 // pred_check_branch
      %130 = sbr.rel (%p127) target = $region12
    $region11: #{fpn_forward.12} parent=5 // pred_region
      %s131 = ssub.s32 %s9, 1
      // Predicated region
      $region13: #{fpn_forward.12} parent=11 // pred_check
        %p132 = pneg %p68
      $region14: #{fpn_forward.12} parent=11 // pred_check_branch
        %134 = sbr.rel (%p132) target = $region16
      $region15: #{fpn_forward.12} parent=11 // pred_region
        _
      $region16: #{fpn_forward.12} parent=11 // pred_fallthru
        _
      // Predicated region
      $region17: #{fpn_forward.12} parent=11 // pred_check
        %p135 = pneg %p89
      $region18: #{fpn_forward.12} parent=11 // pred_check_branch
        %137 = sbr.rel (%p135) target = $region20
      $region19: #{fpn_forward.12} parent=11 // pred_region
        _
      $region20: #{fpn_forward.12} parent=11 // pred_fallthru
        _
    $region12: #{fpn_forward.12} parent=5 // pred_fallthru
      _
    %p138 = scmp.lt.s32.totalorder %s9, 16
    // Predicated region
    $region21: #{fpn_forward.12} parent=5 // pred_check
      %p139 = pneg %p138
    $region22: #{fpn_forward.12} parent=5 // pred_check_branch
      %141 = sbr.rel (%p139) target = $region24
    $region23: #{fpn_forward.12} parent=5 // pred_region
      // Predicated region
      $region25: #{fpn_forward.12} parent=23 // pred_check
        %p142 = pneg %p41
      $region26: #{fpn_forward.12} parent=23 // pred_check_branch
        %144 = sbr.rel (%p142) target = $region28
      $region27: #{fpn_forward.12} parent=23 // pred_region
        %p145 = scmp.lt.s32.totalorder %s16, 1
        %s146 = scalar_select %p145, %s16, 1
        %s147 = smul.addr %s146, 20
        %s148 = smul.addr %s147, 4
        %s149 = scalar_lea.vmem %s0, %s148
      $region28: #{fpn_forward.12} parent=23 // pred_fallthru
        _
    $region24: #{fpn_forward.12} parent=5 // pred_fallthru
      _
    %p150 = scmp.le.s32.totalorder 1, %s9
    %p151 = scmp.lt.s32.totalorder %s9, 17
    %p152 = pnand %p150, %p151
    %p153 = pneg %p152
    // Predicated region
    $region29: #{fpn_forward.12} parent=5 // pred_check
      _
    $region30: #{fpn_forward.12} parent=5 // pred_check_branch
      %155 = sbr.rel (%p152) target = $region32
    $region31: #{fpn_forward.12} parent=5 // pred_region
      %s156 = ssub.s32 %s9, 1
      %p157 = scmp.lt.s32.totalorder %s18, 1
      %s158 = scalar_select %p157, %s18, 1
      %s159 = smul.addr %s158, 20
      %s160 = smul.addr %s159, 4
      %s161 = scalar_lea.vmem %s0, %s160
      %p162 = pneg %p47
      %p163 = pneg %p44
      %p164 = pneg %p68
      %p165 = pneg %p65
      %p166 = pneg %p89
      %p167 = pneg %p86
      %p168 = pneg %p117
      %p169 = pneg %p114
      %p170 = scmp.lt.s32.totalorder %s18, 1
      %s171 = scalar_select %p170, %s18, 1
      %p172 = scmp.lt.s32.totalorder %s19, 7
      %s173 = scalar_select %p172, %s19, 7
      %s174 = smul.addr %s173, 2
      %s175 = smul.addr %s171, 16
      %s176 = sadd.s32 %s174, %s175
      %s177 = smul.addr %s176, 4
      %s178 = scalar_lea.vmem %s3, %s177
      %p179 = scmp.lt.s32.totalorder %s18, 1
      %s180 = scalar_select %p179, %s18, 1
      %s181 = smul.addr %s180, 20
      %s182 = smul.addr %s181, 4
      %s183 = scalar_lea.vmem %s0, %s182
      %p184 = scmp.lt.s32.totalorder %s18, 1
      %s185 = scalar_select %p184, %s18, 1
      %p186 = scmp.lt.s32.totalorder %s19, 7
      %s187 = scalar_select %p186, %s19, 7
      %s188 = smul.addr %s187, 2
      %s189 = smul.addr %s185, 16
      %s190 = sadd.s32 %s188, %s189
      %s191 = smul.addr %s190, 4
      %s192 = scalar_lea.vmem %s3, %s191
      %s194 = smul.u32 %s19, 2
      %s195 = smul.addr %s194, 4
      %s196 = scalar_lea.vmem %s183, %s195
      %v197 = vld [vmem:[%s196] sm:$0xf]
      %v198 = vld [vmem:[%s196 + $0x4] sm:$0xf]
      %v199 = vld [vmem:[%s1] sm:$0xf]
      %v200 = vld [vmem:[%s1 + $0x4] sm:$0x3]
      %s201 = sadd.s32 %s19, 1
      %s202 = smul.u32 %s201, 2
      %s203 = smul.addr %s202, 4
      %s204 = scalar_lea.vmem %s183, %s203
      %v205 = vld [vmem:[%s204] sm:$0xf]
      %v206 = vld [vmem:[%s204 + $0x4] sm:$0xf]
      %s207 = scalar_lea.vmem %s1, 8
      %v208 = vld [vmem:[%s207] sm:$0xf]
      %v209 = vld [vmem:[%s207 + $0x4] sm:$0x3]
      %v212 = vunpack.c.l.b16 %v205
      %v213 = vunpack.c.l.b16 %v206
      %v214 = vpack.c.b16 %v213, %v212
      %v217 = vunpack.c.l.b16 %v208
      %v218 = vunpack.c.l.b16 %v209
      %v219 = vpack.c.b16 %v218, %v217
      %vm220 = vcmask 97280
      %v222 = vsel %vm220, %v214, 0
      %vm224 = vcmask 1045504
      %v226 = vsel %vm224, %v219, 0
      %228 = vmatpush.bf16.msra.mxu0 0
      %229 = vmatpush.bf16.msra.mxu0 0
      %230 = vmatpush.bf16.msra.mxu0 0
      %231 = vmatpush.bf16.msra.mxu0 0
      %232 = vmatpush.bf16.msra.mxu0 0
      %233 = vmatpush.bf16.msra.mxu0 0
      %234 = vmatpush.bf16.msra.mxu0 0
      %235 = vmatpush.bf16.msra.mxu0 %v226
      %236 = vmatmul.bf16.gmra.mxu0 %v222
      %v237 = vpop.f32.mrf.mxu0
      %v238 = vadd.f32 0.0, %v237
      %v239 = vpop.f32.mrf.mxu0
      %v240 = vadd.f32 0.0, %v239
      %241 = vdwg.mxu0
      %v244 = vunpack.c.l.b16 %v197
      %v245 = vunpack.c.l.b16 %v198
      %v246 = vpack.c.b16 %v245, %v244
      %v249 = vunpack.c.l.b16 %v199
      %v250 = vunpack.c.l.b16 %v200
      %v251 = vpack.c.b16 %v250, %v249
      %v253 = vsel %vm220, %v246, 0
      %v256 = vsel %vm224, %v251, 0
      %258 = vmatpush.bf16.msra.mxu0 0
      %259 = vmatpush.bf16.msra.mxu0 0
      %260 = vmatpush.bf16.msra.mxu0 0
      %261 = vmatpush.bf16.msra.mxu0 0
      %262 = vmatpush.bf16.msra.mxu0 0
      %263 = vmatpush.bf16.msra.mxu0 0
      %264 = vmatpush.bf16.msra.mxu0 0
      %265 = vmatpush.bf16.msra.mxu0 %v256
      %266 = vmatmul.bf16.gmra.mxu0 %v253
      %v267 = vpop.f32.mrf.mxu0
      %v268 = vadd.f32 %v238, %v267
      %v269 = vpop.f32.mrf.mxu0
      %v270 = vadd.f32 %v240, %v269
      %271 = vdwg.mxu0
      %s272 = sadd.s32 %s19, 2
      %s273 = smul.u32 %s272, 2
      %s274 = smul.addr %s273, 4
      %s275 = scalar_lea.vmem %s183, %s274
      %v276 = vld [vmem:[%s275] sm:$0xf]
      %v277 = vld [vmem:[%s275 + $0x4] sm:$0xf]
      %s278 = scalar_lea.vmem %s1, 16
      %v279 = vld [vmem:[%s278] sm:$0xf]
      %v280 = vld [vmem:[%s278 + $0x4] sm:$0x3]
      %v283 = vunpack.c.l.b16 %v276
      %v284 = vunpack.c.l.b16 %v277
      %v285 = vpack.c.b16 %v284, %v283
      %v288 = vunpack.c.l.b16 %v279
      %v289 = vunpack.c.l.b16 %v280
      %v290 = vpack.c.b16 %v289, %v288
      %v292 = vsel %vm220, %v285, 0
      %v295 = vsel %vm224, %v290, 0
      %297 = vmatpush.bf16.msra.mxu0 0
      %298 = vmatpush.bf16.msra.mxu0 0
      %299 = vmatpush.bf16.msra.mxu0 0
      %300 = vmatpush.bf16.msra.mxu0 0
      %301 = vmatpush.bf16.msra.mxu0 0
      %302 = vmatpush.bf16.msra.mxu0 0
      %303 = vmatpush.bf16.msra.mxu0 0
      %304 = vmatpush.bf16.msra.mxu0 %v295
      %305 = vmatmul.bf16.gmra.mxu0 %v292
      %v306 = vpop.f32.mrf.mxu0
      %v307 = vadd.f32 0.0, %v306
      %v308 = vpop.f32.mrf.mxu0
      %v309 = vadd.f32 0.0, %v308
      %310 = vdwg.mxu0
      %v311 = vadd.f32 %v268, %v307
      %v312 = vadd.f32 %v270, %v309
      %v313 = vld [vmem:[%s2] sm:$0x1]
      %v315 = vperm.slane %v313, 0
      %v317 = vadd.f32 %v311, %v315
      %v318 = vadd.f32 %v312, %v315
      %v319 = vmax.f32 %v317, 0.0
      %v320 = vmax.f32 %v318, 0.0
      %v321 = vpack.c.bf16 %v319, %v319
      %v322 = vpack.c.bf16 %v320, %v320
      %vm323 = vcmask 27648
      %324 = vst.msk [vmem:[%s192] sm:$0xf] %vm323, %v321
      %325 = vst.msk [vmem:[%s192 + $0x4] sm:$0xf] %vm323, %v322
      %p326 = scmp.lt.s32.totalorder %s18, 1
      %s327 = scalar_select %p326, %s18, 1
      %p328 = scmp.lt.s32.totalorder %s19, 7
      %s329 = scalar_select %p328, %s19, 7
      %s330 = smul.addr %s329, 2
      %s331 = smul.addr %s327, 16
      %s332 = sadd.s32 %s330, %s331
      %s333 = smul.addr %s332, 4
      %s334 = scalar_lea.vmem %s3, %s333
      // Predicated region
      $region33: #{fpn_forward.12} parent=31 // pred_check
        %p335 = pneg %p114
      $region34: #{fpn_forward.12} parent=31 // pred_check_branch
        %337 = sbr.rel (%p335) target = $region36
      $region35: #{fpn_forward.12} parent=31 // pred_region
        _
      $region36: #{fpn_forward.12} parent=31 // pred_fallthru
        _
    $region32: #{fpn_forward.12} parent=5 // pred_fallthru
      _
    %p338 = scmp.le.s32.totalorder 2, %s9
    // Predicated region
    $region37: #{fpn_forward.12} parent=5 // pred_check
      %p339 = pneg %p338
    $region38: #{fpn_forward.12} parent=5 // pred_check_branch
      %341 = sbr.rel (%p339) target = $region40
    $region39: #{fpn_forward.12} parent=5 // pred_region
      %s342 = ssub.s32 %s9, 2
      // Predicated region
      $region41: #{fpn_forward.12} parent=39 // pred_check
        %p343 = pneg %p120
      $region42: #{fpn_forward.12} parent=39 // pred_check_branch
        %345 = sbr.rel (%p343) target = $region44
      $region43: #{fpn_forward.12} parent=39 // pred_region
        %p346 = scmp.lt.s32.totalorder %s20, 1
        %s347 = scalar_select %p346, %s20, 1
        %p348 = scmp.lt.s32.totalorder %s21, 7
        %s349 = scalar_select %p348, %s21, 7
        %s350 = smul.addr %s349, 2
        %s351 = smul.addr %s347, 16
        %s352 = sadd.s32 %s350, %s351
        %s353 = smul.addr %s352, 4
        %s354 = scalar_lea.vmem %s3, %s353
      $region44: #{fpn_forward.12} parent=39 // pred_fallthru
        _
    $region40: #{fpn_forward.12} parent=5 // pred_fallthru
      _
  $region6: #{fpn_forward.12} parent=0 // loop_footer
    %s13 = sadd.s32 1, %s9
  $region7: #{fpn_forward.12} parent=0 // loop_footer_branch
    %8 = sbr.rel target = $region3
  $region8: #{fpn_forward.12} parent=0 // loop_exit
    _

// kernel: fpn_forward.13
$region0: #{fpn_forward.13}
  #allocation0 [shape = 'u32[]', space=smem, size = 0x4, offset = 0x4, fixed_abs, tag = 'smem constant byte address 0x4 - core index']
  #allocation1 [shape = 'u32[72,128]{1,0:T(1,128)}', space=vmem, size = 0x9000, scoped, tag = 'internal scratch']
  %s0 = inlined_call_operand.vmem [shape: bf16[512,4], index: 0, kind: input, shape index: {}]
  %s1 = inlined_call_operand.vmem [shape: bf16[4,4], index: 1, kind: input, shape index: {}]
  %s2 = inlined_call_operand.vmem [shape: f32[1,4], index: 2, kind: input, shape index: {}]
  %s3 = inlined_call_operand.vmem [shape: bf16[512,4], index: 3, kind: input, shape index: {}]
  %s4 = inlined_call_operand.vmem [shape: bf16[512,4], index: 4, kind: output, shape index: {}]
  %s5 = sld [smem:[#allocation0]]
  $region49: #{fpn_forward.13} parent=0
    _
  %s7 = ssub.s32 1, %s5
  %s8 = scalar_select 0, %s7, %s5
  loop: start=0, step=1, limit=4
  $region2: #{fpn_forward.13} parent=0 // loop_pre_header
    _
  $region3: #{fpn_forward.13} parent=0 // loop_header
    %s10 = sphi 0, %s14
    %p11 = scmp.ge.s32.totalorder %s10, 4
    %s20 = sphi 0, %s22
    %s23 = sphi 0, %s20
    %s24 = sphi 0, %s23
    %s40 = sphi 0, %s24
    %s44 = sphi 0, %s44
    %s46 = sphi 0, %s44
    %s47 = sphi 0, %s46
    %s61 = sphi 0, %s47
    %s65 = sphi 0, %s65
    %s67 = sphi 0, %s65
    %s68 = sphi 0, %s67
    %s82 = sphi 0, %s68
    %s88 = sphi 0, %s90
    %s91 = sphi 0, %s88
    %s92 = sphi 0, %s91
    %s108 = sphi 0, %s92
    %s114 = sphi 0, %s116
    %s117 = sphi 0, %s114
    %s118 = sphi 0, %s117
    %s134 = sphi 0, %s118
  $region4: #{fpn_forward.13} parent=0 // loop_header_branch
    %13 = sbr.rel (%p11) target = $region8
  $region5: #{fpn_forward.13} parent=0 // loop_body
    %s15 = ssub.s32 %s10, 1
    %s16 = ssub.s32 %s10, 2
    %s17 = sadd.s32 %s10, 1
    %s18 = ssub.s32 %s10, %s17
    %p19 = scmp.eq.s32.totalorder %s18, 0
    %s21 = sadd.s32 %s20, 1
    %s22 = scalar_select %p19, %s20, %s21
    %p25 = pneg %p19
    %p26 = scmp.eq.s32.totalorder %s10, 1
    %p27 = por %p25, %p26
    %p28 = scmp.ne.s32.totalorder %s20, %s23
    %p29 = scmp.eq.s32.totalorder %s10, 0
    %p30 = por %p28, %p29
    %p31 = scmp.ne.s32.totalorder %s20, %s23
    %p32 = scmp.eq.s32.totalorder %s15, 1
    %p33 = por %p31, %p32
    %p34 = scmp.ne.s32.totalorder %s23, %s24
    %p35 = scmp.eq.s32.totalorder %s15, 0
    %p36 = por %p34, %p35
    %p37 = scmp.ne.s32.totalorder %s23, %s24
    %p38 = scmp.eq.s32.totalorder %s16, 1
    %p39 = por %p37, %p38
    %p41 = scmp.ne.s32.totalorder %s24, %s40
    %p42 = scmp.eq.s32.totalorder %s16, 0
    %p43 = por %p41, %p42
    %s45 = sadd.s32 %s44, 1
    %p48 = scmp.eq.s32.totalorder %s10, 1
    %p49 = scmp.ne.s32.totalorder %s44, %s46
    %p50 = scmp.eq.s32.totalorder %s10, 0
    %p51 = por %p49, %p50
    %p52 = scmp.ne.s32.totalorder %s44, %s46
    %p53 = scmp.eq.s32.totalorder %s15, 1
    %p54 = por %p52, %p53
    %p55 = scmp.ne.s32.totalorder %s46, %s47
    %p56 = scmp.eq.s32.totalorder %s15, 0
    %p57 = por %p55, %p56
    %p58 = scmp.ne.s32.totalorder %s46, %s47
    %p59 = scmp.eq.s32.totalorder %s16, 1
    %p60 = por %p58, %p59
    %p62 = scmp.ne.s32.totalorder %s47, %s61
    %p63 = scmp.eq.s32.totalorder %s16, 0
    %p64 = por %p62, %p63
    %s66 = sadd.s32 %s65, 1
    %p69 = scmp.eq.s32.totalorder %s10, 1
    %p70 = scmp.ne.s32.totalorder %s65, %s67
    %p71 = scmp.eq.s32.totalorder %s10, 0
    %p72 = por %p70, %p71
    %p73 = scmp.ne.s32.totalorder %s65, %s67
    %p74 = scmp.eq.s32.totalorder %s15, 1
    %p75 = por %p73, %p74
    %p76 = scmp.ne.s32.totalorder %s67, %s68
    %p77 = scmp.eq.s32.totalorder %s15, 0
    %p78 = por %p76, %p77
    %p79 = scmp.ne.s32.totalorder %s67, %s68
    %p80 = scmp.eq.s32.totalorder %s16, 1
    %p81 = por %p79, %p80
    %p83 = scmp.ne.s32.totalorder %s68, %s82
    %p84 = scmp.eq.s32.totalorder %s16, 0
    %p85 = por %p83, %p84
    %s86 = ssub.s32 %s10, %s17
    %p87 = scmp.eq.s32.totalorder %s86, 0
    %s89 = sadd.s32 %s88, 1
    %s90 = scalar_select %p87, %s88, %s89
    %p93 = pneg %p87
    %p94 = scmp.eq.s32.totalorder %s10, 1
    %p95 = por %p93, %p94
    %p96 = scmp.ne.s32.totalorder %s88, %s91
    %p97 = scmp.eq.s32.totalorder %s10, 0
    %p98 = por %p96, %p97
    %p99 = scmp.ne.s32.totalorder %s88, %s91
    %p100 = scmp.eq.s32.totalorder %s15, 1
    %p101 = por %p99, %p100
    %p102 = scmp.ne.s32.totalorder %s91, %s92
    %p103 = scmp.eq.s32.totalorder %s15, 0
    %p104 = por %p102, %p103
    %p105 = scmp.ne.s32.totalorder %s91, %s92
    %p106 = scmp.eq.s32.totalorder %s16, 1
    %p107 = por %p105, %p106
    %p109 = scmp.ne.s32.totalorder %s92, %s108
    %p110 = scmp.eq.s32.totalorder %s16, 0
    %p111 = por %p109, %p110
    %s112 = ssub.s32 %s10, %s17
    %p113 = scmp.eq.s32.totalorder %s112, 0
    %s115 = sadd.s32 %s114, 1
    %s116 = scalar_select %p113, %s114, %s115
    %p119 = pneg %p113
    %p120 = scmp.eq.s32.totalorder %s10, 1
    %p121 = por %p119, %p120
    %p122 = scmp.ne.s32.totalorder %s114, %s117
    %p123 = scmp.eq.s32.totalorder %s10, 0
    %p124 = por %p122, %p123
    %p125 = scmp.ne.s32.totalorder %s114, %s117
    %p126 = scmp.eq.s32.totalorder %s15, 1
    %p127 = por %p125, %p126
    %p128 = scmp.ne.s32.totalorder %s117, %s118
    %p129 = scmp.eq.s32.totalorder %s15, 0
    %p130 = por %p128, %p129
    %p131 = scmp.ne.s32.totalorder %s117, %s118
    %p132 = scmp.eq.s32.totalorder %s16, 1
    %p133 = por %p131, %p132
    %p135 = scmp.ne.s32.totalorder %s118, %s134
    %p136 = scmp.eq.s32.totalorder %s16, 0
    %p137 = por %p135, %p136
    %p138 = scmp.le.s32.totalorder 1, %s10
    %p139 = scmp.lt.s32.totalorder %s10, 3
    %p140 = pnand %p138, %p139
    %p141 = pneg %p140
    // Predicated region
    $region9: #{fpn_forward.13} parent=5 // pred_check
      _
    $region10: #{fpn_forward.13} parent=5 // pred_check_branch
      %143 = sbr.rel (%p140) target = $region12
    $region11: #{fpn_forward.13} parent=5 // pred_region
      %s144 = ssub.s32 %s10, 1
      // Predicated region
      $region13: #{fpn_forward.13} parent=11 // pred_check
        %p145 = pneg %p57
      $region14: #{fpn_forward.13} parent=11 // pred_check_branch
        %147 = sbr.rel (%p145) target = $region16
      $region15: #{fpn_forward.13} parent=11 // pred_region
        _
      $region16: #{fpn_forward.13} parent=11 // pred_fallthru
        _
      // Predicated region
      $region17: #{fpn_forward.13} parent=11 // pred_check
        %p148 = pneg %p78
      $region18: #{fpn_forward.13} parent=11 // pred_check_branch
        %150 = sbr.rel (%p148) target = $region20
      $region19: #{fpn_forward.13} parent=11 // pred_region
        _
      $region20: #{fpn_forward.13} parent=11 // pred_fallthru
        _
    $region12: #{fpn_forward.13} parent=5 // pred_fallthru
      _
    %p151 = scmp.lt.s32.totalorder %s10, 2
    // Predicated region
    $region21: #{fpn_forward.13} parent=5 // pred_check
      %p152 = pneg %p151
    $region22: #{fpn_forward.13} parent=5 // pred_check_branch
      %154 = sbr.rel (%p152) target = $region24
    $region23: #{fpn_forward.13} parent=5 // pred_region
      // Predicated region
      $region25: #{fpn_forward.13} parent=23 // pred_check
        %p155 = pneg %p30
      $region26: #{fpn_forward.13} parent=23 // pred_check_branch
        %157 = sbr.rel (%p155) target = $region28
      $region27: #{fpn_forward.13} parent=23 // pred_region
        %s158 = smul.u32 32, %s10
        %p159 = scmp.lt.s32.totalorder %s158, 63
        %s160 = scalar_select %p159, %s158, 63
        %s161 = smul.addr %s160, 4
        %s162 = scalar_lea.vmem %s0, %s161
        %s163 = smul.u32 32, %s10
      $region28: #{fpn_forward.13} parent=23 // pred_fallthru
        _
      // Predicated region
      $region29: #{fpn_forward.13} parent=23 // pred_check
        %p164 = pneg %p98
      $region30: #{fpn_forward.13} parent=23 // pred_check_branch
        %166 = sbr.rel (%p164) target = $region32
      $region31: #{fpn_forward.13} parent=23 // pred_region
        %s167 = smul.u32 32, %s10
        %p168 = scmp.lt.s32.totalorder %s167, 63
        %s169 = scalar_select %p168, %s167, 63
        %s170 = smul.addr %s169, 4
        %s171 = scalar_lea.vmem %s3, %s170
        %s172 = smul.u32 32, %s10
      $region32: #{fpn_forward.13} parent=23 // pred_fallthru
        _
    $region24: #{fpn_forward.13} parent=5 // pred_fallthru
      _
    %p173 = scmp.le.s32.totalorder 1, %s10
    %p174 = scmp.lt.s32.totalorder %s10, 3
    %p175 = pnand %p173, %p174
    %p176 = pneg %p175
    // Predicated region
    $region33: #{fpn_forward.13} parent=5 // pred_check
      _
    $region34: #{fpn_forward.13} parent=5 // pred_check_branch
      %178 = sbr.rel (%p175) target = $region36
    $region35: #{fpn_forward.13} parent=5 // pred_region
      %s179 = ssub.s32 %s10, 1
      %s180 = smul.u32 32, %s15
      %p181 = scmp.lt.s32.totalorder %s180, 63
      %s182 = scalar_select %p181, %s180, 63
      %s183 = smul.addr %s182, 4
      %s184 = scalar_lea.vmem %s0, %s183
      %p185 = pneg %p36
      %p186 = pneg %p33
      %p187 = pneg %p57
      %p188 = pneg %p54
      %p189 = pneg %p78
      %p190 = pneg %p75
      %s191 = smul.u32 32, %s15
      %p192 = scmp.lt.s32.totalorder %s191, 63
      %s193 = scalar_select %p192, %s191, 63
      %s194 = smul.addr %s193, 4
      %s195 = scalar_lea.vmem %s3, %s194
      %p196 = pneg %p104
      %p197 = pneg %p101
      %p198 = pneg %p130
      %p199 = pneg %p127
      %s200 = smul.u32 32, %s15
      %p201 = scmp.lt.s32.totalorder %s200, 63
      %s202 = scalar_select %p201, %s200, 63
      %s203 = smul.addr %s202, 4
      %s204 = scalar_lea.vmem %s4, %s203
      %s205 = smul.u32 32, %s15
      %p206 = scmp.lt.s32.totalorder %s205, 63
      %s207 = scalar_select %p206, %s205, 63
      %s208 = smul.addr %s207, 4
      %s209 = scalar_lea.vmem %s0, %s208
      %s210 = smul.u32 32, %s15
      %s211 = smul.u32 32, %s15
      %p212 = scmp.lt.s32.totalorder %s211, 63
      %s213 = scalar_select %p212, %s211, 63
      %s214 = smul.addr %s213, 4
      %s215 = scalar_lea.vmem %s3, %s214
      %s216 = smul.u32 32, %s15
      %s217 = smul.u32 32, %s15
      %p218 = scmp.lt.s32.totalorder %s217, 63
      %s219 = scalar_select %p218, %s217, 63
      %s220 = smul.addr %s219, 4
      %s221 = scalar_lea.vmem %s4, %s220
      %s222 = smul.u32 32, %s15
      %v224 = vld [vmem:[%s209] sm:$0xf]
      %v225 = vld [vmem:[%s209 + $0x4] sm:$0xf]
      %v226 = vld [vmem:[%s209 + $0x8] sm:$0xf]
      %v227 = vld [vmem:[%s209 + $0xc] sm:$0xf]
      %v228 = vld [vmem:[%s209 + $0x10] sm:$0xf]
      %v229 = vld [vmem:[%s209 + $0x14] sm:$0xf]
      %v230 = vld [vmem:[%s209 + $0x18] sm:$0xf]
      %v231 = vld [vmem:[%s209 + $0x1c] sm:$0xf]
      %v232 = vld [vmem:[%s209 + $0x20] sm:$0xf]
      %v233 = vld [vmem:[%s209 + $0x24] sm:$0xf]
      %v234 = vld [vmem:[%s209 + $0x28] sm:$0xf]
      %v235 = vld [vmem:[%s209 + $0x2c] sm:$0xf]
      %v236 = vld [vmem:[%s209 + $0x30] sm:$0xf]
      %v237 = vld [vmem:[%s209 + $0x34] sm:$0xf]
      %v238 = vld [vmem:[%s209 + $0x38] sm:$0xf]
      %v239 = vld [vmem:[%s209 + $0x3c] sm:$0xf]
      %v240 = vld [vmem:[%s209 + $0x40] sm:$0xf]
      %v241 = vld [vmem:[%s209 + $0x44] sm:$0xf]
      %v242 = vld [vmem:[%s209 + $0x48] sm:$0xf]
      %v243 = vld [vmem:[%s209 + $0x4c] sm:$0xf]
      %v244 = vld [vmem:[%s209 + $0x50] sm:$0xf]
      %v245 = vld [vmem:[%s209 + $0x54] sm:$0xf]
      %v246 = vld [vmem:[%s209 + $0x58] sm:$0xf]
      %v247 = vld [vmem:[%s209 + $0x5c] sm:$0xf]
      %v248 = vld [vmem:[%s209 + $0x60] sm:$0xf]
      %v249 = vld [vmem:[%s209 + $0x64] sm:$0xf]
      %v250 = vld [vmem:[%s209 + $0x68] sm:$0xf]
      %v251 = vld [vmem:[%s209 + $0x6c] sm:$0xf]
      %v252 = vld [vmem:[%s209 + $0x70] sm:$0xf]
      %v253 = vld [vmem:[%s209 + $0x74] sm:$0xf]
      %v254 = vld [vmem:[%s209 + $0x78] sm:$0xf]
      %v255 = vld [vmem:[%s209 + $0x7c] sm:$0xf]
      %v256 = vld [vmem:[%s1] sm:$0x3]
      %v257 = vld [vmem:[%s2] sm:$0x1]
      %v259 = vperm.slane %v257, 0
      %v293 = vunpack.c.l.b16 %v224
      %v294 = vunpack.c.l.b16 %v225
      %v295 = vunpack.c.l.b16 %v226
      %v296 = vunpack.c.l.b16 %v227
      %v297 = vunpack.c.l.b16 %v228
      %v298 = vunpack.c.l.b16 %v229
      %v299 = vunpack.c.l.b16 %v230
      %v300 = vunpack.c.l.b16 %v231
      %v301 = vunpack.c.l.b16 %v232
      %v302 = vunpack.c.l.b16 %v233
      %v303 = vunpack.c.l.b16 %v234
      %v304 = vunpack.c.l.b16 %v235
      %v305 = vunpack.c.l.b16 %v236
      %v306 = vunpack.c.l.b16 %v237
      %v307 = vunpack.c.l.b16 %v238
      %v308 = vunpack.c.l.b16 %v239
      %v309 = vunpack.c.l.b16 %v240
      %v310 = vunpack.c.l.b16 %v241
      %v311 = vunpack.c.l.b16 %v242
      %v312 = vunpack.c.l.b16 %v243
      %v313 = vunpack.c.l.b16 %v244
      %v314 = vunpack.c.l.b16 %v245
      %v315 = vunpack.c.l.b16 %v246
      %v316 = vunpack.c.l.b16 %v247
      %v317 = vunpack.c.l.b16 %v248
      %v318 = vunpack.c.l.b16 %v249
      %v319 = vunpack.c.l.b16 %v250
      %v320 = vunpack.c.l.b16 %v251
      %v321 = vunpack.c.l.b16 %v252
      %v322 = vunpack.c.l.b16 %v253
      %v323 = vunpack.c.l.b16 %v254
      %v324 = vunpack.c.l.b16 %v255
      %v325 = vpack.c.b16 %v294, %v293
      %v326 = vpack.c.b16 %v296, %v295
      %v327 = vpack.c.b16 %v298, %v297
      %v328 = vpack.c.b16 %v300, %v299
      %v329 = vpack.c.b16 %v302, %v301
      %v330 = vpack.c.b16 %v304, %v303
      %v331 = vpack.c.b16 %v306, %v305
      %v332 = vpack.c.b16 %v308, %v307
      %v333 = vpack.c.b16 %v310, %v309
      %v334 = vpack.c.b16 %v312, %v311
      %v335 = vpack.c.b16 %v314, %v313
      %v336 = vpack.c.b16 %v316, %v315
      %v337 = vpack.c.b16 %v318, %v317
      %v338 = vpack.c.b16 %v320, %v319
      %v339 = vpack.c.b16 %v322, %v321
      %v340 = vpack.c.b16 %v324, %v323
      %vm341 = vcmask 31744
      %v343 = vsel %vm341, %v325, 0
      %v346 = vsel %vm341, %v326, 0
      %v349 = vsel %vm341, %v327, 0
      %v352 = vsel %vm341, %v328, 0
      %v355 = vsel %vm341, %v329, 0
      %v358 = vsel %vm341, %v330, 0
      %v361 = vsel %vm341, %v331, 0
      %v364 = vsel %vm341, %v332, 0
      %v367 = vsel %vm341, %v333, 0
      %v370 = vsel %vm341, %v334, 0
      %v373 = vsel %vm341, %v335, 0
      %v376 = vsel %vm341, %v336, 0
      %v379 = vsel %vm341, %v337, 0
      %v382 = vsel %vm341, %v338, 0
      %v385 = vsel %vm341, %v339, 0
      %v388 = vsel %vm341, %v340, 0
      %vm390 = vcmask 1041408
      %v392 = vsel %vm390, %v256, 0
      %394 = vmatpush.bf16.msra.mxu0 0
      %395 = vmatpush.bf16.msra.mxu0 0
      %396 = vmatpush.bf16.msra.mxu0 0
      %397 = vmatpush.bf16.msra.mxu0 0
      %398 = vmatpush.bf16.msra.mxu0 0
      %399 = vmatpush.bf16.msra.mxu0 0
      %400 = vmatpush.bf16.msra.mxu0 0
      %401 = vmatpush.bf16.msra.mxu0 %v392
      %402 = vmatmul.bf16.gmra.mxu0 %v343
      %v403 = vpop.f32.mrf.mxu0
      %v404 = vadd.f32 %v259, %v403
      %v405 = vpop.f32.mrf.mxu0
      %v406 = vadd.f32 %v259, %v405
      %407 = vmatmul.bf16.gmra.mxu0 %v346
      %v408 = vpop.f32.mrf.mxu0
      %v409 = vadd.f32 %v259, %v408
      %v410 = vpop.f32.mrf.mxu0
      %v411 = vadd.f32 %v259, %v410
      %412 = vmatmul.bf16.gmra.mxu0 %v349
      %v413 = vpop.f32.mrf.mxu0
      %v414 = vadd.f32 %v259, %v413
      %v415 = vpop.f32.mrf.mxu0
      %v416 = vadd.f32 %v259, %v415
      %417 = vmatmul.bf16.gmra.mxu0 %v352
      %v418 = vpop.f32.mrf.mxu0
      %v419 = vadd.f32 %v259, %v418
      %v420 = vpop.f32.mrf.mxu0
      %v421 = vadd.f32 %v259, %v420
      %422 = vmatmul.bf16.gmra.mxu0 %v355
      %v423 = vpop.f32.mrf.mxu0
      %v424 = vadd.f32 %v259, %v423
      %v425 = vpop.f32.mrf.mxu0
      %v426 = vadd.f32 %v259, %v425
      %427 = vmatmul.bf16.gmra.mxu0 %v358
      %v428 = vpop.f32.mrf.mxu0
      %v429 = vadd.f32 %v259, %v428
      %v430 = vpop.f32.mrf.mxu0
      %v431 = vadd.f32 %v259, %v430
      %432 = vmatmul.bf16.gmra.mxu0 %v361
      %v433 = vpop.f32.mrf.mxu0
      %v434 = vadd.f32 %v259, %v433
      %v435 = vpop.f32.mrf.mxu0
      %v436 = vadd.f32 %v259, %v435
      %437 = vmatmul.bf16.gmra.mxu0 %v364
      %v438 = vpop.f32.mrf.mxu0
      %v439 = vadd.f32 %v259, %v438
      %v440 = vpop.f32.mrf.mxu0
      %v441 = vadd.f32 %v259, %v440
      %442 = vmatmul.bf16.gmra.mxu0 %v367
      %v443 = vpop.f32.mrf.mxu0
      %v444 = vadd.f32 %v259, %v443
      %v445 = vpop.f32.mrf.mxu0
      %v446 = vadd.f32 %v259, %v445
      %447 = vmatmul.bf16.gmra.mxu0 %v370
      %v448 = vpop.f32.mrf.mxu0
      %v449 = vadd.f32 %v259, %v448
      %v450 = vpop.f32.mrf.mxu0
      %v451 = vadd.f32 %v259, %v450
      %452 = vmatmul.bf16.gmra.mxu0 %v373
      %v453 = vpop.f32.mrf.mxu0
      %v454 = vadd.f32 %v259, %v453
      %v455 = vpop.f32.mrf.mxu0
      %v456 = vadd.f32 %v259, %v455
      %457 = vmatmul.bf16.gmra.mxu0 %v376
      %v458 = vpop.f32.mrf.mxu0
      %v459 = vadd.f32 %v259, %v458
      %v460 = vpop.f32.mrf.mxu0
      %v461 = vadd.f32 %v259, %v460
      %462 = vmatmul.bf16.gmra.mxu0 %v379
      %v463 = vpop.f32.mrf.mxu0
      %v464 = vadd.f32 %v259, %v463
      %v465 = vpop.f32.mrf.mxu0
      %v466 = vadd.f32 %v259, %v465
      %467 = vmatmul.bf16.gmra.mxu0 %v382
      %v468 = vpop.f32.mrf.mxu0
      %v469 = vadd.f32 %v259, %v468
      %v470 = vpop.f32.mrf.mxu0
      %v471 = vadd.f32 %v259, %v470
      %472 = vmatmul.bf16.gmra.mxu0 %v385
      %v473 = vpop.f32.mrf.mxu0
      %v474 = vadd.f32 %v259, %v473
      %v475 = vpop.f32.mrf.mxu0
      %v476 = vadd.f32 %v259, %v475
      %477 = vmatmul.bf16.gmra.mxu0 %v388
      %v478 = vpop.f32.mrf.mxu0
      %v479 = vadd.f32 %v259, %v478
      %v480 = vpop.f32.mrf.mxu0
      %v481 = vadd.f32 %v259, %v480
      %482 = vdwg.mxu0
      %v483 = vmax.f32 %v404, 0.0
      %v484 = vmax.f32 %v406, 0.0
      %v485 = vmax.f32 %v409, 0.0
      %v486 = vmax.f32 %v411, 0.0
      %v487 = vmax.f32 %v414, 0.0
      %v488 = vmax.f32 %v416, 0.0
      %v489 = vmax.f32 %v419, 0.0
      %v490 = vmax.f32 %v421, 0.0
      %v491 = vmax.f32 %v424, 0.0
      %v492 = vmax.f32 %v426, 0.0
      %v493 = vmax.f32 %v429, 0.0
      %v494 = vmax.f32 %v431, 0.0
      %v495 = vmax.f32 %v434, 0.0
      %v496 = vmax.f32 %v436, 0.0
      %v497 = vmax.f32 %v439, 0.0
      %v498 = vmax.f32 %v441, 0.0
      %v499 = vmax.f32 %v444, 0.0
      %v500 = vmax.f32 %v446, 0.0
      %v501 = vmax.f32 %v449, 0.0
      %v502 = vmax.f32 %v451, 0.0
      %v503 = vmax.f32 %v454, 0.0
      %v504 = vmax.f32 %v456, 0.0
      %v505 = vmax.f32 %v459, 0.0
      %v506 = vmax.f32 %v461, 0.0
      %v507 = vmax.f32 %v464, 0.0
      %v508 = vmax.f32 %v466, 0.0
      %v509 = vmax.f32 %v469, 0.0
      %v510 = vmax.f32 %v471, 0.0
      %v511 = vmax.f32 %v474, 0.0
      %v512 = vmax.f32 %v476, 0.0
      %v513 = vmax.f32 %v479, 0.0
      %v514 = vmax.f32 %v481, 0.0
      %v515 = vld [vmem:[%s215] sm:$0xf]
      %v516 = vld [vmem:[%s215 + $0x4] sm:$0xf]
      %v517 = vld [vmem:[%s215 + $0x8] sm:$0xf]
      %v518 = vld [vmem:[%s215 + $0xc] sm:$0xf]
      %v519 = vld [vmem:[%s215 + $0x10] sm:$0xf]
      %v520 = vld [vmem:[%s215 + $0x14] sm:$0xf]
      %v521 = vld [vmem:[%s215 + $0x18] sm:$0xf]
      %v522 = vld [vmem:[%s215 + $0x1c] sm:$0xf]
      %v523 = vld [vmem:[%s215 + $0x20] sm:$0xf]
      %v524 = vld [vmem:[%s215 + $0x24] sm:$0xf]
      %v525 = vld [vmem:[%s215 + $0x28] sm:$0xf]
      %v526 = vld [vmem:[%s215 + $0x2c] sm:$0xf]
      %v527 = vld [vmem:[%s215 + $0x30] sm:$0xf]
      %v528 = vld [vmem:[%s215 + $0x34] sm:$0xf]
      %v529 = vld [vmem:[%s215 + $0x38] sm:$0xf]
      %v530 = vld [vmem:[%s215 + $0x3c] sm:$0xf]
      %v531 = vld [vmem:[%s215 + $0x40] sm:$0xf]
      %v532 = vld [vmem:[%s215 + $0x44] sm:$0xf]
      %v533 = vld [vmem:[%s215 + $0x48] sm:$0xf]
      %v534 = vld [vmem:[%s215 + $0x4c] sm:$0xf]
      %v535 = vld [vmem:[%s215 + $0x50] sm:$0xf]
      %v536 = vld [vmem:[%s215 + $0x54] sm:$0xf]
      %v537 = vld [vmem:[%s215 + $0x58] sm:$0xf]
      %v538 = vld [vmem:[%s215 + $0x5c] sm:$0xf]
      %v539 = vld [vmem:[%s215 + $0x60] sm:$0xf]
      %v540 = vld [vmem:[%s215 + $0x64] sm:$0xf]
      %v541 = vld [vmem:[%s215 + $0x68] sm:$0xf]
      %v542 = vld [vmem:[%s215 + $0x6c] sm:$0xf]
      %v543 = vld [vmem:[%s215 + $0x70] sm:$0xf]
      %v544 = vld [vmem:[%s215 + $0x74] sm:$0xf]
      %v545 = vld [vmem:[%s215 + $0x78] sm:$0xf]
      %v546 = vld [vmem:[%s215 + $0x7c] sm:$0xf]
      %v547 = vunpack.c.l.bf16 %v515
      %v548 = vunpack.c.l.bf16 %v516
      %v549 = vunpack.c.l.bf16 %v517
      %v550 = vunpack.c.l.bf16 %v518
      %v551 = vunpack.c.l.bf16 %v519
      %v552 = vunpack.c.l.bf16 %v520
      %v553 = vunpack.c.l.bf16 %v521
      %v554 = vunpack.c.l.bf16 %v522
      %v555 = vunpack.c.l.bf16 %v523
      %v556 = vunpack.c.l.bf16 %v524
      %v557 = vunpack.c.l.bf16 %v525
      %v558 = vunpack.c.l.bf16 %v526
      %v559 = vunpack.c.l.bf16 %v527
      %v560 = vunpack.c.l.bf16 %v528
      %v561 = vunpack.c.l.bf16 %v529
      %v562 = vunpack.c.l.bf16 %v530
      %v563 = vunpack.c.l.bf16 %v531
      %v564 = vunpack.c.l.bf16 %v532
      %v565 = vunpack.c.l.bf16 %v533
      %v566 = vunpack.c.l.bf16 %v534
      %v567 = vunpack.c.l.bf16 %v535
      %v568 = vunpack.c.l.bf16 %v536
      %v569 = vunpack.c.l.bf16 %v537
      %v570 = vunpack.c.l.bf16 %v538
      %v571 = vunpack.c.l.bf16 %v539
      %v572 = vunpack.c.l.bf16 %v540
      %v573 = vunpack.c.l.bf16 %v541
      %v574 = vunpack.c.l.bf16 %v542
      %v575 = vunpack.c.l.bf16 %v543
      %v576 = vunpack.c.l.bf16 %v544
      %v577 = vunpack.c.l.bf16 %v545
      %v578 = vunpack.c.l.bf16 %v546
      %v579 = vadd.f32 %v483, %v547
      %v580 = vadd.f32 %v484, %v548
      %v581 = vadd.f32 %v485, %v549
      %v582 = vadd.f32 %v486, %v550
      %v583 = vadd.f32 %v487, %v551
      %v584 = vadd.f32 %v488, %v552
      %v585 = vadd.f32 %v489, %v553
      %v586 = vadd.f32 %v490, %v554
      %v587 = vadd.f32 %v491, %v555
      %v588 = vadd.f32 %v492, %v556
      %v589 = vadd.f32 %v493, %v557
      %v590 = vadd.f32 %v494, %v558
      %v591 = vadd.f32 %v495, %v559
      %v592 = vadd.f32 %v496, %v560
      %v593 = vadd.f32 %v497, %v561
      %v594 = vadd.f32 %v498, %v562
      %v595 = vadd.f32 %v499, %v563
      %v596 = vadd.f32 %v500, %v564
      %v597 = vadd.f32 %v501, %v565
      %v598 = vadd.f32 %v502, %v566
      %v599 = vadd.f32 %v503, %v567
      %v600 = vadd.f32 %v504, %v568
      %v601 = vadd.f32 %v505, %v569
      %v602 = vadd.f32 %v506, %v570
      %v603 = vadd.f32 %v507, %v571
      %v604 = vadd.f32 %v508, %v572
      %v605 = vadd.f32 %v509, %v573
      %v606 = vadd.f32 %v510, %v574
      %v607 = vadd.f32 %v511, %v575
      %v608 = vadd.f32 %v512, %v576
      %v609 = vadd.f32 %v513, %v577
      %v610 = vadd.f32 %v514, %v578
      %v611 = vpack.c.bf16 %v579, %v579
      %v612 = vpack.c.bf16 %v580, %v580
      %v613 = vpack.c.bf16 %v581, %v581
      %v614 = vpack.c.bf16 %v582, %v582
      %v615 = vpack.c.bf16 %v583, %v583
      %v616 = vpack.c.bf16 %v584, %v584
      %v617 = vpack.c.bf16 %v585, %v585
      %v618 = vpack.c.bf16 %v586, %v586
      %v619 = vpack.c.bf16 %v587, %v587
      %v620 = vpack.c.bf16 %v588, %v588
      %v621 = vpack.c.bf16 %v589, %v589
      %v622 = vpack.c.bf16 %v590, %v590
      %v623 = vpack.c.bf16 %v591, %v591
      %v624 = vpack.c.bf16 %v592, %v592
      %v625 = vpack.c.bf16 %v593, %v593
      %v626 = vpack.c.bf16 %v594, %v594
      %v627 = vpack.c.bf16 %v595, %v595
      %v628 = vpack.c.bf16 %v596, %v596
      %v629 = vpack.c.bf16 %v597, %v597
      %v630 = vpack.c.bf16 %v598, %v598
      %v631 = vpack.c.bf16 %v599, %v599
      %v632 = vpack.c.bf16 %v600, %v600
      %v633 = vpack.c.bf16 %v601, %v601
      %v634 = vpack.c.bf16 %v602, %v602
      %v635 = vpack.c.bf16 %v603, %v603
      %v636 = vpack.c.bf16 %v604, %v604
      %v637 = vpack.c.bf16 %v605, %v605
      %v638 = vpack.c.bf16 %v606, %v606
      %v639 = vpack.c.bf16 %v607, %v607
      %v640 = vpack.c.bf16 %v608, %v608
      %v641 = vpack.c.bf16 %v609, %v609
      %v642 = vpack.c.bf16 %v610, %v610
      %vm643 = vcmask 27648
      %644 = vst.msk [vmem:[%s221] sm:$0xf] %vm643, %v611
      %645 = vst.msk [vmem:[%s221 + $0x4] sm:$0xf] %vm643, %v612
      %646 = vst.msk [vmem:[%s221 + $0x8] sm:$0xf] %vm643, %v613
      %647 = vst.msk [vmem:[%s221 + $0xc] sm:$0xf] %vm643, %v614
      %648 = vst.msk [vmem:[%s221 + $0x10] sm:$0xf] %vm643, %v615
      %649 = vst.msk [vmem:[%s221 + $0x14] sm:$0xf] %vm643, %v616
      %650 = vst.msk [vmem:[%s221 + $0x18] sm:$0xf] %vm643, %v617
      %651 = vst.msk [vmem:[%s221 + $0x1c] sm:$0xf] %vm643, %v618
      %652 = vst.msk [vmem:[%s221 + $0x20] sm:$0xf] %vm643, %v619
      %653 = vst.msk [vmem:[%s221 + $0x24] sm:$0xf] %vm643, %v620
      %654 = vst.msk [vmem:[%s221 + $0x28] sm:$0xf] %vm643, %v621
      %655 = vst.msk [vmem:[%s221 + $0x2c] sm:$0xf] %vm643, %v622
      %656 = vst.msk [vmem:[%s221 + $0x30] sm:$0xf] %vm643, %v623
      %657 = vst.msk [vmem:[%s221 + $0x34] sm:$0xf] %vm643, %v624
      %658 = vst.msk [vmem:[%s221 + $0x38] sm:$0xf] %vm643, %v625
      %659 = vst.msk [vmem:[%s221 + $0x3c] sm:$0xf] %vm643, %v626
      %660 = vst.msk [vmem:[%s221 + $0x40] sm:$0xf] %vm643, %v627
      %661 = vst.msk [vmem:[%s221 + $0x44] sm:$0xf] %vm643, %v628
      %662 = vst.msk [vmem:[%s221 + $0x48] sm:$0xf] %vm643, %v629
      %663 = vst.msk [vmem:[%s221 + $0x4c] sm:$0xf] %vm643, %v630
      %664 = vst.msk [vmem:[%s221 + $0x50] sm:$0xf] %vm643, %v631
      %665 = vst.msk [vmem:[%s221 + $0x54] sm:$0xf] %vm643, %v632
      %666 = vst.msk [vmem:[%s221 + $0x58] sm:$0xf] %vm643, %v633
      %667 = vst.msk [vmem:[%s221 + $0x5c] sm:$0xf] %vm643, %v634
      %668 = vst.msk [vmem:[%s221 + $0x60] sm:$0xf] %vm643, %v635
      %669 = vst.msk [vmem:[%s221 + $0x64] sm:$0xf] %vm643, %v636
      %670 = vst.msk [vmem:[%s221 + $0x68] sm:$0xf] %vm643, %v637
      %671 = vst.msk [vmem:[%s221 + $0x6c] sm:$0xf] %vm643, %v638
      %672 = vst.msk [vmem:[%s221 + $0x70] sm:$0xf] %vm643, %v639
      %673 = vst.msk [vmem:[%s221 + $0x74] sm:$0xf] %vm643, %v640
      %674 = vst.msk [vmem:[%s221 + $0x78] sm:$0xf] %vm643, %v641
      %675 = vst.msk [vmem:[%s221 + $0x7c] sm:$0xf] %vm643, %v642
      %s676 = smul.u32 32, %s15
      %p677 = scmp.lt.s32.totalorder %s676, 63
      %s678 = scalar_select %p677, %s676, 63
      %s679 = smul.addr %s678, 4
      %s680 = scalar_lea.vmem %s4, %s679
      // Predicated region
      $region37: #{fpn_forward.13} parent=35 // pred_check
        %p681 = pneg %p127
      $region38: #{fpn_forward.13} parent=35 // pred_check_branch
        %683 = sbr.rel (%p681) target = $region40
      $region39: #{fpn_forward.13} parent=35 // pred_region
        %s684 = smul.u32 32, %s15
      $region40: #{fpn_forward.13} parent=35 // pred_fallthru
        _
    $region36: #{fpn_forward.13} parent=5 // pred_fallthru
      _
    %p685 = scmp.le.s32.totalorder 2, %s10
    // Predicated region
    $region41: #{fpn_forward.13} parent=5 // pred_check
      %p686 = pneg %p685
    $region42: #{fpn_forward.13} parent=5 // pred_check_branch
      %688 = sbr.rel (%p686) target = $region44
    $region43: #{fpn_forward.13} parent=5 // pred_region
      %s689 = ssub.s32 %s10, 2
      // Predicated region
      $region45: #{fpn_forward.13} parent=43 // pred_check
        %p690 = pneg %p133
      $region46: #{fpn_forward.13} parent=43 // pred_check_branch
        %692 = sbr.rel (%p690) target = $region48
      $region47: #{fpn_forward.13} parent=43 // pred_region
        %s693 = smul.u32 32, %s16
        %p694 = scmp.lt.s32.totalorder %s693, 63
        %s695 = scalar_select %p694, %s693, 63
        %s696 = smul.addr %s695, 4
        %s697 = scalar_lea.vmem %s4, %s696
      $region48: #{fpn_forward.13} parent=43 // pred_fallthru
        _
    $region44: #{fpn_forward.13} parent=5 // pred_fallthru
      _
  $region6: #{fpn_forward.13} parent=0 // loop_footer
    %s14 = sadd.s32 1, %s10
  $region7: #{fpn_forward.13} parent=0 // loop_footer_branch
    %9 = sbr.rel target = $region3
  $region8: #{fpn_forward.13} parent=0 // loop_exit
    _

// kernel: fpn_forward.14
$region0: #{fpn_forward.14}
  #allocation0 [shape = 'u32[]', space=smem, size = 0x4, offset = 0x4, fixed_abs, tag = 'smem constant byte address 0x4 - core index']
  #allocation1 [shape = 'u32[72,128]{1,0:T(1,128)}', space=vmem, size = 0x9000, scoped, tag = 'internal scratch']
  %s0 = inlined_call_operand.vmem [shape: bf16[2,18,16,12], index: 0, kind: input, shape index: {}]
  %s1 = inlined_call_operand.vmem [shape: bf16[1,3,12,4], index: 1, kind: input, shape index: {}]
  %s2 = inlined_call_operand.vmem [shape: f32[1,4], index: 2, kind: input, shape index: {}]
  %s3 = inlined_call_operand.vmem [shape: bf16[2,16,16,4], index: 3, kind: output, shape index: {}]
  %s4 = sld [smem:[#allocation0]]
  $region45: #{fpn_forward.14} parent=0
    _
  %s6 = ssub.s32 1, %s4
  %s7 = scalar_select 0, %s6, %s4
  loop: start=0, step=1, limit=34
  $region2: #{fpn_forward.14} parent=0 // loop_pre_header
    _
  $region3: #{fpn_forward.14} parent=0 // loop_header
    %s9 = sphi 0, %s13
    %p10 = scmp.ge.s32.totalorder %s9, 34
    %s16 = sphi 0, %s28
    %s17 = sphi 0, %s24
    %s18 = sphi 0, %s16
    %s19 = sphi 0, %s17
    %s20 = sphi 0, %s18
    %s21 = sphi 0, %s19
    %s31 = sphi 0, %s33
    %s34 = sphi 0, %s31
    %s35 = sphi 0, %s34
    %s51 = sphi 0, %s35
    %s55 = sphi 0, %s55
    %s57 = sphi 0, %s55
    %s58 = sphi 0, %s57
    %s72 = sphi 0, %s58
    %s76 = sphi 0, %s76
    %s78 = sphi 0, %s76
    %s79 = sphi 0, %s78
    %s93 = sphi 0, %s79
    %s101 = sphi 0, %s103
    %s104 = sphi 0, %s101
    %s105 = sphi 0, %s104
    %s121 = sphi 0, %s105
  $region4: #{fpn_forward.14} parent=0 // loop_header_branch
    %12 = sbr.rel (%p10) target = $region8
  $region5: #{fpn_forward.14} parent=0 // loop_body
    %s14 = ssub.s32 %s9, 1
    %s15 = ssub.s32 %s9, 2
    %s22 = sadd.s32 1, %s17
    %p23 = scmp.ge.s32.totalorder %s22, 16
    %s24 = scalar_select %p23, 0, %s22
    %s25 = sadd.s32 1, %s16
    %s26 = scalar_select %p23, %s25, %s16
    %p27 = scmp.ge.s32.totalorder %s26, 2
    %s28 = scalar_select %p27, 0, %s26
    %s29 = ssub.s32 %s16, %s28
    %p30 = scmp.eq.s32.totalorder %s29, 0
    %s32 = sadd.s32 %s31, 1
    %s33 = scalar_select %p30, %s31, %s32
    %p36 = pneg %p30
    %p37 = scmp.eq.s32.totalorder %s9, 31
    %p38 = por %p36, %p37
    %p39 = scmp.ne.s32.totalorder %s31, %s34
    %p40 = scmp.eq.s32.totalorder %s9, 0
    %p41 = por %p39, %p40
    %p42 = scmp.ne.s32.totalorder %s31, %s34
    %p43 = scmp.eq.s32.totalorder %s14, 31
    %p44 = por %p42, %p43
    %p45 = scmp.ne.s32.totalorder %s34, %s35
    %p46 = scmp.eq.s32.totalorder %s14, 0
    %p47 = por %p45, %p46
    %p48 = scmp.ne.s32.totalorder %s34, %s35
    %p49 = scmp.eq.s32.totalorder %s15, 31
    %p50 = por %p48, %p49
    %p52 = scmp.ne.s32.totalorder %s35, %s51
    %p53 = scmp.eq.s32.totalorder %s15, 0
    %p54 = por %p52, %p53
    %s56 = sadd.s32 %s55, 1
    %p59 = scmp.eq.s32.totalorder %s9, 31
    %p60 = scmp.ne.s32.totalorder %s55, %s57
    %p61 = scmp.eq.s32.totalorder %s9, 0
    %p62 = por %p60, %p61
    %p63 = scmp.ne.s32.totalorder %s55, %s57
    %p64 = scmp.eq.s32.totalorder %s14, 31
    %p65 = por %p63, %p64
    %p66 = scmp.ne.s32.totalorder %s57, %s58
    %p67 = scmp.eq.s32.totalorder %s14, 0
    %p68 = por %p66, %p67
    %p69 = scmp.ne.s32.totalorder %s57, %s58
    %p70 = scmp.eq.s32.totalorder %s15, 31
    %p71 = por %p69, %p70
    %p73 = scmp.ne.s32.totalorder %s58, %s72
    %p74 = scmp.eq.s32.totalorder %s15, 0
    %p75 = por %p73, %p74
    %s77 = sadd.s32 %s76, 1
    %p80 = scmp.eq.s32.totalorder %s9, 31
    %p81 = scmp.ne.s32.totalorder %s76, %s78
    %p82 = scmp.eq.s32.totalorder %s9, 0
    %p83 = por %p81, %p82
    %p84 = scmp.ne.s32.totalorder %s76, %s78
    %p85 = scmp.eq.s32.totalorder %s14, 31
    %p86 = por %p84, %p85
    %p87 = scmp.ne.s32.totalorder %s78, %s79
    %p88 = scmp.eq.s32.totalorder %s14, 0
    %p89 = por %p87, %p88
    %p90 = scmp.ne.s32.totalorder %s78, %s79
    %p91 = scmp.eq.s32.totalorder %s15, 31
    %p92 = por %p90, %p91
    %p94 = scmp.ne.s32.totalorder %s79, %s93
    %p95 = scmp.eq.s32.totalorder %s15, 0
    %p96 = por %p94, %p95
    %s97 = ssub.s32 %s16, %s28
    %s98 = ssub.s32 %s17, %s24
    %s99 = sor.u32 %s97, %s98
    %p100 = scmp.eq.s32.totalorder %s99, 0
    %s102 = sadd.s32 %s101, 1
    %s103 = scalar_select %p100, %s101, %s102
    %p106 = pneg %p100
    %p107 = scmp.eq.s32.totalorder %s9, 31
    %p108 = por %p106, %p107
    %p109 = scmp.ne.s32.totalorder %s101, %s104
    %p110 = scmp.eq.s32.totalorder %s9, 0
    %p111 = por %p109, %p110
    %p112 = scmp.ne.s32.totalorder %s101, %s104
    %p113 = scmp.eq.s32.totalorder %s14, 31
    %p114 = por %p112, %p113
    %p115 = scmp.ne.s32.totalorder %s104, %s105
    %p116 = scmp.eq.s32.totalorder %s14, 0
    %p117 = por %p115, %p116
    %p118 = scmp.ne.s32.totalorder %s104, %s105
    %p119 = scmp.eq.s32.totalorder %s15, 31
    %p120 = por %p118, %p119
    %p122 = scmp.ne.s32.totalorder %s105, %s121
    %p123 = scmp.eq.s32.totalorder %s15, 0
    %p124 = por %p122, %p123
    %p125 = scmp.le.s32.totalorder 1, %s9
    %p126 = scmp.lt.s32.totalorder %s9, 33
    %p127 = pnand %p125, %p126
    %p128 = pneg %p127
    // Predicated region
    $region9: #{fpn_forward.14} parent=5 // pred_check
      _
    $region10: #{fpn_forward.14} parent=5 // pred_check_branch
      %130 = sbr.rel (%p127) target = $region12
    $region11: #{fpn_forward.14} parent=5 // pred_region
      %s131 = ssub.s32 %s9, 1
      // Predicated region
      $region13: #{fpn_forward.14} parent=11 // pred_check
        %p132 = pneg %p68
      $region14: #{fpn_forward.14} parent=11 // pred_check_branch
        %134 = sbr.rel (%p132) target = $region16
      $region15: #{fpn_forward.14} parent=11 // pred_region
        _
      $region16: #{fpn_forward.14} parent=11 // pred_fallthru
        _
      // Predicated region
      $region17: #{fpn_forward.14} parent=11 // pred_check
        %p135 = pneg %p89
      $region18: #{fpn_forward.14} parent=11 // pred_check_branch
        %137 = sbr.rel (%p135) target = $region20
      $region19: #{fpn_forward.14} parent=11 // pred_region
        _
      $region20: #{fpn_forward.14} parent=11 // pred_fallthru
        _
    $region12: #{fpn_forward.14} parent=5 // pred_fallthru
      _
    %p138 = scmp.lt.s32.totalorder %s9, 32
    // Predicated region
    $region21: #{fpn_forward.14} parent=5 // pred_check
      %p139 = pneg %p138
    $region22: #{fpn_forward.14} parent=5 // pred_check_branch
      %141 = sbr.rel (%p139) target = $region24
    $region23: #{fpn_forward.14} parent=5 // pred_region
      // Predicated region
      $region25: #{fpn_forward.14} parent=23 // pred_check
        %p142 = pneg %p41
      $region26: #{fpn_forward.14} parent=23 // pred_check_branch
        %144 = sbr.rel (%p142) target = $region28
      $region27: #{fpn_forward.14} parent=23 // pred_region
        %p145 = scmp.lt.s32.totalorder %s16, 1
        %s146 = scalar_select %p145, %s16, 1
        %s147 = smul.addr %s146, 36
        %s148 = smul.addr %s147, 4
        %s149 = scalar_lea.vmem %s0, %s148
      $region28: #{fpn_forward.14} parent=23 // pred_fallthru
        _
    $region24: #{fpn_forward.14} parent=5 // pred_fallthru
      _
    %p150 = scmp.le.s32.totalorder 1, %s9
    %p151 = scmp.lt.s32.totalorder %s9, 33
    %p152 = pnand %p150, %p151
    %p153 = pneg %p152
    // Predicated region
    $region29: #{fpn_forward.14} parent=5 // pred_check
      _
    $region30: #{fpn_forward.14} parent=5 // pred_check_branch
      %155 = sbr.rel (%p152) target = $region32
    $region31: #{fpn_forward.14} parent=5 // pred_region
      %s156 = ssub.s32 %s9, 1
      %p157 = scmp.lt.s32.totalorder %s18, 1
      %s158 = scalar_select %p157, %s18, 1
      %s159 = smul.addr %s158, 36
      %s160 = smul.addr %s159, 4
      %s161 = scalar_lea.vmem %s0, %s160
      %p162 = pneg %p47
      %p163 = pneg %p44
      %p164 = pneg %p68
      %p165 = pneg %p65
      %p166 = pneg %p89
      %p167 = pneg %p86
      %p168 = pneg %p117
      %p169 = pneg %p114
      %p170 = scmp.lt.s32.totalorder %s18, 1
      %s171 = scalar_select %p170, %s18, 1
      %p172 = scmp.lt.s32.totalorder %s19, 15
      %s173 = scalar_select %p172, %s19, 15
      %s174 = smul.addr %s173, 2
      %s175 = smul.addr %s171, 32
      %s176 = sadd.s32 %s174, %s175
      %s177 = smul.addr %s176, 4
      %s178 = scalar_lea.vmem %s3, %s177
      %p179 = scmp.lt.s32.totalorder %s18, 1
      %s180 = scalar_select %p179, %s18, 1
      %s181 = smul.addr %s180, 36
      %s182 = smul.addr %s181, 4
      %s183 = scalar_lea.vmem %s0, %s182
      %p184 = scmp.lt.s32.totalorder %s18, 1
      %s185 = scalar_select %p184, %s18, 1
      %p186 = scmp.lt.s32.totalorder %s19, 15
      %s187 = scalar_select %p186, %s19, 15
      %s188 = smul.addr %s187, 2
      %s189 = smul.addr %s185, 32
      %s190 = sadd.s32 %s188, %s189
      %s191 = smul.addr %s190, 4
      %s192 = scalar_lea.vmem %s3, %s191
      %s194 = smul.u32 %s19, 2
      %s195 = smul.addr %s194, 4
      %s196 = scalar_lea.vmem %s183, %s195
      %v197 = vld [vmem:[%s196] sm:$0xf]
      %v198 = vld [vmem:[%s196 + $0x4] sm:$0xf]
      %v199 = vld [vmem:[%s1] sm:$0xf]
      %v200 = vld [vmem:[%s1 + $0x4] sm:$0x3]
      %s201 = sadd.s32 %s19, 1
      %s202 = smul.u32 %s201, 2
      %s203 = smul.addr %s202, 4
      %s204 = scalar_lea.vmem %s183, %s203
      %v205 = vld [vmem:[%s204] sm:$0xf]
      %v206 = vld [vmem:[%s204 + $0x4] sm:$0xf]
      %s207 = scalar_lea.vmem %s1, 8
      %v208 = vld [vmem:[%s207] sm:$0xf]
      %v209 = vld [vmem:[%s207 + $0x4] sm:$0x3]
      %v212 = vunpack.c.l.b16 %v205
      %v213 = vunpack.c.l.b16 %v206
      %v214 = vpack.c.b16 %v213, %v212
      %v217 = vunpack.c.l.b16 %v208
      %v218 = vunpack.c.l.b16 %v209
      %v219 = vpack.c.b16 %v218, %v217
      %vm220 = vcmask 97280
      %v222 = vsel %vm220, %v214, 0
      %vm224 = vcmask 1045504
      %v226 = vsel %vm224, %v219, 0
      %228 = vmatpush.bf16.msra.mxu0 0
      %229 = vmatpush.bf16.msra.mxu0 0
      %230 = vmatpush.bf16.msra.mxu0 0
      %231 = vmatpush.bf16.msra.mxu0 0
      %232 = vmatpush.bf16.msra.mxu0 0
      %233 = vmatpush.bf16.msra.mxu0 0
      %234 = vmatpush.bf16.msra.mxu0 0
      %235 = vmatpush.bf16.msra.mxu0 %v226
      %236 = vmatmul.bf16.gmra.mxu0 %v222
      %v237 = vpop.f32.mrf.mxu0
      %v238 = vadd.f32 0.0, %v237
      %v239 = vpop.f32.mrf.mxu0
      %v240 = vadd.f32 0.0, %v239
      %241 = vdwg.mxu0
      %v244 = vunpack.c.l.b16 %v197
      %v245 = vunpack.c.l.b16 %v198
      %v246 = vpack.c.b16 %v245, %v244
      %v249 = vunpack.c.l.b16 %v199
      %v250 = vunpack.c.l.b16 %v200
      %v251 = vpack.c.b16 %v250, %v249
      %v253 = vsel %vm220, %v246, 0
      %v256 = vsel %vm224, %v251, 0
      %258 = vmatpush.bf16.msra.mxu0 0
      %259 = vmatpush.bf16.msra.mxu0 0
      %260 = vmatpush.bf16.msra.mxu0 0
      %261 = vmatpush.bf16.msra.mxu0 0
      %262 = vmatpush.bf16.msra.mxu0 0
      %263 = vmatpush.bf16.msra.mxu0 0
      %264 = vmatpush.bf16.msra.mxu0 0
      %265 = vmatpush.bf16.msra.mxu0 %v256
      %266 = vmatmul.bf16.gmra.mxu0 %v253
      %v267 = vpop.f32.mrf.mxu0
      %v268 = vadd.f32 %v238, %v267
      %v269 = vpop.f32.mrf.mxu0
      %v270 = vadd.f32 %v240, %v269
      %271 = vdwg.mxu0
      %s272 = sadd.s32 %s19, 2
      %s273 = smul.u32 %s272, 2
      %s274 = smul.addr %s273, 4
      %s275 = scalar_lea.vmem %s183, %s274
      %v276 = vld [vmem:[%s275] sm:$0xf]
      %v277 = vld [vmem:[%s275 + $0x4] sm:$0xf]
      %s278 = scalar_lea.vmem %s1, 16
      %v279 = vld [vmem:[%s278] sm:$0xf]
      %v280 = vld [vmem:[%s278 + $0x4] sm:$0x3]
      %v283 = vunpack.c.l.b16 %v276
      %v284 = vunpack.c.l.b16 %v277
      %v285 = vpack.c.b16 %v284, %v283
      %v288 = vunpack.c.l.b16 %v279
      %v289 = vunpack.c.l.b16 %v280
      %v290 = vpack.c.b16 %v289, %v288
      %v292 = vsel %vm220, %v285, 0
      %v295 = vsel %vm224, %v290, 0
      %297 = vmatpush.bf16.msra.mxu0 0
      %298 = vmatpush.bf16.msra.mxu0 0
      %299 = vmatpush.bf16.msra.mxu0 0
      %300 = vmatpush.bf16.msra.mxu0 0
      %301 = vmatpush.bf16.msra.mxu0 0
      %302 = vmatpush.bf16.msra.mxu0 0
      %303 = vmatpush.bf16.msra.mxu0 0
      %304 = vmatpush.bf16.msra.mxu0 %v295
      %305 = vmatmul.bf16.gmra.mxu0 %v292
      %v306 = vpop.f32.mrf.mxu0
      %v307 = vadd.f32 0.0, %v306
      %v308 = vpop.f32.mrf.mxu0
      %v309 = vadd.f32 0.0, %v308
      %310 = vdwg.mxu0
      %v311 = vadd.f32 %v268, %v307
      %v312 = vadd.f32 %v270, %v309
      %v313 = vld [vmem:[%s2] sm:$0x1]
      %v315 = vperm.slane %v313, 0
      %v317 = vadd.f32 %v311, %v315
      %v318 = vadd.f32 %v312, %v315
      %v319 = vmax.f32 %v317, 0.0
      %v320 = vmax.f32 %v318, 0.0
      %v321 = vpack.c.bf16 %v319, %v319
      %v322 = vpack.c.bf16 %v320, %v320
      %vm323 = vcmask 27648
      %324 = vst.msk [vmem:[%s192] sm:$0xf] %vm323, %v321
      %325 = vst.msk [vmem:[%s192 + $0x4] sm:$0xf] %vm323, %v322
      %p326 = scmp.lt.s32.totalorder %s18, 1
      %s327 = scalar_select %p326, %s18, 1
      %p328 = scmp.lt.s32.totalorder %s19, 15
      %s329 = scalar_select %p328, %s19, 15
      %s330 = smul.addr %s329, 2
      %s331 = smul.addr %s327, 32
      %s332 = sadd.s32 %s330, %s331
      %s333 = smul.addr %s332, 4
      %s334 = scalar_lea.vmem %s3, %s333
      // Predicated region
      $region33: #{fpn_forward.14} parent=31 // pred_check
        %p335 = pneg %p114
      $region34: #{fpn_forward.14} parent=31 // pred_check_branch
        %337 = sbr.rel (%p335) target = $region36
      $region35: #{fpn_forward.14} parent=31 // pred_region
        _
      $region36: #{fpn_forward.14} parent=31 // pred_fallthru
        _
    $region32: #{fpn_forward.14} parent=5 // pred_fallthru
      _
    %p338 = scmp.le.s32.totalorder 2, %s9
    // Predicated region
    $region37: #{fpn_forward.14} parent=5 // pred_check
      %p339 = pneg %p338
    $region38: #{fpn_forward.14} parent=5 // pred_check_branch
      %341 = sbr.rel (%p339) target = $region40
    $region39: #{fpn_forward.14} parent=5 // pred_region
      %s342 = ssub.s32 %s9, 2
      // Predicated region
      $region41: #{fpn_forward.14} parent=39 // pred_check
        %p343 = pneg %p120
      $region42: #{fpn_forward.14} parent=39 // pred_check_branch
        %345 = sbr.rel (%p343) target = $region44
      $region43: #{fpn_forward.14} parent=39 // pred_region
        %p346 = scmp.lt.s32.totalorder %s20, 1
        %s347 = scalar_select %p346, %s20, 1
        %p348 = scmp.lt.s32.totalorder %s21, 15
        %s349 = scalar_select %p348, %s21, 15
        %s350 = smul.addr %s349, 2
        %s351 = smul.addr %s347, 32
        %s352 = sadd.s32 %s350, %s351
        %s353 = smul.addr %s352, 4
        %s354 = scalar_lea.vmem %s3, %s353
      $region44: #{fpn_forward.14} parent=39 // pred_fallthru
        _
    $region40: #{fpn_forward.14} parent=5 // pred_fallthru
      _
  $region6: #{fpn_forward.14} parent=0 // loop_footer
    %s13 = sadd.s32 1, %s9
  $region7: #{fpn_forward.14} parent=0 // loop_footer_branch
    %8 = sbr.rel target = $region3
  $region8: #{fpn_forward.14} parent=0 // loop_exit
    _

// kernel: fpn_forward.15
$region0: #{fpn_forward.15}
  #allocation0 [shape = 'u32[]', space=smem, size = 0x4, offset = 0x4, fixed_abs, tag = 'smem constant byte address 0x4 - core index']
  #allocation1 [shape = 'u32[72,128]{1,0:T(1,128)}', space=vmem, size = 0x9000, scoped, tag = 'internal scratch']
  %s0 = inlined_call_operand.vmem [shape: bf16[2,18,16,12], index: 0, kind: input, shape index: {}]
  %s1 = inlined_call_operand.vmem [shape: bf16[2,18,16,12], index: 1, kind: input, shape index: {}]
  %s2 = inlined_call_operand.vmem [shape: bf16[2,18,16,12], index: 2, kind: input, shape index: {}]
  %s3 = inlined_call_operand.vmem [shape: bf16[2,18,16,12], index: 3, kind: input, shape index: {}]
  %s4 = inlined_call_operand.vmem [shape: bf16[4,3,12,16], index: 4, kind: input, shape index: {}]
  %s5 = inlined_call_operand.vmem [shape: f32[1,16], index: 5, kind: input, shape index: {}]
  %s6 = inlined_call_operand.vmem [shape: bf16[2,16,16,16], index: 6, kind: output, shape index: {}]
  %s7 = sld [smem:[#allocation0]]
  $region57: #{fpn_forward.15} parent=0
    _
  %s9 = ssub.s32 1, %s7
  %s10 = scalar_select 0, %s9, %s7
  loop: start=0, step=1, limit=34
  $region2: #{fpn_forward.15} parent=0 // loop_pre_header
    _
  $region3: #{fpn_forward.15} parent=0 // loop_header
    %s12 = sphi 0, %s16
    %p13 = scmp.ge.s32.totalorder %s12, 34
    %s19 = sphi 0, %s31
    %s20 = sphi 0, %s27
    %s21 = sphi 0, %s19
    %s22 = sphi 0, %s20
    %s23 = sphi 0, %s21
    %s24 = sphi 0, %s22
    %s34 = sphi 0, %s36
    %s37 = sphi 0, %s34
    %s38 = sphi 0, %s37
    %s54 = sphi 0, %s38
    %s60 = sphi 0, %s62
    %s63 = sphi 0, %s60
    %s64 = sphi 0, %s63
    %s80 = sphi 0, %s64
    %s86 = sphi 0, %s88
    %s89 = sphi 0, %s86
    %s90 = sphi 0, %s89
    %s106 = sphi 0, %s90
    %s112 = sphi 0, %s114
    %s115 = sphi 0, %s112
    %s116 = sphi 0, %s115
    %s132 = sphi 0, %s116
    %s136 = sphi 0, %s136
    %s138 = sphi 0, %s136
    %s139 = sphi 0, %s138
    %s153 = sphi 0, %s139
    %s157 = sphi 0, %s157
    %s159 = sphi 0, %s157
    %s160 = sphi 0, %s159
    %s174 = sphi 0, %s160
    %s182 = sphi 0, %s184
    %s185 = sphi 0, %s182
    %s186 = sphi 0, %s185
    %s202 = sphi 0, %s186
  $region4: #{fpn_forward.15} parent=0 // loop_header_branch
    %15 = sbr.rel (%p13) target = $region8
  $region5: #{fpn_forward.15} parent=0 // loop_body
    %s17 = ssub.s32 %s12, 1
    %s18 = ssub.s32 %s12, 2
    %s25 = sadd.s32 1, %s20
    %p26 = scmp.ge.s32.totalorder %s25, 16
    %s27 = scalar_select %p26, 0, %s25
    %s28 = sadd.s32 1, %s19
    %s29 = scalar_select %p26, %s28, %s19
    %p30 = scmp.ge.s32.totalorder %s29, 2
    %s31 = scalar_select %p30, 0, %s29
    %s32 = ssub.s32 %s19, %s31
    %p33 = scmp.eq.s32.totalorder %s32, 0
    %s35 = sadd.s32 %s34, 1
    %s36 = scalar_select %p33, %s34, %s35
    %p39 = pneg %p33
    %p40 = scmp.eq.s32.totalorder %s12, 31
    %p41 = por %p39, %p40
    %p42 = scmp.ne.s32.totalorder %s34, %s37
    %p43 = scmp.eq.s32.totalorder %s12, 0
    %p44 = por %p42, %p43
    %p45 = scmp.ne.s32.totalorder %s34, %s37
    %p46 = scmp.eq.s32.totalorder %s17, 31
    %p47 = por %p45, %p46
    %p48 = scmp.ne.s32.totalorder %s37, %s38
    %p49 = scmp.eq.s32.totalorder %s17, 0
    %p50 = por %p48, %p49
    %p51 = scmp.ne.s32.totalorder %s37, %s38
    %p52 = scmp.eq.s32.totalorder %s18, 31
    %p53 = por %p51, %p52
    %p55 = scmp.ne.s32.totalorder %s38, %s54
    %p56 = scmp.eq.s32.totalorder %s18, 0
    %p57 = por %p55, %p56
    %s58 = ssub.s32 %s19, %s31
    %p59 = scmp.eq.s32.totalorder %s58, 0
    %s61 = sadd.s32 %s60, 1
    %s62 = scalar_select %p59, %s60, %s61
    %p65 = pneg %p59
    %p66 = scmp.eq.s32.totalorder %s12, 31
    %p67 = por %p65, %p66
    %p68 = scmp.ne.s32.totalorder %s60, %s63
    %p69 = scmp.eq.s32.totalorder %s12, 0
    %p70 = por %p68, %p69
    %p71 = scmp.ne.s32.totalorder %s60, %s63
    %p72 = scmp.eq.s32.totalorder %s17, 31
    %p73 = por %p71, %p72
    %p74 = scmp.ne.s32.totalorder %s63, %s64
    %p75 = scmp.eq.s32.totalorder %s17, 0
    %p76 = por %p74, %p75
    %p77 = scmp.ne.s32.totalorder %s63, %s64
    %p78 = scmp.eq.s32.totalorder %s18, 31
    %p79 = por %p77, %p78
    %p81 = scmp.ne.s32.totalorder %s64, %s80
    %p82 = scmp.eq.s32.totalorder %s18, 0
    %p83 = por %p81, %p82
    %s84 = ssub.s32 %s19, %s31
    %p85 = scmp.eq.s32.totalorder %s84, 0
    %s87 = sadd.s32 %s86, 1
    %s88 = scalar_select %p85, %s86, %s87
    %p91 = pneg %p85
    %p92 = scmp.eq.s32.totalorder %s12, 31
    %p93 = por %p91, %p92
    %p94 = scmp.ne.s32.totalorder %s86, %s89
    %p95 = scmp.eq.s32.totalorder %s12, 0
    %p96 = por %p94, %p95
    %p97 = scmp.ne.s32.totalorder %s86, %s89
    %p98 = scmp.eq.s32.totalorder %s17, 31
    %p99 = por %p97, %p98
    %p100 = scmp.ne.s32.totalorder %s89, %s90
    %p101 = scmp.eq.s32.totalorder %s17, 0
    %p102 = por %p100, %p101
    %p103 = scmp.ne.s32.totalorder %s89, %s90
    %p104 = scmp.eq.s32.totalorder %s18, 31
    %p105 = por %p103, %p104
    %p107 = scmp.ne.s32.totalorder %s90, %s106
    %p108 = scmp.eq.s32.totalorder %s18, 0
    %p109 = por %p107, %p108
    %s110 = ssub.s32 %s19, %s31
    %p111 = scmp.eq.s32.totalorder %s110, 0
    %s113 = sadd.s32 %s112, 1
    %s114 = scalar_select %p111, %s112, %s113
    %p117 = pneg %p111
    %p118 = scmp.eq.s32.totalorder %s12, 31
    %p119 = por %p117, %p118
    %p120 = scmp.ne.s32.totalorder %s112, %s115
    %p121 = scmp.eq.s32.totalorder %s12, 0
    %p122 = por %p120, %p121
    %p123 = scmp.ne.s32.totalorder %s112, %s115
    %p124 = scmp.eq.s32.totalorder %s17, 31
    %p125 = por %p123, %p124
    %p126 = scmp.ne.s32.totalorder %s115, %s116
    %p127 = scmp.eq.s32.totalorder %s17, 0
    %p128 = por %p126, %p127
    %p129 = scmp.ne.s32.totalorder %s115, %s116
    %p130 = scmp.eq.s32.totalorder %s18, 31
    %p131 = por %p129, %p130
    %p133 = scmp.ne.s32.totalorder %s116, %s132
    %p134 = scmp.eq.s32.totalorder %s18, 0
    %p135 = por %p133, %p134
    %s137 = sadd.s32 %s136, 1
    %p140 = scmp.eq.s32.totalorder %s12, 31
    %p141 = scmp.ne.s32.totalorder %s136, %s138
    %p142 = scmp.eq.s32.totalorder %s12, 0
    %p143 = por %p141, %p142
    %p144 = scmp.ne.s32.totalorder %s136, %s138
    %p145 = scmp.eq.s32.totalorder %s17, 31
    %p146 = por %p144, %p145
    %p147 = scmp.ne.s32.totalorder %s138, %s139
    %p148 = scmp.eq.s32.totalorder %s17, 0
    %p149 = por %p147, %p148
    %p150 = scmp.ne.s32.totalorder %s138, %s139
    %p151 = scmp.eq.s32.totalorder %s18, 31
    %p152 = por %p150, %p151
    %p154 = scmp.ne.s32.totalorder %s139, %s153
    %p155 = scmp.eq.s32.totalorder %s18, 0
    %p156 = por %p154, %p155
    %s158 = sadd.s32 %s157, 1
    %p161 = scmp.eq.s32.totalorder %s12, 31
    %p162 = scmp.ne.s32.totalorder %s157, %s159
    %p163 = scmp.eq.s32.totalorder %s12, 0
    %p164 = por %p162, %p163
    %p165 = scmp.ne.s32.totalorder %s157, %s159
    %p166 = scmp.eq.s32.totalorder %s17, 31
    %p167 = por %p165, %p166
    %p168 = scmp.ne.s32.totalorder %s159, %s160
    %p169 = scmp.eq.s32.totalorder %s17, 0
    %p170 = por %p168, %p169
    %p171 = scmp.ne.s32.totalorder %s159, %s160
    %p172 = scmp.eq.s32.totalorder %s18, 31
    %p173 = por %p171, %p172
    %p175 = scmp.ne.s32.totalorder %s160, %s174
    %p176 = scmp.eq.s32.totalorder %s18, 0
    %p177 = por %p175, %p176
    %s178 = ssub.s32 %s19, %s31
    %s179 = ssub.s32 %s20, %s27
    %s180 = sor.u32 %s178, %s179
    %p181 = scmp.eq.s32.totalorder %s180, 0
    %s183 = sadd.s32 %s182, 1
    %s184 = scalar_select %p181, %s182, %s183
    %p187 = pneg %p181
    %p188 = scmp.eq.s32.totalorder %s12, 31
    %p189 = por %p187, %p188
    %p190 = scmp.ne.s32.totalorder %s182, %s185
    %p191 = scmp.eq.s32.totalorder %s12, 0
    %p192 = por %p190, %p191
    %p193 = scmp.ne.s32.totalorder %s182, %s185
    %p194 = scmp.eq.s32.totalorder %s17, 31
    %p195 = por %p193, %p194
    %p196 = scmp.ne.s32.totalorder %s185, %s186
    %p197 = scmp.eq.s32.totalorder %s17, 0
    %p198 = por %p196, %p197
    %p199 = scmp.ne.s32.totalorder %s185, %s186
    %p200 = scmp.eq.s32.totalorder %s18, 31
    %p201 = por %p199, %p200
    %p203 = scmp.ne.s32.totalorder %s186, %s202
    %p204 = scmp.eq.s32.totalorder %s18, 0
    %p205 = por %p203, %p204
    %p206 = scmp.le.s32.totalorder 1, %s12
    %p207 = scmp.lt.s32.totalorder %s12, 33
    %p208 = pnand %p206, %p207
    %p209 = pneg %p208
    // Predicated region
    $region9: #{fpn_forward.15} parent=5 // pred_check
      _
    $region10: #{fpn_forward.15} parent=5 // pred_check_branch
      %211 = sbr.rel (%p208) target = $region12
    $region11: #{fpn_forward.15} parent=5 // pred_region
      %s212 = ssub.s32 %s12, 1
      // Predicated region
      $region13: #{fpn_forward.15} parent=11 // pred_check
        %p213 = pneg %p149
      $region14: #{fpn_forward.15} parent=11 // pred_check_branch
        %215 = sbr.rel (%p213) target = $region16
      $region15: #{fpn_forward.15} parent=11 // pred_region
        _
      $region16: #{fpn_forward.15} parent=11 // pred_fallthru
        _
      // Predicated region
      $region17: #{fpn_forward.15} parent=11 // pred_check
        %p216 = pneg %p170
      $region18: #{fpn_forward.15} parent=11 // pred_check_branch
        %218 = sbr.rel (%p216) target = $region20
      $region19: #{fpn_forward.15} parent=11 // pred_region
        _
      $region20: #{fpn_forward.15} parent=11 // pred_fallthru
        _
    $region12: #{fpn_forward.15} parent=5 // pred_fallthru
      _
    %p219 = scmp.lt.s32.totalorder %s12, 32
    // Predicated region
    $region21: #{fpn_forward.15} parent=5 // pred_check
      %p220 = pneg %p219
    $region22: #{fpn_forward.15} parent=5 // pred_check_branch
      %222 = sbr.rel (%p220) target = $region24
    $region23: #{fpn_forward.15} parent=5 // pred_region
      // Predicated region
      $region25: #{fpn_forward.15} parent=23 // pred_check
        %p223 = pneg %p44
      $region26: #{fpn_forward.15} parent=23 // pred_check_branch
        %225 = sbr.rel (%p223) target = $region28
      $region27: #{fpn_forward.15} parent=23 // pred_region
        %p226 = scmp.lt.s32.totalorder %s19, 1
        %s227 = scalar_select %p226, %s19, 1
        %s228 = smul.addr %s227, 36
        %s229 = smul.addr %s228, 4
        %s230 = scalar_lea.vmem %s0, %s229
      $region28: #{fpn_forward.15} parent=23 // pred_fallthru
        _
      // Predicated region
      $region29: #{fpn_forward.15} parent=23 // pred_check
        %p231 = pneg %p70
      $region30: #{fpn_forward.15} parent=23 // pred_check_branch
        %233 = sbr.rel (%p231) target = $region32
      $region31: #{fpn_forward.15} parent=23 // pred_region
        %p234 = scmp.lt.s32.totalorder %s19, 1
        %s235 = scalar_select %p234, %s19, 1
        %s236 = smul.addr %s235, 36
        %s237 = smul.addr %s236, 4
        %s238 = scalar_lea.vmem %s1, %s237
      $region32: #{fpn_forward.15} parent=23 // pred_fallthru
        _
      // Predicated region
      $region33: #{fpn_forward.15} parent=23 // pred_check
        %p239 = pneg %p96
      $region34: #{fpn_forward.15} parent=23 // pred_check_branch
        %241 = sbr.rel (%p239) target = $region36
      $region35: #{fpn_forward.15} parent=23 // pred_region
        %p242 = scmp.lt.s32.totalorder %s19, 1
        %s243 = scalar_select %p242, %s19, 1
        %s244 = smul.addr %s243, 36
        %s245 = smul.addr %s244, 4
        %s246 = scalar_lea.vmem %s2, %s245
      $region36: #{fpn_forward.15} parent=23 // pred_fallthru
        _
      // Predicated region
      $region37: #{fpn_forward.15} parent=23 // pred_check
        %p247 = pneg %p122
      $region38: #{fpn_forward.15} parent=23 // pred_check_branch
        %249 = sbr.rel (%p247) target = $region40
      $region39: #{fpn_forward.15} parent=23 // pred_region
        %p250 = scmp.lt.s32.totalorder %s19, 1
        %s251 = scalar_select %p250, %s19, 1
        %s252 = smul.addr %s251, 36
        %s253 = smul.addr %s252, 4
        %s254 = scalar_lea.vmem %s3, %s253
      $region40: #{fpn_forward.15} parent=23 // pred_fallthru
        _
    $region24: #{fpn_forward.15} parent=5 // pred_fallthru
      _
    %p255 = scmp.le.s32.totalorder 1, %s12
    %p256 = scmp.lt.s32.totalorder %s12, 33
    %p257 = pnand %p255, %p256
    %p258 = pneg %p257
    // Predicated region
    $region41: #{fpn_forward.15} parent=5 // pred_check
      _
    $region42: #{fpn_forward.15} parent=5 // pred_check_branch
      %260 = sbr.rel (%p257) target = $region44
    $region43: #{fpn_forward.15} parent=5 // pred_region
      %s261 = ssub.s32 %s12, 1
      %p262 = scmp.lt.s32.totalorder %s21, 1
      %s263 = scalar_select %p262, %s21, 1
      %s264 = smul.addr %s263, 36
      %s265 = smul.addr %s264, 4
      %s266 = scalar_lea.vmem %s0, %s265
      %p267 = pneg %p50
      %p268 = pneg %p47
      %p269 = scmp.lt.s32.totalorder %s21, 1
      %s270 = scalar_select %p269, %s21, 1
      %s271 = smul.addr %s270, 36
      %s272 = smul.addr %s271, 4
      %s273 = scalar_lea.vmem %s1, %s272
      %p274 = pneg %p76
      %p275 = pneg %p73
      %p276 = scmp.lt.s32.totalorder %s21, 1
      %s277 = scalar_select %p276, %s21, 1
      %s278 = smul.addr %s277, 36
      %s279 = smul.addr %s278, 4
      %s280 = scalar_lea.vmem %s2, %s279
      %p281 = pneg %p102
      %p282 = pneg %p99
      %p283 = scmp.lt.s32.totalorder %s21, 1
      %s284 = scalar_select %p283, %s21, 1
      %s285 = smul.addr %s284, 36
      %s286 = smul.addr %s285, 4
      %s287 = scalar_lea.vmem %s3, %s286
      %p288 = pneg %p128
      %p289 = pneg %p125
      %p290 = pneg %p149
      %p291 = pneg %p146
      %p292 = pneg %p170
      %p293 = pneg %p167
      %p294 = pneg %p198
      %p295 = pneg %p195
      %p296 = scmp.lt.s32.totalorder %s21, 1
      %s297 = scalar_select %p296, %s21, 1
      %p298 = scmp.lt.s32.totalorder %s22, 15
      %s299 = scalar_select %p298, %s22, 15
      %s300 = smul.addr %s299, 2
      %s301 = smul.addr %s297, 32
      %s302 = sadd.s32 %s300, %s301
      %s303 = smul.addr %s302, 4
      %s304 = scalar_lea.vmem %s6, %s303
      %p305 = scmp.lt.s32.totalorder %s21, 1
      %s306 = scalar_select %p305, %s21, 1
      %s307 = smul.addr %s306, 36
      %s308 = smul.addr %s307, 4
      %s309 = scalar_lea.vmem %s0, %s308
      %p310 = scmp.lt.s32.totalorder %s21, 1
      %s311 = scalar_select %p310, %s21, 1
      %s312 = smul.addr %s311, 36
      %s313 = smul.addr %s312, 4
      %s314 = scalar_lea.vmem %s1, %s313
      %p315 = scmp.lt.s32.totalorder %s21, 1
      %s316 = scalar_select %p315, %s21, 1
      %s317 = smul.addr %s316, 36
      %s318 = smul.addr %s317, 4
      %s319 = scalar_lea.vmem %s2, %s318
      %p320 = scmp.lt.s32.totalorder %s21, 1
      %s321 = scalar_select %p320, %s21, 1
      %s322 = smul.addr %s321, 36
      %s323 = smul.addr %s322, 4
      %s324 = scalar_lea.vmem %s3, %s323
      %p325 = scmp.lt.s32.totalorder %s21, 1
      %s326 = scalar_select %p325, %s21, 1
      %p327 = scmp.lt.s32.totalorder %s22, 15
      %s328 = scalar_select %p327, %s22, 15
      %s329 = smul.addr %s328, 2
      %s330 = smul.addr %s326, 32
      %s331 = sadd.s32 %s329, %s330
      %s332 = smul.addr %s331, 4
      %s333 = scalar_lea.vmem %s6, %s332
      %s335 = smul.u32 %s22, 2
      %s336 = smul.addr %s335, 4
      %s337 = scalar_lea.vmem %s309, %s336
      %v338 = vld [vmem:[%s337] sm:$0xf]
      %v339 = vld [vmem:[%s337 + $0x4] sm:$0xf]
      %v340 = vld [vmem:[%s4] sm:$0xf]
      %v341 = vld [vmem:[%s4 + $0x4] sm:$0x3]
      %s342 = sadd.s32 %s22, 1
      %s343 = smul.u32 %s342, 2
      %s344 = smul.addr %s343, 4
      %s345 = scalar_lea.vmem %s309, %s344
      %v346 = vld [vmem:[%s345] sm:$0xf]
      %v347 = vld [vmem:[%s345 + $0x4] sm:$0xf]
      %s348 = scalar_lea.vmem %s4, 8
      %v349 = vld [vmem:[%s348] sm:$0xf]
      %v350 = vld [vmem:[%s348 + $0x4] sm:$0x3]
      %v353 = vunpack.c.l.b16 %v346
      %v354 = vunpack.c.l.b16 %v347
      %v355 = vpack.c.b16 %v354, %v353
      %v358 = vunpack.c.l.b16 %v349
      %v359 = vunpack.c.l.b16 %v350
      %v360 = vpack.c.b16 %v359, %v358
      %vm361 = vcmask 97280
      %v363 = vsel %vm361, %v355, 0
      %vm365 = vcmask 1045504
      %v367 = vsel %vm365, %v360, 0
      %369 = vmatpush.bf16.msra.mxu0 0
      %370 = vmatpush.bf16.msra.mxu0 0
      %371 = vmatpush.bf16.msra.mxu0 0
      %372 = vmatpush.bf16.msra.mxu0 0
      %373 = vmatpush.bf16.msra.mxu0 0
      %374 = vmatpush.bf16.msra.mxu0 0
      %375 = vmatpush.bf16.msra.mxu0 0
      %376 = vmatpush.bf16.msra.mxu0 %v367
      %377 = vmatmul.bf16.gmra.mxu0 %v363
      %v378 = vpop.f32.mrf.mxu0
      %v379 = vadd.f32 0.0, %v378
      %v380 = vpop.f32.mrf.mxu0
      %v381 = vadd.f32 0.0, %v380
      %382 = vdwg.mxu0
      %v385 = vunpack.c.l.b16 %v338
      %v386 = vunpack.c.l.b16 %v339
      %v387 = vpack.c.b16 %v386, %v385
      %v390 = vunpack.c.l.b16 %v340
      %v391 = vunpack.c.l.b16 %v341
      %v392 = vpack.c.b16 %v391, %v390
      %v394 = vsel %vm361, %v387, 0
      %v397 = vsel %vm365, %v392, 0
      %399 = vmatpush.bf16.msra.mxu0 0
      %400 = vmatpush.bf16.msra.mxu0 0
      %401 = vmatpush.bf16.msra.mxu0 0
      %402 = vmatpush.bf16.msra.mxu0 0
      %403 = vmatpush.bf16.msra.mxu0 0
      %404 = vmatpush.bf16.msra.mxu0 0
      %405 = vmatpush.bf16.msra.mxu0 0
      %406 = vmatpush.bf16.msra.mxu0 %v397
      %407 = vmatmul.bf16.gmra.mxu0 %v394
      %v408 = vpop.f32.mrf.mxu0
      %v409 = vadd.f32 %v379, %v408
      %v410 = vpop.f32.mrf.mxu0
      %v411 = vadd.f32 %v381, %v410
      %412 = vdwg.mxu0
      %s413 = sadd.s32 %s22, 2
      %s414 = smul.u32 %s413, 2
      %s415 = smul.addr %s414, 4
      %s416 = scalar_lea.vmem %s309, %s415
      %v417 = vld [vmem:[%s416] sm:$0xf]
      %v418 = vld [vmem:[%s416 + $0x4] sm:$0xf]
      %s419 = scalar_lea.vmem %s4, 16
      %v420 = vld [vmem:[%s419] sm:$0xf]
      %v421 = vld [vmem:[%s419 + $0x4] sm:$0x3]
      %v424 = vunpack.c.l.b16 %v417
      %v425 = vunpack.c.l.b16 %v418
      %v426 = vpack.c.b16 %v425, %v424
      %v429 = vunpack.c.l.b16 %v420
      %v430 = vunpack.c.l.b16 %v421
      %v431 = vpack.c.b16 %v430, %v429
      %v433 = vsel %vm361, %v426, 0
      %v436 = vsel %vm365, %v431, 0
      %438 = vmatpush.bf16.msra.mxu0 0
      %439 = vmatpush.bf16.msra.mxu0 0
      %440 = vmatpush.bf16.msra.mxu0 0
      %441 = vmatpush.bf16.msra.mxu0 0
      %442 = vmatpush.bf16.msra.mxu0 0
      %443 = vmatpush.bf16.msra.mxu0 0
      %444 = vmatpush.bf16.msra.mxu0 0
      %445 = vmatpush.bf16.msra.mxu0 %v436
      %446 = vmatmul.bf16.gmra.mxu0 %v433
      %v447 = vpop.f32.mrf.mxu0
      %v448 = vadd.f32 0.0, %v447
      %v449 = vpop.f32.mrf.mxu0
      %v450 = vadd.f32 0.0, %v449
      %451 = vdwg.mxu0
      %v452 = vadd.f32 %v409, %v448
      %v453 = vadd.f32 %v411, %v450
      %s454 = smul.addr %s335, 4
      %s455 = scalar_lea.vmem %s314, %s454
      %v456 = vld [vmem:[%s455] sm:$0xf]
      %v457 = vld [vmem:[%s455 + $0x4] sm:$0xf]
      %s458 = scalar_lea.vmem %s4, 24
      %v459 = vld [vmem:[%s458] sm:$0xf]
      %v460 = vld [vmem:[%s458 + $0x4] sm:$0x3]
      %v463 = vunpack.c.l.b16 %v456
      %v464 = vunpack.c.l.b16 %v457
      %v465 = vpack.c.b16 %v464, %v463
      %v468 = vunpack.c.l.b16 %v459
      %v469 = vunpack.c.l.b16 %v460
      %v470 = vpack.c.b16 %v469, %v468
      %v472 = vsel %vm361, %v465, 0
      %v475 = vsel %vm365, %v470, 0
      %477 = vmatpush.bf16.msra.mxu0 0
      %478 = vmatpush.bf16.msra.mxu0 0
      %479 = vmatpush.bf16.msra.mxu0 0
      %480 = vmatpush.bf16.msra.mxu0 0
      %481 = vmatpush.bf16.msra.mxu0 0
      %482 = vmatpush.bf16.msra.mxu0 0
      %483 = vmatpush.bf16.msra.mxu0 0
      %484 = vmatpush.bf16.msra.mxu0 %v475
      %485 = vmatmul.bf16.gmra.mxu0 %v472
      %v486 = vpop.f32.mrf.mxu0
      %v487 = vadd.f32 0.0, %v486
      %v488 = vpop.f32.mrf.mxu0
      %v489 = vadd.f32 0.0, %v488
      %490 = vdwg.mxu0
      %v491 = vadd.f32 %v452, %v487
      %v492 = vadd.f32 %v453, %v489
      %s493 = smul.addr %s343, 4
      %s494 = scalar_lea.vmem %s314, %s493
      %v495 = vld [vmem:[%s494] sm:$0xf]
      %v496 = vld [vmem:[%s494 + $0x4] sm:$0xf]
      %s497 = scalar_lea.vmem %s4, 32
      %v498 = vld [vmem:[%s497] sm:$0xf]
      %v499 = vld [vmem:[%s497 + $0x4] sm:$0x3]
      %v502 = vunpack.c.l.b16 %v495
      %v503 = vunpack.c.l.b16 %v496
      %v504 = vpack.c.b16 %v503, %v502
      %v507 = vunpack.c.l.b16 %v498
      %v508 = vunpack.c.l.b16 %v499
      %v509 = vpack.c.b16 %v508, %v507
      %v511 = vsel %vm361, %v504, 0
      %v514 = vsel %vm365, %v509, 0
      %516 = vmatpush.bf16.msra.mxu0 0
      %517 = vmatpush.bf16.msra.mxu0 0
      %518 = vmatpush.bf16.msra.mxu0 0
      %519 = vmatpush.bf16.msra.mxu0 0
      %520 = vmatpush.bf16.msra.mxu0 0
      %521 = vmatpush.bf16.msra.mxu0 0
      %522 = vmatpush.bf16.msra.mxu0 0
      %523 = vmatpush.bf16.msra.mxu0 %v514
      %524 = vmatmul.bf16.gmra.mxu0 %v511
      %v525 = vpop.f32.mrf.mxu0
      %v526 = vadd.f32 0.0, %v525
      %v527 = vpop.f32.mrf.mxu0
      %v528 = vadd.f32 0.0, %v527
      %529 = vdwg.mxu0
      %v530 = vadd.f32 %v491, %v526
      %v531 = vadd.f32 %v492, %v528
      %s532 = smul.addr %s414, 4
      %s533 = scalar_lea.vmem %s314, %s532
      %v534 = vld [vmem:[%s533] sm:$0xf]
      %v535 = vld [vmem:[%s533 + $0x4] sm:$0xf]
      %s536 = scalar_lea.vmem %s4, 40
      %v537 = vld [vmem:[%s536] sm:$0xf]
      %v538 = vld [vmem:[%s536 + $0x4] sm:$0x3]
      %v541 = vunpack.c.l.b16 %v534
      %v542 = vunpack.c.l.b16 %v535
      %v543 = vpack.c.b16 %v542, %v541
      %v546 = vunpack.c.l.b16 %v537
      %v547 = vunpack.c.l.b16 %v538
      %v548 = vpack.c.b16 %v547, %v546
      %v550 = vsel %vm361, %v543, 0
      %v553 = vsel %vm365, %v548, 0
      %555 = vmatpush.bf16.msra.mxu0 0
      %556 = vmatpush.bf16.msra.mxu0 0
      %557 = vmatpush.bf16.msra.mxu0 0
      %558 = vmatpush.bf16.msra.mxu0 0
      %559 = vmatpush.bf16.msra.mxu0 0
      %560 = vmatpush.bf16.msra.mxu0 0
      %561 = vmatpush.bf16.msra.mxu0 0
      %562 = vmatpush.bf16.msra.mxu0 %v553
      %563 = vmatmul.bf16.gmra.mxu0 %v550
      %v564 = vpop.f32.mrf.mxu0
      %v565 = vadd.f32 0.0, %v564
      %v566 = vpop.f32.mrf.mxu0
      %v567 = vadd.f32 0.0, %v566
      %568 = vdwg.mxu0
      %v569 = vadd.f32 %v530, %v565
      %v570 = vadd.f32 %v531, %v567
      %s571 = smul.addr %s335, 4
      %s572 = scalar_lea.vmem %s319, %s571
      %v573 = vld [vmem:[%s572] sm:$0xf]
      %v574 = vld [vmem:[%s572 + $0x4] sm:$0xf]
      %s575 = scalar_lea.vmem %s4, 48
      %v576 = vld [vmem:[%s575] sm:$0xf]
      %v577 = vld [vmem:[%s575 + $0x4] sm:$0x3]
      %v580 = vunpack.c.l.b16 %v573
      %v581 = vunpack.c.l.b16 %v574
      %v582 = vpack.c.b16 %v581, %v580
      %v585 = vunpack.c.l.b16 %v576
      %v586 = vunpack.c.l.b16 %v577
      %v587 = vpack.c.b16 %v586, %v585
      %v589 = vsel %vm361, %v582, 0
      %v592 = vsel %vm365, %v587, 0
      %594 = vmatpush.bf16.msra.mxu0 0
      %595 = vmatpush.bf16.msra.mxu0 0
      %596 = vmatpush.bf16.msra.mxu0 0
      %597 = vmatpush.bf16.msra.mxu0 0
      %598 = vmatpush.bf16.msra.mxu0 0
      %599 = vmatpush.bf16.msra.mxu0 0
      %600 = vmatpush.bf16.msra.mxu0 0
      %601 = vmatpush.bf16.msra.mxu0 %v592
      %602 = vmatmul.bf16.gmra.mxu0 %v589
      %v603 = vpop.f32.mrf.mxu0
      %v604 = vadd.f32 0.0, %v603
      %v605 = vpop.f32.mrf.mxu0
      %v606 = vadd.f32 0.0, %v605
      %607 = vdwg.mxu0
      %v608 = vadd.f32 %v569, %v604
      %v609 = vadd.f32 %v570, %v606
      %s610 = smul.addr %s343, 4
      %s611 = scalar_lea.vmem %s319, %s610
      %v612 = vld [vmem:[%s611] sm:$0xf]
      %v613 = vld [vmem:[%s611 + $0x4] sm:$0xf]
      %s614 = scalar_lea.vmem %s4, 56
      %v615 = vld [vmem:[%s614] sm:$0xf]
      %v616 = vld [vmem:[%s614 + $0x4] sm:$0x3]
      %v619 = vunpack.c.l.b16 %v612
      %v620 = vunpack.c.l.b16 %v613
      %v621 = vpack.c.b16 %v620, %v619
      %v624 = vunpack.c.l.b16 %v615
      %v625 = vunpack.c.l.b16 %v616
      %v626 = vpack.c.b16 %v625, %v624
      %v628 = vsel %vm361, %v621, 0
      %v631 = vsel %vm365, %v626, 0
      %633 = vmatpush.bf16.msra.mxu0 0
      %634 = vmatpush.bf16.msra.mxu0 0
      %635 = vmatpush.bf16.msra.mxu0 0
      %636 = vmatpush.bf16.msra.mxu0 0
      %637 = vmatpush.bf16.msra.mxu0 0
      %638 = vmatpush.bf16.msra.mxu0 0
      %639 = vmatpush.bf16.msra.mxu0 0
      %640 = vmatpush.bf16.msra.mxu0 %v631
      %641 = vmatmul.bf16.gmra.mxu0 %v628
      %v642 = vpop.f32.mrf.mxu0
      %v643 = vadd.f32 0.0, %v642
      %v644 = vpop.f32.mrf.mxu0
      %v645 = vadd.f32 0.0, %v644
      %646 = vdwg.mxu0
      %v647 = vadd.f32 %v608, %v643
      %v648 = vadd.f32 %v609, %v645
      %s649 = smul.addr %s414, 4
      %s650 = scalar_lea.vmem %s319, %s649
      %v651 = vld [vmem:[%s650] sm:$0xf]
      %v652 = vld [vmem:[%s650 + $0x4] sm:$0xf]
      %s653 = scalar_lea.vmem %s4, 64
      %v654 = vld [vmem:[%s653] sm:$0xf]
      %v655 = vld [vmem:[%s653 + $0x4] sm:$0x3]
      %v658 = vunpack.c.l.b16 %v651
      %v659 = vunpack.c.l.b16 %v652
      %v660 = vpack.c.b16 %v659, %v658
      %v663 = vunpack.c.l.b16 %v654
      %v664 = vunpack.c.l.b16 %v655
      %v665 = vpack.c.b16 %v664, %v663
      %v667 = vsel %vm361, %v660, 0
      %v670 = vsel %vm365, %v665, 0
      %672 = vmatpush.bf16.msra.mxu0 0
      %673 = vmatpush.bf16.msra.mxu0 0
      %674 = vmatpush.bf16.msra.mxu0 0
      %675 = vmatpush.bf16.msra.mxu0 0
      %676 = vmatpush.bf16.msra.mxu0 0
      %677 = vmatpush.bf16.msra.mxu0 0
      %678 = vmatpush.bf16.msra.mxu0 0
      %679 = vmatpush.bf16.msra.mxu0 %v670
      %680 = vmatmul.bf16.gmra.mxu0 %v667
      %v681 = vpop.f32.mrf.mxu0
      %v682 = vadd.f32 0.0, %v681
      %v683 = vpop.f32.mrf.mxu0
      %v684 = vadd.f32 0.0, %v683
      %685 = vdwg.mxu0
      %v686 = vadd.f32 %v647, %v682
      %v687 = vadd.f32 %v648, %v684
      %s688 = smul.addr %s335, 4
      %s689 = scalar_lea.vmem %s324, %s688
      %v690 = vld [vmem:[%s689] sm:$0xf]
      %v691 = vld [vmem:[%s689 + $0x4] sm:$0xf]
      %s692 = scalar_lea.vmem %s4, 72
      %v693 = vld [vmem:[%s692] sm:$0xf]
      %v694 = vld [vmem:[%s692 + $0x4] sm:$0x3]
      %v697 = vunpack.c.l.b16 %v690
      %v698 = vunpack.c.l.b16 %v691
      %v699 = vpack.c.b16 %v698, %v697
      %v702 = vunpack.c.l.b16 %v693
      %v703 = vunpack.c.l.b16 %v694
      %v704 = vpack.c.b16 %v703, %v702
      %v706 = vsel %vm361, %v699, 0
      %v709 = vsel %vm365, %v704, 0
      %711 = vmatpush.bf16.msra.mxu0 0
      %712 = vmatpush.bf16.msra.mxu0 0
      %713 = vmatpush.bf16.msra.mxu0 0
      %714 = vmatpush.bf16.msra.mxu0 0
      %715 = vmatpush.bf16.msra.mxu0 0
      %716 = vmatpush.bf16.msra.mxu0 0
      %717 = vmatpush.bf16.msra.mxu0 0
      %718 = vmatpush.bf16.msra.mxu0 %v709
      %719 = vmatmul.bf16.gmra.mxu0 %v706
      %v720 = vpop.f32.mrf.mxu0
      %v721 = vadd.f32 0.0, %v720
      %v722 = vpop.f32.mrf.mxu0
      %v723 = vadd.f32 0.0, %v722
      %724 = vdwg.mxu0
      %v725 = vadd.f32 %v686, %v721
      %v726 = vadd.f32 %v687, %v723
      %s727 = smul.addr %s343, 4
      %s728 = scalar_lea.vmem %s324, %s727
      %v729 = vld [vmem:[%s728] sm:$0xf]
      %v730 = vld [vmem:[%s728 + $0x4] sm:$0xf]
      %s731 = scalar_lea.vmem %s4, 80
      %v732 = vld [vmem:[%s731] sm:$0xf]
      %v733 = vld [vmem:[%s731 + $0x4] sm:$0x3]
      %v736 = vunpack.c.l.b16 %v729
      %v737 = vunpack.c.l.b16 %v730
      %v738 = vpack.c.b16 %v737, %v736
      %v741 = vunpack.c.l.b16 %v732
      %v742 = vunpack.c.l.b16 %v733
      %v743 = vpack.c.b16 %v742, %v741
      %v745 = vsel %vm361, %v738, 0
      %v748 = vsel %vm365, %v743, 0
      %750 = vmatpush.bf16.msra.mxu0 0
      %751 = vmatpush.bf16.msra.mxu0 0
      %752 = vmatpush.bf16.msra.mxu0 0
      %753 = vmatpush.bf16.msra.mxu0 0
      %754 = vmatpush.bf16.msra.mxu0 0
      %755 = vmatpush.bf16.msra.mxu0 0
      %756 = vmatpush.bf16.msra.mxu0 0
      %757 = vmatpush.bf16.msra.mxu0 %v748
      %758 = vmatmul.bf16.gmra.mxu0 %v745
      %v759 = vpop.f32.mrf.mxu0
      %v760 = vadd.f32 0.0, %v759
      %v761 = vpop.f32.mrf.mxu0
      %v762 = vadd.f32 0.0, %v761
      %763 = vdwg.mxu0
      %v764 = vadd.f32 %v725, %v760
      %v765 = vadd.f32 %v726, %v762
      %s766 = smul.addr %s414, 4
      %s767 = scalar_lea.vmem %s324, %s766
      %v768 = vld [vmem:[%s767] sm:$0xf]
      %v769 = vld [vmem:[%s767 + $0x4] sm:$0xf]
      %s770 = scalar_lea.vmem %s4, 88
      %v771 = vld [vmem:[%s770] sm:$0xf]
      %v772 = vld [vmem:[%s770 + $0x4] sm:$0x3]
      %v775 = vunpack.c.l.b16 %v768
      %v776 = vunpack.c.l.b16 %v769
      %v777 = vpack.c.b16 %v776, %v775
      %v780 = vunpack.c.l.b16 %v771
      %v781 = vunpack.c.l.b16 %v772
      %v782 = vpack.c.b16 %v781, %v780
      %v784 = vsel %vm361, %v777, 0
      %v787 = vsel %vm365, %v782, 0
      %789 = vmatpush.bf16.msra.mxu0 0
      %790 = vmatpush.bf16.msra.mxu0 0
      %791 = vmatpush.bf16.msra.mxu0 0
      %792 = vmatpush.bf16.msra.mxu0 0
      %793 = vmatpush.bf16.msra.mxu0 0
      %794 = vmatpush.bf16.msra.mxu0 0
      %795 = vmatpush.bf16.msra.mxu0 0
      %796 = vmatpush.bf16.msra.mxu0 %v787
      %797 = vmatmul.bf16.gmra.mxu0 %v784
      %v798 = vpop.f32.mrf.mxu0
      %v799 = vadd.f32 0.0, %v798
      %v800 = vpop.f32.mrf.mxu0
      %v801 = vadd.f32 0.0, %v800
      %802 = vdwg.mxu0
      %v803 = vadd.f32 %v764, %v799
      %v804 = vadd.f32 %v765, %v801
      %v805 = vld [vmem:[%s5] sm:$0x1]
      %v807 = vperm.slane %v805, 0
      %v809 = vadd.f32 %v803, %v807
      %v810 = vadd.f32 %v804, %v807
      %v811 = vmax.f32 %v809, 0.0
      %v812 = vmax.f32 %v810, 0.0
      %v813 = vpack.c.bf16 %v811, %v811
      %v814 = vpack.c.bf16 %v812, %v812
      %vm815 = vcmask 125952
      %816 = vst.msk [vmem:[%s333] sm:$0xf] %vm815, %v813
      %817 = vst.msk [vmem:[%s333 + $0x4] sm:$0xf] %vm815, %v814
      %p818 = scmp.lt.s32.totalorder %s21, 1
      %s819 = scalar_select %p818, %s21, 1
      %p820 = scmp.lt.s32.totalorder %s22, 15
      %s821 = scalar_select %p820, %s22, 15
      %s822 = smul.addr %s821, 2
      %s823 = smul.addr %s819, 32
      %s824 = sadd.s32 %s822, %s823
      %s825 = smul.addr %s824, 4
      %s826 = scalar_lea.vmem %s6, %s825
      // Predicated region
      $region45: #{fpn_forward.15} parent=43 // pred_check
        %p827 = pneg %p195
      $region46: #{fpn_forward.15} parent=43 // pred_check_branch
        %829 = sbr.rel (%p827) target = $region48
      $region47: #{fpn_forward.15} parent=43 // pred_region
        _
      $region48: #{fpn_forward.15} parent=43 // pred_fallthru
        _
    $region44: #{fpn_forward.15} parent=5 // pred_fallthru
      _
    %p830 = scmp.le.s32.totalorder 2, %s12
    // Predicated region
    $region49: #{fpn_forward.15} parent=5 // pred_check
      %p831 = pneg %p830
    $region50: #{fpn_forward.15} parent=5 // pred_check_branch
      %833 = sbr.rel (%p831) target = $region52
    $region51: #{fpn_forward.15} parent=5 // pred_region
      %s834 = ssub.s32 %s12, 2
      // Predicated region
      $region53: #{fpn_forward.15} parent=51 // pred_check
        %p835 = pneg %p201
      $region54: #{fpn_forward.15} parent=51 // pred_check_branch
        %837 = sbr.rel (%p835) target = $region56
      $region55: #{fpn_forward.15} parent=51 // pred_region
        %p838 = scmp.lt.s32.totalorder %s23, 1
        %s839 = scalar_select %p838, %s23, 1
        %p840 = scmp.lt.s32.totalorder %s24, 15
        %s841 = scalar_select %p840, %s24, 15
        %s842 = smul.addr %s841, 2
        %s843 = smul.addr %s839, 32
        %s844 = sadd.s32 %s842, %s843
        %s845 = smul.addr %s844, 4
        %s846 = scalar_lea.vmem %s6, %s845
      $region56: #{fpn_forward.15} parent=51 // pred_fallthru
        _
    $region52: #{fpn_forward.15} parent=5 // pred_fallthru
      _
  $region6: #{fpn_forward.15} parent=0 // loop_footer
    %s16 = sadd.s32 1, %s12
  $region7: #{fpn_forward.15} parent=0 // loop_footer_branch
    %11 = sbr.rel target = $region3
  $region8: #{fpn_forward.15} parent=0 // loop_exit
    _

</llo_original>
